<compile_context>
chip_gen: v6e
topology: v6e:2x2x1
jax: 0.10.0
libtpu: 0.0.40
codegen_flags: <defaults>
</compile_context>

<pallas_src>
import functools

import jax
import jax.numpy as jnp
from jax.experimental import pallas as pl
from jax.experimental.pallas import tpu as pltpu


# ------------------------------ fused kernel --------------------------------

def _decoder_fused_kernel(x_ref, wx_ref, bx_ref, whhf_ref, whhb_ref,
                          wo_ref, bo_ref, o_ref, xp_scr, h_scr,
                          *, seq, batch, hidden):
    """x_ref:   (T*Bp, E)   f32   time-major, batch padded to Bp
       wx_ref:  (E, 8H)     f32   [W_ih_fwd | W_ih_bwd]
       bx_ref:  (1, 8H)     f32   [b_fwd | b_bwd]  (b_ih + b_hh folded)
       whh*_ref:(H, 4H)     f32   recurrent weights per direction
       wo_ref:  (2H, V)     f32   classifier weights
       bo_ref:  (1, V)      f32
       o_ref:   (T*Bp, V)   f32   time-major logits
       xp_scr:  (T*Bp, 8H)  f32   VMEM scratch (input projection, both dirs)
       h_scr:   (T*Bp, 2H)  f32   VMEM scratch (concat hidden states)
    """
    hsz = hidden

    # 1) Time-parallel input projection for both directions in one MXU pass.
    #    Stays in VMEM -- never written back to HBM.
    xp_scr[...] = (
        jnp.dot(x_ref[...], wx_ref[...], preferred_element_type=jnp.float32)
        + bx_ref[...])

    # 2) Both recurrences, fully unrolled over the static sequence length.
    def cell(xp, h, c, whh_ref):
        gates = xp + jnp.dot(h, whh_ref[...], preferred_element_type=jnp.float32)
        # PyTorch LSTM gate order: i, f, g, o.
        i_g = jax.nn.sigmoid(gates[:, 0 * hsz:1 * hsz])
        f_g = jax.nn.sigmoid(gates[:, 1 * hsz:2 * hsz])
        g_g = jnp.tanh(gates[:, 2 * hsz:3 * hsz])
        o_g = jax.nn.sigmoid(gates[:, 3 * hsz:4 * hsz])
        c_new = f_g * c + i_g * g_g
        h_new = o_g * jnp.tanh(c_new)
        return h_new, c_new

    h_f = jnp.zeros((batch, hsz), jnp.float32)
    c_f = jnp.zeros((batch, hsz), jnp.float32)
    h_b = jnp.zeros((batch, hsz), jnp.float32)
    c_b = jnp.zeros((batch, hsz), jnp.float32)

    for t in range(seq):                 # static unroll: all slices are aligned constants
        rt = seq - 1 - t
        xp_f = xp_scr[t * batch:(t + 1) * batch, 0:4 * hsz]
        xp_b = xp_scr[rt * batch:(rt + 1) * batch, 4 * hsz:8 * hsz]
        h_f, c_f = cell(xp_f, h_f, c_f, whhf_ref)
        h_b, c_b = cell(xp_b, h_b, c_b, whhb_ref)
        # PyTorch bidirectional layout: output[t] = [h_fwd_t ; h_bwd_t].
        h_scr[t * batch:(t + 1) * batch, 0:hsz] = h_f
        h_scr[rt * batch:(rt + 1) * batch, hsz:2 * hsz] = h_b

    # 3) Final Linear(2H -> vocab) epilogue over the resident hidden states.
    o_ref[...] = (
        jnp.dot(h_scr[...], wo_ref[...], preferred_element_type=jnp.float32)
        + bo_ref[...])


# ------------------------------ kernel wrapper -------------------------------

def _round_up(x, m):
    return (x + m - 1) // m * m


def decoder_rnn_forward(params, features, captions):
    """features: (B, E) f32, captions: (B, L) int32 -> (B, L, vocab) f32."""
    emb_tab = params["embedding"]
    hsz = params["w_hh_f"].shape[0]
    esz = emb_tab.shape[1]
    vocab = params["w_out"].shape[1]
    batch = features.shape[0]
    assert esz % 128 == 0 and hsz % 128 == 0 and vocab % 128 == 0, (
        "lane-dense shapes assumed at these test sizes")

    # --- XLA glue: data-dependent embedding row-gather, built directly in
    #     time-major layout so no activation transpose is needed.
    # TODO(synk): the autoregressive sample() loop is host-side control flow
    # over repeated single-step forwards and is not reproduced here.
    cap = captions[:, :-1]                                      # (B, L-1)
    emb = jnp.take(emb_tab, cap.T, axis=0)                      # (L-1, B, E)
    x = jnp.concatenate([features[None, :, :], emb], axis=0)    # (T, B, E)
    seq = x.shape[0]

    # Pad batch to a sublane multiple so every in-kernel vld/vst is unmasked.
    bp = _round_up(batch, 8)
    x = jnp.pad(x, ((0, 0), (0, bp - batch), (0, 0)))
    x2d = x.reshape(seq * bp, esz).astype(jnp.float32)          # (T*Bp, E)

    # Stack both directions for one fused input projection.
    w_x = jnp.concatenate([params["w_ih_f"], params["w_ih_b"]], axis=1)    # (E, 8H)
    b_x = jnp.concatenate([params["b_f"], params["b_b"]], axis=0)[None]    # (1, 8H)
    w_out = params["w_out"]                                                # (2H, V)
    b_out = params["b_out"][None]                                          # (1, V)

    h4 = 4 * hsz
    cost = pl.CostEstimate(
        flops=(2 * seq * bp * esz * 2 * h4            # input projection (both dirs)
               + 2 * 2 * seq * bp * hsz * h4          # recurrences
               + 2 * seq * bp * 2 * hsz * vocab),     # classifier
        transcendentals=2 * seq * bp * 5 * hsz,       # 3 sigmoid + 2 tanh per cell
        bytes_accessed=4 * (x2d.size + w_x.size + b_x.size
                            + params["w_hh_f"].size + params["w_hh_b"].size
                            + w_out.size + b_out.size + seq * bp * vocab),
    )

    out2d = pl.pallas_call(
        functools.partial(_decoder_fused_kernel, seq=seq, batch=bp, hidden=hsz),
        out_shape=jax.ShapeDtypeStruct((seq * bp, vocab), jnp.float32),
        in_specs=[pl.BlockSpec(memory_space=pltpu.MemorySpace.VMEM)] * 7,
        out_specs=pl.BlockSpec(memory_space=pltpu.MemorySpace.VMEM),
        scratch_shapes=[
            pltpu.VMEM((seq * bp, 2 * h4), jnp.float32),    # xproj, both directions
            pltpu.VMEM((seq * bp, 2 * hsz), jnp.float32),   # concat hidden states
        ],
        cost_estimate=cost,
    )(x2d, w_x, b_x, params["w_hh_f"], params["w_hh_b"], w_out, b_out)

    # (T*Bp, V) -> (B, T, V): tiny (<= 64 KiB) slice + transpose stays in XLA.
    return out2d.reshape(seq, bp, vocab)[:, :batch].transpose(1, 0, 2)


# --------------------------- parameters (synthetic) ---------------------------

def init_params(key, embed_size, hidden_size, vocab_size):
    ks = jax.random.split(key, 9)

    def uni(k, shape, fan):
        bound = 1.0 / jnp.sqrt(float(fan))
        return jax.random.uniform(k, shape, jnp.float32, -bound, bound)

    h4 = 4 * hidden_size
    return {
        "embedding": uni(ks[0], (vocab_size, embed_size), embed_size),
        # forward direction (torch weight_ih_l0 / weight_hh_l0, transposed)
        "w_ih_f": uni(ks[1], (embed_size, h4), hidden_size),
        "w_hh_f": uni(ks[2], (hidden_size, h4), hidden_size),
        "b_f": uni(ks[3], (h4,), hidden_size),        # b_ih + b_hh folded
        # reverse direction
        "w_ih_b": uni(ks[4], (embed_size, h4), hidden_size),
        "w_hh_b": uni(ks[5], (hidden_size, h4), hidden_size),
        "b_b": uni(ks[6], (h4,), hidden_size),
        # classifier: Linear(2H -> vocab), transposed torch layout
        "w_out": uni(ks[7], (2 * hidden_size, vocab_size), 2 * hidden_size),
        "b_out": uni(ks[8], (vocab_size,), 2 * hidden_size),
    }


if __name__ == "__main__":
    key = jax.random.PRNGKey(0)
    kp, kf, kc = jax.random.split(key, 3)

    batch, seq_len = 2, 8
    embed_size, hidden_size, vocab_size = 128, 128, 256

    params = init_params(kp, embed_size, hidden_size, vocab_size)
    features = jax.random.normal(kf, (batch, embed_size), jnp.float32)
    captions = jax.random.randint(kc, (batch, seq_len), 0, vocab_size, jnp.int32)

    out = jax.jit(functools.partial(decoder_rnn_forward, params))(features, captions)
    out = jax.block_until_ready(out)

    assert out.shape == (batch, seq_len, vocab_size), out.shape
    assert out.dtype == jnp.float32
    assert bool(jnp.all(jnp.isfinite(out)))
    print("KERNEL_OK")
</pallas_src>

<mosaic_0001>
module attributes {stable_mosaic.version = 11 : i64} {
  func.func @_decoder_fused_kernel(%arg0: memref<64x128xf32, #tpu.memory_space<vmem>>, %arg1: memref<128x1024xf32, #tpu.memory_space<vmem>>, %arg2: memref<1x1024xf32, #tpu.memory_space<vmem>>, %arg3: memref<128x512xf32, #tpu.memory_space<vmem>>, %arg4: memref<128x512xf32, #tpu.memory_space<vmem>>, %arg5: memref<256x256xf32, #tpu.memory_space<vmem>>, %arg6: memref<1x256xf32, #tpu.memory_space<vmem>>, %arg7: memref<64x256xf32, #tpu.memory_space<vmem>>, %arg8: memref<64x1024xf32, #tpu.memory_space<vmem>>, %arg9: memref<64x256xf32, #tpu.memory_space<vmem>>) attributes {dimension_semantics = [], scalar_prefetch = 0 : i64, scratch_operands = 2 : i64, tpu.core_type = #tpu.core_type<tc>} {
    %c0 = arith.constant 0 : index
    %c0_0 = arith.constant 0 : index
    %0 = vector.load %arg0[%c0, %c0_0] : memref<64x128xf32, #tpu.memory_space<vmem>>, vector<64x128xf32>
    %c0_1 = arith.constant 0 : index
    %c0_2 = arith.constant 0 : index
    %1 = vector.load %arg1[%c0_1, %c0_2] : memref<128x1024xf32, #tpu.memory_space<vmem>>, vector<128x1024xf32>
    %cst = arith.constant dense<0.000000e+00> : vector<64x1024xf32>
    %2 = tpu.matmul %0, %1, %cst {dimension_numbers = #tpu.dot_dimension_numbers<[1], [0], [0], [1], [0, 0, 1, 1], [], []>} : vector<64x128xf32>, vector<128x1024xf32>, vector<64x1024xf32> -> vector<64x1024xf32>
    %c0_3 = arith.constant 0 : index
    %c0_4 = arith.constant 0 : index
    %3 = vector.load %arg2[%c0_3, %c0_4] : memref<1x1024xf32, #tpu.memory_space<vmem>>, vector<1x1024xf32>
    %4 = vector.broadcast %3 : vector<1x1024xf32> to vector<64x1024xf32>
    %5 = arith.addf %2, %4 : vector<64x1024xf32>
    %c0_5 = arith.constant 0 : index
    %c0_6 = arith.constant 0 : index
    %6 = vector.load %arg8[%c0_5, %c0_6] : memref<64x1024xf32, #tpu.memory_space<vmem>>, vector<64x1024xf32>
    tpu.vector_store %arg8[%c0_5, %c0_6], %5 {strides = array<i32>} : memref<64x1024xf32, #tpu.memory_space<vmem>>, vector<64x1024xf32>,
    %cst_7 = arith.constant 0.000000e+00 : f32
    %7 = vector.broadcast %cst_7 : f32 to vector<8x128xf32>
    %cst_8 = arith.constant 0.000000e+00 : f32
    %8 = vector.broadcast %cst_8 : f32 to vector<8x128xf32>
    %cst_9 = arith.constant 0.000000e+00 : f32
    %9 = vector.broadcast %cst_9 : f32 to vector<8x128xf32>
    %cst_10 = arith.constant 0.000000e+00 : f32
    %10 = vector.broadcast %cst_10 : f32 to vector<8x128xf32>
    %c0_11 = arith.constant 0 : index
    %c0_12 = arith.constant 0 : index
    %11 = vector.load %arg8[%c0_11, %c0_12] : memref<64x1024xf32, #tpu.memory_space<vmem>>, vector<8x512xf32>
    %c56 = arith.constant 56 : index
    %c512 = arith.constant 512 : index
    %12 = vector.load %arg8[%c56, %c512] : memref<64x1024xf32, #tpu.memory_space<vmem>>, vector<8x512xf32>
    %c0_13 = arith.constant 0 : index
    %c0_14 = arith.constant 0 : index
    %13 = vector.load %arg3[%c0_13, %c0_14] : memref<128x512xf32, #tpu.memory_space<vmem>>, vector<128x512xf32>
    %cst_15 = arith.constant dense<0.000000e+00> : vector<8x512xf32>
    %14 = tpu.matmul %7, %13, %cst_15 {dimension_numbers = #tpu.dot_dimension_numbers<[1], [0], [0], [1], [0, 0, 1, 1], [], []>} : vector<8x128xf32>, vector<128x512xf32>, vector<8x512xf32> -> vector<8x512xf32>
    %15 = arith.addf %11, %14 : vector<8x512xf32>
    %16 = vector.extract_strided_slice %15 {offsets = [0, 0], sizes = [8, 128], strides = [1, 1]} : vector<8x512xf32> to vector<8x128xf32>
    %17 = arith.negf %16 : vector<8x128xf32>
    %18 = math.exp %17 : vector<8x128xf32>
    %cst_16 = arith.constant 1.000000e+00 : f32
    %19 = vector.broadcast %cst_16 : f32 to vector<8x128xf32>
    %20 = arith.addf %19, %18 : vector<8x128xf32>
    %21 = arith.divf %19, %20 : vector<8x128xf32>
    %22 = vector.extract_strided_slice %15 {offsets = [0, 128], sizes = [8, 128], strides = [1, 1]} : vector<8x512xf32> to vector<8x128xf32>
    %23 = arith.negf %22 : vector<8x128xf32>
    %24 = math.exp %23 : vector<8x128xf32>
    %cst_17 = arith.constant 1.000000e+00 : f32
    %25 = vector.broadcast %cst_17 : f32 to vector<8x128xf32>
    %26 = arith.addf %25, %24 : vector<8x128xf32>
    %27 = arith.divf %25, %26 : vector<8x128xf32>
    %28 = vector.extract_strided_slice %15 {offsets = [0, 256], sizes = [8, 128], strides = [1, 1]} : vector<8x512xf32> to vector<8x128xf32>
    %29 = math.tanh %28 : vector<8x128xf32>
    %30 = vector.extract_strided_slice %15 {offsets = [0, 384], sizes = [8, 128], strides = [1, 1]} : vector<8x512xf32> to vector<8x128xf32>
    %31 = arith.negf %30 : vector<8x128xf32>
    %32 = math.exp %31 : vector<8x128xf32>
    %cst_18 = arith.constant 1.000000e+00 : f32
    %33 = vector.broadcast %cst_18 : f32 to vector<8x128xf32>
    %34 = arith.addf %33, %32 : vector<8x128xf32>
    %35 = arith.divf %33, %34 : vector<8x128xf32>
    %36 = arith.mulf %27, %8 : vector<8x128xf32>
    %37 = arith.mulf %21, %29 : vector<8x128xf32>
    %38 = arith.addf %36, %37 : vector<8x128xf32>
    %39 = math.tanh %38 : vector<8x128xf32>
    %40 = arith.mulf %35, %39 : vector<8x128xf32>
    %c0_19 = arith.constant 0 : index
    %c0_20 = arith.constant 0 : index
    %41 = vector.load %arg4[%c0_19, %c0_20] : memref<128x512xf32, #tpu.memory_space<vmem>>, vector<128x512xf32>
    %cst_21 = arith.constant dense<0.000000e+00> : vector<8x512xf32>
    %42 = tpu.matmul %9, %41, %cst_21 {dimension_numbers = #tpu.dot_dimension_numbers<[1], [0], [0], [1], [0, 0, 1, 1], [], []>} : vector<8x128xf32>, vector<128x512xf32>, vector<8x512xf32> -> vector<8x512xf32>
    %43 = arith.addf %12, %42 : vector<8x512xf32>
    %44 = vector.extract_strided_slice %43 {offsets = [0, 0], sizes = [8, 128], strides = [1, 1]} : vector<8x512xf32> to vector<8x128xf32>
    %45 = arith.negf %44 : vector<8x128xf32>
    %46 = math.exp %45 : vector<8x128xf32>
    %cst_22 = arith.constant 1.000000e+00 : f32
    %47 = vector.broadcast %cst_22 : f32 to vector<8x128xf32>
    %48 = arith.addf %47, %46 : vector<8x128xf32>
    %49 = arith.divf %47, %48 : vector<8x128xf32>
    %50 = vector.extract_strided_slice %43 {offsets = [0, 128], sizes = [8, 128], strides = [1, 1]} : vector<8x512xf32> to vector<8x128xf32>
    %51 = arith.negf %50 : vector<8x128xf32>
    %52 = math.exp %51 : vector<8x128xf32>
    %cst_23 = arith.constant 1.000000e+00 : f32
    %53 = vector.broadcast %cst_23 : f32 to vector<8x128xf32>
    %54 = arith.addf %53, %52 : vector<8x128xf32>
    %55 = arith.divf %53, %54 : vector<8x128xf32>
    %56 = vector.extract_strided_slice %43 {offsets = [0, 256], sizes = [8, 128], strides = [1, 1]} : vector<8x512xf32> to vector<8x128xf32>
    %57 = math.tanh %56 : vector<8x128xf32>
    %58 = vector.extract_strided_slice %43 {offsets = [0, 384], sizes = [8, 128], strides = [1, 1]} : vector<8x512xf32> to vector<8x128xf32>
    %59 = arith.negf %58 : vector<8x128xf32>
    %60 = math.exp %59 : vector<8x128xf32>
    %cst_24 = arith.constant 1.000000e+00 : f32
    %61 = vector.broadcast %cst_24 : f32 to vector<8x128xf32>
    %62 = arith.addf %61, %60 : vector<8x128xf32>
    %63 = arith.divf %61, %62 : vector<8x128xf32>
    %64 = arith.mulf %55, %10 : vector<8x128xf32>
    %65 = arith.mulf %49, %57 : vector<8x128xf32>
    %66 = arith.addf %64, %65 : vector<8x128xf32>
    %67 = math.tanh %66 : vector<8x128xf32>
    %68 = arith.mulf %63, %67 : vector<8x128xf32>
    %c0_25 = arith.constant 0 : index
    %c0_26 = arith.constant 0 : index
    %69 = vector.load %arg9[%c0_25, %c0_26] : memref<64x256xf32, #tpu.memory_space<vmem>>, vector<8x128xf32>
    tpu.vector_store %arg9[%c0_25, %c0_26], %40 {strides = array<i32>} : memref<64x256xf32, #tpu.memory_space<vmem>>, vector<8x128xf32>,
    %c56_27 = arith.constant 56 : index
    %c128 = arith.constant 128 : index
    %70 = vector.load %arg9[%c56_27, %c128] : memref<64x256xf32, #tpu.memory_space<vmem>>, vector<8x128xf32>
    tpu.vector_store %arg9[%c56_27, %c128], %68 {strides = array<i32>} : memref<64x256xf32, #tpu.memory_space<vmem>>, vector<8x128xf32>,
    %c8 = arith.constant 8 : index
    %c0_28 = arith.constant 0 : index
    %71 = vector.load %arg8[%c8, %c0_28] : memref<64x1024xf32, #tpu.memory_space<vmem>>, vector<8x512xf32>
    %c48 = arith.constant 48 : index
    %c512_29 = arith.constant 512 : index
    %72 = vector.load %arg8[%c48, %c512_29] : memref<64x1024xf32, #tpu.memory_space<vmem>>, vector<8x512xf32>
    %c0_30 = arith.constant 0 : index
    %c0_31 = arith.constant 0 : index
    %73 = vector.load %arg3[%c0_30, %c0_31] : memref<128x512xf32, #tpu.memory_space<vmem>>, vector<128x512xf32>
    %cst_32 = arith.constant dense<0.000000e+00> : vector<8x512xf32>
    %74 = tpu.matmul %40, %73, %cst_32 {dimension_numbers = #tpu.dot_dimension_numbers<[1], [0], [0], [1], [0, 0, 1, 1], [], []>} : vector<8x128xf32>, vector<128x512xf32>, vector<8x512xf32> -> vector<8x512xf32>
    %75 = arith.addf %71, %74 : vector<8x512xf32>
    %76 = vector.extract_strided_slice %75 {offsets = [0, 0], sizes = [8, 128], strides = [1, 1]} : vector<8x512xf32> to vector<8x128xf32>
    %77 = arith.negf %76 : vector<8x128xf32>
    %78 = math.exp %77 : vector<8x128xf32>
    %cst_33 = arith.constant 1.000000e+00 : f32
    %79 = vector.broadcast %cst_33 : f32 to vector<8x128xf32>
    %80 = arith.addf %79, %78 : vector<8x128xf32>
    %81 = arith.divf %79, %80 : vector<8x128xf32>
    %82 = vector.extract_strided_slice %75 {offsets = [0, 128], sizes = [8, 128], strides = [1, 1]} : vector<8x512xf32> to vector<8x128xf32>
    %83 = arith.negf %82 : vector<8x128xf32>
    %84 = math.exp %83 : vector<8x128xf32>
    %cst_34 = arith.constant 1.000000e+00 : f32
    %85 = vector.broadcast %cst_34 : f32 to vector<8x128xf32>
    %86 = arith.addf %85, %84 : vector<8x128xf32>
    %87 = arith.divf %85, %86 : vector<8x128xf32>
    %88 = vector.extract_strided_slice %75 {offsets = [0, 256], sizes = [8, 128], strides = [1, 1]} : vector<8x512xf32> to vector<8x128xf32>
    %89 = math.tanh %88 : vector<8x128xf32>
    %90 = vector.extract_strided_slice %75 {offsets = [0, 384], sizes = [8, 128], strides = [1, 1]} : vector<8x512xf32> to vector<8x128xf32>
    %91 = arith.negf %90 : vector<8x128xf32>
    %92 = math.exp %91 : vector<8x128xf32>
    %cst_35 = arith.constant 1.000000e+00 : f32
    %93 = vector.broadcast %cst_35 : f32 to vector<8x128xf32>
    %94 = arith.addf %93, %92 : vector<8x128xf32>
    %95 = arith.divf %93, %94 : vector<8x128xf32>
    %96 = arith.mulf %87, %38 : vector<8x128xf32>
    %97 = arith.mulf %81, %89 : vector<8x128xf32>
    %98 = arith.addf %96, %97 : vector<8x128xf32>
    %99 = math.tanh %98 : vector<8x128xf32>
    %100 = arith.mulf %95, %99 : vector<8x128xf32>
    %c0_36 = arith.constant 0 : index
    %c0_37 = arith.constant 0 : index
    %101 = vector.load %arg4[%c0_36, %c0_37] : memref<128x512xf32, #tpu.memory_space<vmem>>, vector<128x512xf32>
    %cst_38 = arith.constant dense<0.000000e+00> : vector<8x512xf32>
    %102 = tpu.matmul %68, %101, %cst_38 {dimension_numbers = #tpu.dot_dimension_numbers<[1], [0], [0], [1], [0, 0, 1, 1], [], []>} : vector<8x128xf32>, vector<128x512xf32>, vector<8x512xf32> -> vector<8x512xf32>
    %103 = arith.addf %72, %102 : vector<8x512xf32>
    %104 = vector.extract_strided_slice %103 {offsets = [0, 0], sizes = [8, 128], strides = [1, 1]} : vector<8x512xf32> to vector<8x128xf32>
    %105 = arith.negf %104 : vector<8x128xf32>
    %106 = math.exp %105 : vector<8x128xf32>
    %cst_39 = arith.constant 1.000000e+00 : f32
    %107 = vector.broadcast %cst_39 : f32 to vector<8x128xf32>
    %108 = arith.addf %107, %106 : vector<8x128xf32>
    %109 = arith.divf %107, %108 : vector<8x128xf32>
    %110 = vector.extract_strided_slice %103 {offsets = [0, 128], sizes = [8, 128], strides = [1, 1]} : vector<8x512xf32> to vector<8x128xf32>
    %111 = arith.negf %110 : vector<8x128xf32>
    %112 = math.exp %111 : vector<8x128xf32>
    %cst_40 = arith.constant 1.000000e+00 : f32
    %113 = vector.broadcast %cst_40 : f32 to vector<8x128xf32>
    %114 = arith.addf %113, %112 : vector<8x128xf32>
    %115 = arith.divf %113, %114 : vector<8x128xf32>
    %116 = vector.extract_strided_slice %103 {offsets = [0, 256], sizes = [8, 128], strides = [1, 1]} : vector<8x512xf32> to vector<8x128xf32>
    %117 = math.tanh %116 : vector<8x128xf32>
    %118 = vector.extract_strided_slice %103 {offsets = [0, 384], sizes = [8, 128], strides = [1, 1]} : vector<8x512xf32> to vector<8x128xf32>
    %119 = arith.negf %118 : vector<8x128xf32>
    %120 = math.exp %119 : vector<8x128xf32>
    %cst_41 = arith.constant 1.000000e+00 : f32
    %121 = vector.broadcast %cst_41 : f32 to vector<8x128xf32>
    %122 = arith.addf %121, %120 : vector<8x128xf32>
    %123 = arith.divf %121, %122 : vector<8x128xf32>
    %124 = arith.mulf %115, %66 : vector<8x128xf32>
    %125 = arith.mulf %109, %117 : vector<8x128xf32>
    %126 = arith.addf %124, %125 : vector<8x128xf32>
    %127 = math.tanh %126 : vector<8x128xf32>
    %128 = arith.mulf %123, %127 : vector<8x128xf32>
    %c8_42 = arith.constant 8 : index
    %c0_43 = arith.constant 0 : index
    %129 = vector.load %arg9[%c8_42, %c0_43] : memref<64x256xf32, #tpu.memory_space<vmem>>, vector<8x128xf32>
    tpu.vector_store %arg9[%c8_42, %c0_43], %100 {strides = array<i32>} : memref<64x256xf32, #tpu.memory_space<vmem>>, vector<8x128xf32>,
    %c48_44 = arith.constant 48 : index
    %c128_45 = arith.constant 128 : index
    %130 = vector.load %arg9[%c48_44, %c128_45] : memref<64x256xf32, #tpu.memory_space<vmem>>, vector<8x128xf32>
    tpu.vector_store %arg9[%c48_44, %c128_45], %128 {strides = array<i32>} : memref<64x256xf32, #tpu.memory_space<vmem>>, vector<8x128xf32>,
    %c16 = arith.constant 16 : index
    %c0_46 = arith.constant 0 : index
    %131 = vector.load %arg8[%c16, %c0_46] : memref<64x1024xf32, #tpu.memory_space<vmem>>, vector<8x512xf32>
    %c40 = arith.constant 40 : index
    %c512_47 = arith.constant 512 : index
    %132 = vector.load %arg8[%c40, %c512_47] : memref<64x1024xf32, #tpu.memory_space<vmem>>, vector<8x512xf32>
    %c0_48 = arith.constant 0 : index
    %c0_49 = arith.constant 0 : index
    %133 = vector.load %arg3[%c0_48, %c0_49] : memref<128x512xf32, #tpu.memory_space<vmem>>, vector<128x512xf32>
    %cst_50 = arith.constant dense<0.000000e+00> : vector<8x512xf32>
    %134 = tpu.matmul %100, %133, %cst_50 {dimension_numbers = #tpu.dot_dimension_numbers<[1], [0], [0], [1], [0, 0, 1, 1], [], []>} : vector<8x128xf32>, vector<128x512xf32>, vector<8x512xf32> -> vector<8x512xf32>
    %135 = arith.addf %131, %134 : vector<8x512xf32>
    %136 = vector.extract_strided_slice %135 {offsets = [0, 0], sizes = [8, 128], strides = [1, 1]} : vector<8x512xf32> to vector<8x128xf32>
    %137 = arith.negf %136 : vector<8x128xf32>
    %138 = math.exp %137 : vector<8x128xf32>
    %cst_51 = arith.constant 1.000000e+00 : f32
    %139 = vector.broadcast %cst_51 : f32 to vector<8x128xf32>
    %140 = arith.addf %139, %138 : vector<8x128xf32>
    %141 = arith.divf %139, %140 : vector<8x128xf32>
    %142 = vector.extract_strided_slice %135 {offsets = [0, 128], sizes = [8, 128], strides = [1, 1]} : vector<8x512xf32> to vector<8x128xf32>
    %143 = arith.negf %142 : vector<8x128xf32>
    %144 = math.exp %143 : vector<8x128xf32>
    %cst_52 = arith.constant 1.000000e+00 : f32
    %145 = vector.broadcast %cst_52 : f32 to vector<8x128xf32>
    %146 = arith.addf %145, %144 : vector<8x128xf32>
    %147 = arith.divf %145, %146 : vector<8x128xf32>
    %148 = vector.extract_strided_slice %135 {offsets = [0, 256], sizes = [8, 128], strides = [1, 1]} : vector<8x512xf32> to vector<8x128xf32>
    %149 = math.tanh %148 : vector<8x128xf32>
    %150 = vector.extract_strided_slice %135 {offsets = [0, 384], sizes = [8, 128], strides = [1, 1]} : vector<8x512xf32> to vector<8x128xf32>
    %151 = arith.negf %150 : vector<8x128xf32>
    %152 = math.exp %151 : vector<8x128xf32>
    %cst_53 = arith.constant 1.000000e+00 : f32
    %153 = vector.broadcast %cst_53 : f32 to vector<8x128xf32>
    %154 = arith.addf %153, %152 : vector<8x128xf32>
    %155 = arith.divf %153, %154 : vector<8x128xf32>
    %156 = arith.mulf %147, %98 : vector<8x128xf32>
    %157 = arith.mulf %141, %149 : vector<8x128xf32>
    %158 = arith.addf %156, %157 : vector<8x128xf32>
    %159 = math.tanh %158 : vector<8x128xf32>
    %160 = arith.mulf %155, %159 : vector<8x128xf32>
    %c0_54 = arith.constant 0 : index
    %c0_55 = arith.constant 0 : index
    %161 = vector.load %arg4[%c0_54, %c0_55] : memref<128x512xf32, #tpu.memory_space<vmem>>, vector<128x512xf32>
    %cst_56 = arith.constant dense<0.000000e+00> : vector<8x512xf32>
    %162 = tpu.matmul %128, %161, %cst_56 {dimension_numbers = #tpu.dot_dimension_numbers<[1], [0], [0], [1], [0, 0, 1, 1], [], []>} : vector<8x128xf32>, vector<128x512xf32>, vector<8x512xf32> -> vector<8x512xf32>
    %163 = arith.addf %132, %162 : vector<8x512xf32>
    %164 = vector.extract_strided_slice %163 {offsets = [0, 0], sizes = [8, 128], strides = [1, 1]} : vector<8x512xf32> to vector<8x128xf32>
    %165 = arith.negf %164 : vector<8x128xf32>
    %166 = math.exp %165 : vector<8x128xf32>
    %cst_57 = arith.constant 1.000000e+00 : f32
    %167 = vector.broadcast %cst_57 : f32 to vector<8x128xf32>
    %168 = arith.addf %167, %166 : vector<8x128xf32>
    %169 = arith.divf %167, %168 : vector<8x128xf32>
    %170 = vector.extract_strided_slice %163 {offsets = [0, 128], sizes = [8, 128], strides = [1, 1]} : vector<8x512xf32> to vector<8x128xf32>
    %171 = arith.negf %170 : vector<8x128xf32>
    %172 = math.exp %171 : vector<8x128xf32>
    %cst_58 = arith.constant 1.000000e+00 : f32
    %173 = vector.broadcast %cst_58 : f32 to vector<8x128xf32>
    %174 = arith.addf %173, %172 : vector<8x128xf32>
    %175 = arith.divf %173, %174 : vector<8x128xf32>
    %176 = vector.extract_strided_slice %163 {offsets = [0, 256], sizes = [8, 128], strides = [1, 1]} : vector<8x512xf32> to vector<8x128xf32>
    %177 = math.tanh %176 : vector<8x128xf32>
    %178 = vector.extract_strided_slice %163 {offsets = [0, 384], sizes = [8, 128], strides = [1, 1]} : vector<8x512xf32> to vector<8x128xf32>
    %179 = arith.negf %178 : vector<8x128xf32>
    %180 = math.exp %179 : vector<8x128xf32>
    %cst_59 = arith.constant 1.000000e+00 : f32
    %181 = vector.broadcast %cst_59 : f32 to vector<8x128xf32>
    %182 = arith.addf %181, %180 : vector<8x128xf32>
    %183 = arith.divf %181, %182 : vector<8x128xf32>
    %184 = arith.mulf %175, %126 : vector<8x128xf32>
    %185 = arith.mulf %169, %177 : vector<8x128xf32>
    %186 = arith.addf %184, %185 : vector<8x128xf32>
    %187 = math.tanh %186 : vector<8x128xf32>
    %188 = arith.mulf %183, %187 : vector<8x128xf32>
    %c16_60 = arith.constant 16 : index
    %c0_61 = arith.constant 0 : index
    %189 = vector.load %arg9[%c16_60, %c0_61] : memref<64x256xf32, #tpu.memory_space<vmem>>, vector<8x128xf32>
    tpu.vector_store %arg9[%c16_60, %c0_61], %160 {strides = array<i32>} : memref<64x256xf32, #tpu.memory_space<vmem>>, vector<8x128xf32>,
    %c40_62 = arith.constant 40 : index
    %c128_63 = arith.constant 128 : index
    %190 = vector.load %arg9[%c40_62, %c128_63] : memref<64x256xf32, #tpu.memory_space<vmem>>, vector<8x128xf32>
    tpu.vector_store %arg9[%c40_62, %c128_63], %188 {strides = array<i32>} : memref<64x256xf32, #tpu.memory_space<vmem>>, vector<8x128xf32>,
    %c24 = arith.constant 24 : index
    %c0_64 = arith.constant 0 : index
    %191 = vector.load %arg8[%c24, %c0_64] : memref<64x1024xf32, #tpu.memory_space<vmem>>, vector<8x512xf32>
    %c32 = arith.constant 32 : index
    %c512_65 = arith.constant 512 : index
    %192 = vector.load %arg8[%c32, %c512_65] : memref<64x1024xf32, #tpu.memory_space<vmem>>, vector<8x512xf32>
    %c0_66 = arith.constant 0 : index
    %c0_67 = arith.constant 0 : index
    %193 = vector.load %arg3[%c0_66, %c0_67] : memref<128x512xf32, #tpu.memory_space<vmem>>, vector<128x512xf32>
    %cst_68 = arith.constant dense<0.000000e+00> : vector<8x512xf32>
    %194 = tpu.matmul %160, %193, %cst_68 {dimension_numbers = #tpu.dot_dimension_numbers<[1], [0], [0], [1], [0, 0, 1, 1], [], []>} : vector<8x128xf32>, vector<128x512xf32>, vector<8x512xf32> -> vector<8x512xf32>
    %195 = arith.addf %191, %194 : vector<8x512xf32>
    %196 = vector.extract_strided_slice %195 {offsets = [0, 0], sizes = [8, 128], strides = [1, 1]} : vector<8x512xf32> to vector<8x128xf32>
    %197 = arith.negf %196 : vector<8x128xf32>
    %198 = math.exp %197 : vector<8x128xf32>
    %cst_69 = arith.constant 1.000000e+00 : f32
    %199 = vector.broadcast %cst_69 : f32 to vector<8x128xf32>
    %200 = arith.addf %199, %198 : vector<8x128xf32>
    %201 = arith.divf %199, %200 : vector<8x128xf32>
    %202 = vector.extract_strided_slice %195 {offsets = [0, 128], sizes = [8, 128], strides = [1, 1]} : vector<8x512xf32> to vector<8x128xf32>
    %203 = arith.negf %202 : vector<8x128xf32>
    %204 = math.exp %203 : vector<8x128xf32>
    %cst_70 = arith.constant 1.000000e+00 : f32
    %205 = vector.broadcast %cst_70 : f32 to vector<8x128xf32>
    %206 = arith.addf %205, %204 : vector<8x128xf32>
    %207 = arith.divf %205, %206 : vector<8x128xf32>
    %208 = vector.extract_strided_slice %195 {offsets = [0, 256], sizes = [8, 128], strides = [1, 1]} : vector<8x512xf32> to vector<8x128xf32>
    %209 = math.tanh %208 : vector<8x128xf32>
    %210 = vector.extract_strided_slice %195 {offsets = [0, 384], sizes = [8, 128], strides = [1, 1]} : vector<8x512xf32> to vector<8x128xf32>
    %211 = arith.negf %210 : vector<8x128xf32>
    %212 = math.exp %211 : vector<8x128xf32>
    %cst_71 = arith.constant 1.000000e+00 : f32
    %213 = vector.broadcast %cst_71 : f32 to vector<8x128xf32>
    %214 = arith.addf %213, %212 : vector<8x128xf32>
    %215 = arith.divf %213, %214 : vector<8x128xf32>
    %216 = arith.mulf %207, %158 : vector<8x128xf32>
    %217 = arith.mulf %201, %209 : vector<8x128xf32>
    %218 = arith.addf %216, %217 : vector<8x128xf32>
    %219 = math.tanh %218 : vector<8x128xf32>
    %220 = arith.mulf %215, %219 : vector<8x128xf32>
    %c0_72 = arith.constant 0 : index
    %c0_73 = arith.constant 0 : index
    %221 = vector.load %arg4[%c0_72, %c0_73] : memref<128x512xf32, #tpu.memory_space<vmem>>, vector<128x512xf32>
    %cst_74 = arith.constant dense<0.000000e+00> : vector<8x512xf32>
    %222 = tpu.matmul %188, %221, %cst_74 {dimension_numbers = #tpu.dot_dimension_numbers<[1], [0], [0], [1], [0, 0, 1, 1], [], []>} : vector<8x128xf32>, vector<128x512xf32>, vector<8x512xf32> -> vector<8x512xf32>
    %223 = arith.addf %192, %222 : vector<8x512xf32>
    %224 = vector.extract_strided_slice %223 {offsets = [0, 0], sizes = [8, 128], strides = [1, 1]} : vector<8x512xf32> to vector<8x128xf32>
    %225 = arith.negf %224 : vector<8x128xf32>
    %226 = math.exp %225 : vector<8x128xf32>
    %cst_75 = arith.constant 1.000000e+00 : f32
    %227 = vector.broadcast %cst_75 : f32 to vector<8x128xf32>
    %228 = arith.addf %227, %226 : vector<8x128xf32>
    %229 = arith.divf %227, %228 : vector<8x128xf32>
    %230 = vector.extract_strided_slice %223 {offsets = [0, 128], sizes = [8, 128], strides = [1, 1]} : vector<8x512xf32> to vector<8x128xf32>
    %231 = arith.negf %230 : vector<8x128xf32>
    %232 = math.exp %231 : vector<8x128xf32>
    %cst_76 = arith.constant 1.000000e+00 : f32
    %233 = vector.broadcast %cst_76 : f32 to vector<8x128xf32>
    %234 = arith.addf %233, %232 : vector<8x128xf32>
    %235 = arith.divf %233, %234 : vector<8x128xf32>
    %236 = vector.extract_strided_slice %223 {offsets = [0, 256], sizes = [8, 128], strides = [1, 1]} : vector<8x512xf32> to vector<8x128xf32>
    %237 = math.tanh %236 : vector<8x128xf32>
    %238 = vector.extract_strided_slice %223 {offsets = [0, 384], sizes = [8, 128], strides = [1, 1]} : vector<8x512xf32> to vector<8x128xf32>
    %239 = arith.negf %238 : vector<8x128xf32>
    %240 = math.exp %239 : vector<8x128xf32>
    %cst_77 = arith.constant 1.000000e+00 : f32
    %241 = vector.broadcast %cst_77 : f32 to vector<8x128xf32>
    %242 = arith.addf %241, %240 : vector<8x128xf32>
    %243 = arith.divf %241, %242 : vector<8x128xf32>
    %244 = arith.mulf %235, %186 : vector<8x128xf32>
    %245 = arith.mulf %229, %237 : vector<8x128xf32>
    %246 = arith.addf %244, %245 : vector<8x128xf32>
    %247 = math.tanh %246 : vector<8x128xf32>
    %248 = arith.mulf %243, %247 : vector<8x128xf32>
    %c24_78 = arith.constant 24 : index
    %c0_79 = arith.constant 0 : index
    %249 = vector.load %arg9[%c24_78, %c0_79] : memref<64x256xf32, #tpu.memory_space<vmem>>, vector<8x128xf32>
    tpu.vector_store %arg9[%c24_78, %c0_79], %220 {strides = array<i32>} : memref<64x256xf32, #tpu.memory_space<vmem>>, vector<8x128xf32>,
    %c32_80 = arith.constant 32 : index
    %c128_81 = arith.constant 128 : index
    %250 = vector.load %arg9[%c32_80, %c128_81] : memref<64x256xf32, #tpu.memory_space<vmem>>, vector<8x128xf32>
    tpu.vector_store %arg9[%c32_80, %c128_81], %248 {strides = array<i32>} : memref<64x256xf32, #tpu.memory_space<vmem>>, vector<8x128xf32>,
    %c32_82 = arith.constant 32 : index
    %c0_83 = arith.constant 0 : index
    %251 = vector.load %arg8[%c32_82, %c0_83] : memref<64x1024xf32, #tpu.memory_space<vmem>>, vector<8x512xf32>
    %c24_84 = arith.constant 24 : index
    %c512_85 = arith.constant 512 : index
    %252 = vector.load %arg8[%c24_84, %c512_85] : memref<64x1024xf32, #tpu.memory_space<vmem>>, vector<8x512xf32>
    %c0_86 = arith.constant 0 : index
    %c0_87 = arith.constant 0 : index
    %253 = vector.load %arg3[%c0_86, %c0_87] : memref<128x512xf32, #tpu.memory_space<vmem>>, vector<128x512xf32>
    %cst_88 = arith.constant dense<0.000000e+00> : vector<8x512xf32>
    %254 = tpu.matmul %220, %253, %cst_88 {dimension_numbers = #tpu.dot_dimension_numbers<[1], [0], [0], [1], [0, 0, 1, 1], [], []>} : vector<8x128xf32>, vector<128x512xf32>, vector<8x512xf32> -> vector<8x512xf32>
    %255 = arith.addf %251, %254 : vector<8x512xf32>
    %256 = vector.extract_strided_slice %255 {offsets = [0, 0], sizes = [8, 128], strides = [1, 1]} : vector<8x512xf32> to vector<8x128xf32>
    %257 = arith.negf %256 : vector<8x128xf32>
    %258 = math.exp %257 : vector<8x128xf32>
    %cst_89 = arith.constant 1.000000e+00 : f32
    %259 = vector.broadcast %cst_89 : f32 to vector<8x128xf32>
    %260 = arith.addf %259, %258 : vector<8x128xf32>
    %261 = arith.divf %259, %260 : vector<8x128xf32>
    %262 = vector.extract_strided_slice %255 {offsets = [0, 128], sizes = [8, 128], strides = [1, 1]} : vector<8x512xf32> to vector<8x128xf32>
    %263 = arith.negf %262 : vector<8x128xf32>
    %264 = math.exp %263 : vector<8x128xf32>
    %cst_90 = arith.constant 1.000000e+00 : f32
    %265 = vector.broadcast %cst_90 : f32 to vector<8x128xf32>
    %266 = arith.addf %265, %264 : vector<8x128xf32>
    %267 = arith.divf %265, %266 : vector<8x128xf32>
    %268 = vector.extract_strided_slice %255 {offsets = [0, 256], sizes = [8, 128], strides = [1, 1]} : vector<8x512xf32> to vector<8x128xf32>
    %269 = math.tanh %268 : vector<8x128xf32>
    %270 = vector.extract_strided_slice %255 {offsets = [0, 384], sizes = [8, 128], strides = [1, 1]} : vector<8x512xf32> to vector<8x128xf32>
    %271 = arith.negf %270 : vector<8x128xf32>
    %272 = math.exp %271 : vector<8x128xf32>
    %cst_91 = arith.constant 1.000000e+00 : f32
    %273 = vector.broadcast %cst_91 : f32 to vector<8x128xf32>
    %274 = arith.addf %273, %272 : vector<8x128xf32>
    %275 = arith.divf %273, %274 : vector<8x128xf32>
    %276 = arith.mulf %267, %218 : vector<8x128xf32>
    %277 = arith.mulf %261, %269 : vector<8x128xf32>
    %278 = arith.addf %276, %277 : vector<8x128xf32>
    %279 = math.tanh %278 : vector<8x128xf32>
    %280 = arith.mulf %275, %279 : vector<8x128xf32>
    %c0_92 = arith.constant 0 : index
    %c0_93 = arith.constant 0 : index
    %281 = vector.load %arg4[%c0_92, %c0_93] : memref<128x512xf32, #tpu.memory_space<vmem>>, vector<128x512xf32>
    %cst_94 = arith.constant dense<0.000000e+00> : vector<8x512xf32>
    %282 = tpu.matmul %248, %281, %cst_94 {dimension_numbers = #tpu.dot_dimension_numbers<[1], [0], [0], [1], [0, 0, 1, 1], [], []>} : vector<8x128xf32>, vector<128x512xf32>, vector<8x512xf32> -> vector<8x512xf32>
    %283 = arith.addf %252, %282 : vector<8x512xf32>
    %284 = vector.extract_strided_slice %283 {offsets = [0, 0], sizes = [8, 128], strides = [1, 1]} : vector<8x512xf32> to vector<8x128xf32>
    %285 = arith.negf %284 : vector<8x128xf32>
    %286 = math.exp %285 : vector<8x128xf32>
    %cst_95 = arith.constant 1.000000e+00 : f32
    %287 = vector.broadcast %cst_95 : f32 to vector<8x128xf32>
    %288 = arith.addf %287, %286 : vector<8x128xf32>
    %289 = arith.divf %287, %288 : vector<8x128xf32>
    %290 = vector.extract_strided_slice %283 {offsets = [0, 128], sizes = [8, 128], strides = [1, 1]} : vector<8x512xf32> to vector<8x128xf32>
    %291 = arith.negf %290 : vector<8x128xf32>
    %292 = math.exp %291 : vector<8x128xf32>
    %cst_96 = arith.constant 1.000000e+00 : f32
    %293 = vector.broadcast %cst_96 : f32 to vector<8x128xf32>
    %294 = arith.addf %293, %292 : vector<8x128xf32>
    %295 = arith.divf %293, %294 : vector<8x128xf32>
    %296 = vector.extract_strided_slice %283 {offsets = [0, 256], sizes = [8, 128], strides = [1, 1]} : vector<8x512xf32> to vector<8x128xf32>
    %297 = math.tanh %296 : vector<8x128xf32>
    %298 = vector.extract_strided_slice %283 {offsets = [0, 384], sizes = [8, 128], strides = [1, 1]} : vector<8x512xf32> to vector<8x128xf32>
    %299 = arith.negf %298 : vector<8x128xf32>
    %300 = math.exp %299 : vector<8x128xf32>
    %cst_97 = arith.constant 1.000000e+00 : f32
    %301 = vector.broadcast %cst_97 : f32 to vector<8x128xf32>
    %302 = arith.addf %301, %300 : vector<8x128xf32>
    %303 = arith.divf %301, %302 : vector<8x128xf32>
    %304 = arith.mulf %295, %246 : vector<8x128xf32>
    %305 = arith.mulf %289, %297 : vector<8x128xf32>
    %306 = arith.addf %304, %305 : vector<8x128xf32>
    %307 = math.tanh %306 : vector<8x128xf32>
    %308 = arith.mulf %303, %307 : vector<8x128xf32>
    %c32_98 = arith.constant 32 : index
    %c0_99 = arith.constant 0 : index
    %309 = vector.load %arg9[%c32_98, %c0_99] : memref<64x256xf32, #tpu.memory_space<vmem>>, vector<8x128xf32>
    tpu.vector_store %arg9[%c32_98, %c0_99], %280 {strides = array<i32>} : memref<64x256xf32, #tpu.memory_space<vmem>>, vector<8x128xf32>,
    %c24_100 = arith.constant 24 : index
    %c128_101 = arith.constant 128 : index
    %310 = vector.load %arg9[%c24_100, %c128_101] : memref<64x256xf32, #tpu.memory_space<vmem>>, vector<8x128xf32>
    tpu.vector_store %arg9[%c24_100, %c128_101], %308 {strides = array<i32>} : memref<64x256xf32, #tpu.memory_space<vmem>>, vector<8x128xf32>,
    %c40_102 = arith.constant 40 : index
    %c0_103 = arith.constant 0 : index
    %311 = vector.load %arg8[%c40_102, %c0_103] : memref<64x1024xf32, #tpu.memory_space<vmem>>, vector<8x512xf32>
    %c16_104 = arith.constant 16 : index
    %c512_105 = arith.constant 512 : index
    %312 = vector.load %arg8[%c16_104, %c512_105] : memref<64x1024xf32, #tpu.memory_space<vmem>>, vector<8x512xf32>
    %c0_106 = arith.constant 0 : index
    %c0_107 = arith.constant 0 : index
    %313 = vector.load %arg3[%c0_106, %c0_107] : memref<128x512xf32, #tpu.memory_space<vmem>>, vector<128x512xf32>
    %cst_108 = arith.constant dense<0.000000e+00> : vector<8x512xf32>
    %314 = tpu.matmul %280, %313, %cst_108 {dimension_numbers = #tpu.dot_dimension_numbers<[1], [0], [0], [1], [0, 0, 1, 1], [], []>} : vector<8x128xf32>, vector<128x512xf32>, vector<8x512xf32> -> vector<8x512xf32>
    %315 = arith.addf %311, %314 : vector<8x512xf32>
    %316 = vector.extract_strided_slice %315 {offsets = [0, 0], sizes = [8, 128], strides = [1, 1]} : vector<8x512xf32> to vector<8x128xf32>
    %317 = arith.negf %316 : vector<8x128xf32>
    %318 = math.exp %317 : vector<8x128xf32>
    %cst_109 = arith.constant 1.000000e+00 : f32
    %319 = vector.broadcast %cst_109 : f32 to vector<8x128xf32>
    %320 = arith.addf %319, %318 : vector<8x128xf32>
    %321 = arith.divf %319, %320 : vector<8x128xf32>
    %322 = vector.extract_strided_slice %315 {offsets = [0, 128], sizes = [8, 128], strides = [1, 1]} : vector<8x512xf32> to vector<8x128xf32>
    %323 = arith.negf %322 : vector<8x128xf32>
    %324 = math.exp %323 : vector<8x128xf32>
    %cst_110 = arith.constant 1.000000e+00 : f32
    %325 = vector.broadcast %cst_110 : f32 to vector<8x128xf32>
    %326 = arith.addf %325, %324 : vector<8x128xf32>
    %327 = arith.divf %325, %326 : vector<8x128xf32>
    %328 = vector.extract_strided_slice %315 {offsets = [0, 256], sizes = [8, 128], strides = [1, 1]} : vector<8x512xf32> to vector<8x128xf32>
    %329 = math.tanh %328 : vector<8x128xf32>
    %330 = vector.extract_strided_slice %315 {offsets = [0, 384], sizes = [8, 128], strides = [1, 1]} : vector<8x512xf32> to vector<8x128xf32>
    %331 = arith.negf %330 : vector<8x128xf32>
    %332 = math.exp %331 : vector<8x128xf32>
    %cst_111 = arith.constant 1.000000e+00 : f32
    %333 = vector.broadcast %cst_111 : f32 to vector<8x128xf32>
    %334 = arith.addf %333, %332 : vector<8x128xf32>
    %335 = arith.divf %333, %334 : vector<8x128xf32>
    %336 = arith.mulf %327, %278 : vector<8x128xf32>
    %337 = arith.mulf %321, %329 : vector<8x128xf32>
    %338 = arith.addf %336, %337 : vector<8x128xf32>
    %339 = math.tanh %338 : vector<8x128xf32>
    %340 = arith.mulf %335, %339 : vector<8x128xf32>
    %c0_112 = arith.constant 0 : index
    %c0_113 = arith.constant 0 : index
    %341 = vector.load %arg4[%c0_112, %c0_113] : memref<128x512xf32, #tpu.memory_space<vmem>>, vector<128x512xf32>
    %cst_114 = arith.constant dense<0.000000e+00> : vector<8x512xf32>
    %342 = tpu.matmul %308, %341, %cst_114 {dimension_numbers = #tpu.dot_dimension_numbers<[1], [0], [0], [1], [0, 0, 1, 1], [], []>} : vector<8x128xf32>, vector<128x512xf32>, vector<8x512xf32> -> vector<8x512xf32>
    %343 = arith.addf %312, %342 : vector<8x512xf32>
    %344 = vector.extract_strided_slice %343 {offsets = [0, 0], sizes = [8, 128], strides = [1, 1]} : vector<8x512xf32> to vector<8x128xf32>
    %345 = arith.negf %344 : vector<8x128xf32>
    %346 = math.exp %345 : vector<8x128xf32>
    %cst_115 = arith.constant 1.000000e+00 : f32
    %347 = vector.broadcast %cst_115 : f32 to vector<8x128xf32>
    %348 = arith.addf %347, %346 : vector<8x128xf32>
    %349 = arith.divf %347, %348 : vector<8x128xf32>
    %350 = vector.extract_strided_slice %343 {offsets = [0, 128], sizes = [8, 128], strides = [1, 1]} : vector<8x512xf32> to vector<8x128xf32>
    %351 = arith.negf %350 : vector<8x128xf32>
    %352 = math.exp %351 : vector<8x128xf32>
    %cst_116 = arith.constant 1.000000e+00 : f32
    %353 = vector.broadcast %cst_116 : f32 to vector<8x128xf32>
    %354 = arith.addf %353, %352 : vector<8x128xf32>
    %355 = arith.divf %353, %354 : vector<8x128xf32>
    %356 = vector.extract_strided_slice %343 {offsets = [0, 256], sizes = [8, 128], strides = [1, 1]} : vector<8x512xf32> to vector<8x128xf32>
    %357 = math.tanh %356 : vector<8x128xf32>
    %358 = vector.extract_strided_slice %343 {offsets = [0, 384], sizes = [8, 128], strides = [1, 1]} : vector<8x512xf32> to vector<8x128xf32>
    %359 = arith.negf %358 : vector<8x128xf32>
    %360 = math.exp %359 : vector<8x128xf32>
    %cst_117 = arith.constant 1.000000e+00 : f32
    %361 = vector.broadcast %cst_117 : f32 to vector<8x128xf32>
    %362 = arith.addf %361, %360 : vector<8x128xf32>
    %363 = arith.divf %361, %362 : vector<8x128xf32>
    %364 = arith.mulf %355, %306 : vector<8x128xf32>
    %365 = arith.mulf %349, %357 : vector<8x128xf32>
    %366 = arith.addf %364, %365 : vector<8x128xf32>
    %367 = math.tanh %366 : vector<8x128xf32>
    %368 = arith.mulf %363, %367 : vector<8x128xf32>
    %c40_118 = arith.constant 40 : index
    %c0_119 = arith.constant 0 : index
    %369 = vector.load %arg9[%c40_118, %c0_119] : memref<64x256xf32, #tpu.memory_space<vmem>>, vector<8x128xf32>
    tpu.vector_store %arg9[%c40_118, %c0_119], %340 {strides = array<i32>} : memref<64x256xf32, #tpu.memory_space<vmem>>, vector<8x128xf32>,
    %c16_120 = arith.constant 16 : index
    %c128_121 = arith.constant 128 : index
    %370 = vector.load %arg9[%c16_120, %c128_121] : memref<64x256xf32, #tpu.memory_space<vmem>>, vector<8x128xf32>
    tpu.vector_store %arg9[%c16_120, %c128_121], %368 {strides = array<i32>} : memref<64x256xf32, #tpu.memory_space<vmem>>, vector<8x128xf32>,
    %c48_122 = arith.constant 48 : index
    %c0_123 = arith.constant 0 : index
    %371 = vector.load %arg8[%c48_122, %c0_123] : memref<64x1024xf32, #tpu.memory_space<vmem>>, vector<8x512xf32>
    %c8_124 = arith.constant 8 : index
    %c512_125 = arith.constant 512 : index
    %372 = vector.load %arg8[%c8_124, %c512_125] : memref<64x1024xf32, #tpu.memory_space<vmem>>, vector<8x512xf32>
    %c0_126 = arith.constant 0 : index
    %c0_127 = arith.constant 0 : index
    %373 = vector.load %arg3[%c0_126, %c0_127] : memref<128x512xf32, #tpu.memory_space<vmem>>, vector<128x512xf32>
    %cst_128 = arith.constant dense<0.000000e+00> : vector<8x512xf32>
    %374 = tpu.matmul %340, %373, %cst_128 {dimension_numbers = #tpu.dot_dimension_numbers<[1], [0], [0], [1], [0, 0, 1, 1], [], []>} : vector<8x128xf32>, vector<128x512xf32>, vector<8x512xf32> -> vector<8x512xf32>
    %375 = arith.addf %371, %374 : vector<8x512xf32>
    %376 = vector.extract_strided_slice %375 {offsets = [0, 0], sizes = [8, 128], strides = [1, 1]} : vector<8x512xf32> to vector<8x128xf32>
    %377 = arith.negf %376 : vector<8x128xf32>
    %378 = math.exp %377 : vector<8x128xf32>
    %cst_129 = arith.constant 1.000000e+00 : f32
    %379 = vector.broadcast %cst_129 : f32 to vector<8x128xf32>
    %380 = arith.addf %379, %378 : vector<8x128xf32>
    %381 = arith.divf %379, %380 : vector<8x128xf32>
    %382 = vector.extract_strided_slice %375 {offsets = [0, 128], sizes = [8, 128], strides = [1, 1]} : vector<8x512xf32> to vector<8x128xf32>
    %383 = arith.negf %382 : vector<8x128xf32>
    %384 = math.exp %383 : vector<8x128xf32>
    %cst_130 = arith.constant 1.000000e+00 : f32
    %385 = vector.broadcast %cst_130 : f32 to vector<8x128xf32>
    %386 = arith.addf %385, %384 : vector<8x128xf32>
    %387 = arith.divf %385, %386 : vector<8x128xf32>
    %388 = vector.extract_strided_slice %375 {offsets = [0, 256], sizes = [8, 128], strides = [1, 1]} : vector<8x512xf32> to vector<8x128xf32>
    %389 = math.tanh %388 : vector<8x128xf32>
    %390 = vector.extract_strided_slice %375 {offsets = [0, 384], sizes = [8, 128], strides = [1, 1]} : vector<8x512xf32> to vector<8x128xf32>
    %391 = arith.negf %390 : vector<8x128xf32>
    %392 = math.exp %391 : vector<8x128xf32>
    %cst_131 = arith.constant 1.000000e+00 : f32
    %393 = vector.broadcast %cst_131 : f32 to vector<8x128xf32>
    %394 = arith.addf %393, %392 : vector<8x128xf32>
    %395 = arith.divf %393, %394 : vector<8x128xf32>
    %396 = arith.mulf %387, %338 : vector<8x128xf32>
    %397 = arith.mulf %381, %389 : vector<8x128xf32>
    %398 = arith.addf %396, %397 : vector<8x128xf32>
    %399 = math.tanh %398 : vector<8x128xf32>
    %400 = arith.mulf %395, %399 : vector<8x128xf32>
    %c0_132 = arith.constant 0 : index
    %c0_133 = arith.constant 0 : index
    %401 = vector.load %arg4[%c0_132, %c0_133] : memref<128x512xf32, #tpu.memory_space<vmem>>, vector<128x512xf32>
    %cst_134 = arith.constant dense<0.000000e+00> : vector<8x512xf32>
    %402 = tpu.matmul %368, %401, %cst_134 {dimension_numbers = #tpu.dot_dimension_numbers<[1], [0], [0], [1], [0, 0, 1, 1], [], []>} : vector<8x128xf32>, vector<128x512xf32>, vector<8x512xf32> -> vector<8x512xf32>
    %403 = arith.addf %372, %402 : vector<8x512xf32>
    %404 = vector.extract_strided_slice %403 {offsets = [0, 0], sizes = [8, 128], strides = [1, 1]} : vector<8x512xf32> to vector<8x128xf32>
    %405 = arith.negf %404 : vector<8x128xf32>
    %406 = math.exp %405 : vector<8x128xf32>
    %cst_135 = arith.constant 1.000000e+00 : f32
    %407 = vector.broadcast %cst_135 : f32 to vector<8x128xf32>
    %408 = arith.addf %407, %406 : vector<8x128xf32>
    %409 = arith.divf %407, %408 : vector<8x128xf32>
    %410 = vector.extract_strided_slice %403 {offsets = [0, 128], sizes = [8, 128], strides = [1, 1]} : vector<8x512xf32> to vector<8x128xf32>
    %411 = arith.negf %410 : vector<8x128xf32>
    %412 = math.exp %411 : vector<8x128xf32>
    %cst_136 = arith.constant 1.000000e+00 : f32
    %413 = vector.broadcast %cst_136 : f32 to vector<8x128xf32>
    %414 = arith.addf %413, %412 : vector<8x128xf32>
    %415 = arith.divf %413, %414 : vector<8x128xf32>
    %416 = vector.extract_strided_slice %403 {offsets = [0, 256], sizes = [8, 128], strides = [1, 1]} : vector<8x512xf32> to vector<8x128xf32>
    %417 = math.tanh %416 : vector<8x128xf32>
    %418 = vector.extract_strided_slice %403 {offsets = [0, 384], sizes = [8, 128], strides = [1, 1]} : vector<8x512xf32> to vector<8x128xf32>
    %419 = arith.negf %418 : vector<8x128xf32>
    %420 = math.exp %419 : vector<8x128xf32>
    %cst_137 = arith.constant 1.000000e+00 : f32
    %421 = vector.broadcast %cst_137 : f32 to vector<8x128xf32>
    %422 = arith.addf %421, %420 : vector<8x128xf32>
    %423 = arith.divf %421, %422 : vector<8x128xf32>
    %424 = arith.mulf %415, %366 : vector<8x128xf32>
    %425 = arith.mulf %409, %417 : vector<8x128xf32>
    %426 = arith.addf %424, %425 : vector<8x128xf32>
    %427 = math.tanh %426 : vector<8x128xf32>
    %428 = arith.mulf %423, %427 : vector<8x128xf32>
    %c48_138 = arith.constant 48 : index
    %c0_139 = arith.constant 0 : index
    %429 = vector.load %arg9[%c48_138, %c0_139] : memref<64x256xf32, #tpu.memory_space<vmem>>, vector<8x128xf32>
    tpu.vector_store %arg9[%c48_138, %c0_139], %400 {strides = array<i32>} : memref<64x256xf32, #tpu.memory_space<vmem>>, vector<8x128xf32>,
    %c8_140 = arith.constant 8 : index
    %c128_141 = arith.constant 128 : index
    %430 = vector.load %arg9[%c8_140, %c128_141] : memref<64x256xf32, #tpu.memory_space<vmem>>, vector<8x128xf32>
    tpu.vector_store %arg9[%c8_140, %c128_141], %428 {strides = array<i32>} : memref<64x256xf32, #tpu.memory_space<vmem>>, vector<8x128xf32>,
    %c56_142 = arith.constant 56 : index
    %c0_143 = arith.constant 0 : index
    %431 = vector.load %arg8[%c56_142, %c0_143] : memref<64x1024xf32, #tpu.memory_space<vmem>>, vector<8x512xf32>
    %c0_144 = arith.constant 0 : index
    %c512_145 = arith.constant 512 : index
    %432 = vector.load %arg8[%c0_144, %c512_145] : memref<64x1024xf32, #tpu.memory_space<vmem>>, vector<8x512xf32>
    %c0_146 = arith.constant 0 : index
    %c0_147 = arith.constant 0 : index
    %433 = vector.load %arg3[%c0_146, %c0_147] : memref<128x512xf32, #tpu.memory_space<vmem>>, vector<128x512xf32>
    %cst_148 = arith.constant dense<0.000000e+00> : vector<8x512xf32>
    %434 = tpu.matmul %400, %433, %cst_148 {dimension_numbers = #tpu.dot_dimension_numbers<[1], [0], [0], [1], [0, 0, 1, 1], [], []>} : vector<8x128xf32>, vector<128x512xf32>, vector<8x512xf32> -> vector<8x512xf32>
    %435 = arith.addf %431, %434 : vector<8x512xf32>
    %436 = vector.extract_strided_slice %435 {offsets = [0, 0], sizes = [8, 128], strides = [1, 1]} : vector<8x512xf32> to vector<8x128xf32>
    %437 = arith.negf %436 : vector<8x128xf32>
    %438 = math.exp %437 : vector<8x128xf32>
    %cst_149 = arith.constant 1.000000e+00 : f32
    %439 = vector.broadcast %cst_149 : f32 to vector<8x128xf32>
    %440 = arith.addf %439, %438 : vector<8x128xf32>
    %441 = arith.divf %439, %440 : vector<8x128xf32>
    %442 = vector.extract_strided_slice %435 {offsets = [0, 128], sizes = [8, 128], strides = [1, 1]} : vector<8x512xf32> to vector<8x128xf32>
    %443 = arith.negf %442 : vector<8x128xf32>
    %444 = math.exp %443 : vector<8x128xf32>
    %cst_150 = arith.constant 1.000000e+00 : f32
    %445 = vector.broadcast %cst_150 : f32 to vector<8x128xf32>
    %446 = arith.addf %445, %444 : vector<8x128xf32>
    %447 = arith.divf %445, %446 : vector<8x128xf32>
    %448 = vector.extract_strided_slice %435 {offsets = [0, 256], sizes = [8, 128], strides = [1, 1]} : vector<8x512xf32> to vector<8x128xf32>
    %449 = math.tanh %448 : vector<8x128xf32>
    %450 = vector.extract_strided_slice %435 {offsets = [0, 384], sizes = [8, 128], strides = [1, 1]} : vector<8x512xf32> to vector<8x128xf32>
    %451 = arith.negf %450 : vector<8x128xf32>
    %452 = math.exp %451 : vector<8x128xf32>
    %cst_151 = arith.constant 1.000000e+00 : f32
    %453 = vector.broadcast %cst_151 : f32 to vector<8x128xf32>
    %454 = arith.addf %453, %452 : vector<8x128xf32>
    %455 = arith.divf %453, %454 : vector<8x128xf32>
    %456 = arith.mulf %447, %398 : vector<8x128xf32>
    %457 = arith.mulf %441, %449 : vector<8x128xf32>
    %458 = arith.addf %456, %457 : vector<8x128xf32>
    %459 = math.tanh %458 : vector<8x128xf32>
    %460 = arith.mulf %455, %459 : vector<8x128xf32>
    %c0_152 = arith.constant 0 : index
    %c0_153 = arith.constant 0 : index
    %461 = vector.load %arg4[%c0_152, %c0_153] : memref<128x512xf32, #tpu.memory_space<vmem>>, vector<128x512xf32>
    %cst_154 = arith.constant dense<0.000000e+00> : vector<8x512xf32>
    %462 = tpu.matmul %428, %461, %cst_154 {dimension_numbers = #tpu.dot_dimension_numbers<[1], [0], [0], [1], [0, 0, 1, 1], [], []>} : vector<8x128xf32>, vector<128x512xf32>, vector<8x512xf32> -> vector<8x512xf32>
    %463 = arith.addf %432, %462 : vector<8x512xf32>
    %464 = vector.extract_strided_slice %463 {offsets = [0, 0], sizes = [8, 128], strides = [1, 1]} : vector<8x512xf32> to vector<8x128xf32>
    %465 = arith.negf %464 : vector<8x128xf32>
    %466 = math.exp %465 : vector<8x128xf32>
    %cst_155 = arith.constant 1.000000e+00 : f32
    %467 = vector.broadcast %cst_155 : f32 to vector<8x128xf32>
    %468 = arith.addf %467, %466 : vector<8x128xf32>
    %469 = arith.divf %467, %468 : vector<8x128xf32>
    %470 = vector.extract_strided_slice %463 {offsets = [0, 128], sizes = [8, 128], strides = [1, 1]} : vector<8x512xf32> to vector<8x128xf32>
    %471 = arith.negf %470 : vector<8x128xf32>
    %472 = math.exp %471 : vector<8x128xf32>
    %cst_156 = arith.constant 1.000000e+00 : f32
    %473 = vector.broadcast %cst_156 : f32 to vector<8x128xf32>
    %474 = arith.addf %473, %472 : vector<8x128xf32>
    %475 = arith.divf %473, %474 : vector<8x128xf32>
    %476 = vector.extract_strided_slice %463 {offsets = [0, 256], sizes = [8, 128], strides = [1, 1]} : vector<8x512xf32> to vector<8x128xf32>
    %477 = math.tanh %476 : vector<8x128xf32>
    %478 = vector.extract_strided_slice %463 {offsets = [0, 384], sizes = [8, 128], strides = [1, 1]} : vector<8x512xf32> to vector<8x128xf32>
    %479 = arith.negf %478 : vector<8x128xf32>
    %480 = math.exp %479 : vector<8x128xf32>
    %cst_157 = arith.constant 1.000000e+00 : f32
    %481 = vector.broadcast %cst_157 : f32 to vector<8x128xf32>
    %482 = arith.addf %481, %480 : vector<8x128xf32>
    %483 = arith.divf %481, %482 : vector<8x128xf32>
    %484 = arith.mulf %475, %426 : vector<8x128xf32>
    %485 = arith.mulf %469, %477 : vector<8x128xf32>
    %486 = arith.addf %484, %485 : vector<8x128xf32>
    %487 = math.tanh %486 : vector<8x128xf32>
    %488 = arith.mulf %483, %487 : vector<8x128xf32>
    %c56_158 = arith.constant 56 : index
    %c0_159 = arith.constant 0 : index
    %489 = vector.load %arg9[%c56_158, %c0_159] : memref<64x256xf32, #tpu.memory_space<vmem>>, vector<8x128xf32>
    tpu.vector_store %arg9[%c56_158, %c0_159], %460 {strides = array<i32>} : memref<64x256xf32, #tpu.memory_space<vmem>>, vector<8x128xf32>,
    %c0_160 = arith.constant 0 : index
    %c128_161 = arith.constant 128 : index
    %490 = vector.load %arg9[%c0_160, %c128_161] : memref<64x256xf32, #tpu.memory_space<vmem>>, vector<8x128xf32>
    tpu.vector_store %arg9[%c0_160, %c128_161], %488 {strides = array<i32>} : memref<64x256xf32, #tpu.memory_space<vmem>>, vector<8x128xf32>,
    %c0_162 = arith.constant 0 : index
    %c0_163 = arith.constant 0 : index
    %491 = vector.load %arg9[%c0_162, %c0_163] : memref<64x256xf32, #tpu.memory_space<vmem>>, vector<64x256xf32>
    %c0_164 = arith.constant 0 : index
    %c0_165 = arith.constant 0 : index
    %492 = vector.load %arg5[%c0_164, %c0_165] : memref<256x256xf32, #tpu.memory_space<vmem>>, vector<256x256xf32>
    %cst_166 = arith.constant dense<0.000000e+00> : vector<64x256xf32>
    %493 = tpu.matmul %491, %492, %cst_166 {dimension_numbers = #tpu.dot_dimension_numbers<[1], [0], [0], [1], [0, 0, 1, 1], [], []>} : vector<64x256xf32>, vector<256x256xf32>, vector<64x256xf32> -> vector<64x256xf32>
    %c0_167 = arith.constant 0 : index
    %c0_168 = arith.constant 0 : index
    %494 = vector.load %arg6[%c0_167, %c0_168] : memref<1x256xf32, #tpu.memory_space<vmem>>, vector<1x256xf32>
    %495 = vector.broadcast %494 : vector<1x256xf32> to vector<64x256xf32>
    %496 = arith.addf %493, %495 : vector<64x256xf32>
    %c0_169 = arith.constant 0 : index
    %c0_170 = arith.constant 0 : index
    %497 = vector.load %arg7[%c0_169, %c0_170] : memref<64x256xf32, #tpu.memory_space<vmem>>, vector<64x256xf32>
    tpu.vector_store %arg7[%c0_169, %c0_170], %496 {strides = array<i32>} : memref<64x256xf32, #tpu.memory_space<vmem>>, vector<64x256xf32>,
    return
  }
}

</mosaic_0001>

<llo_original>
// kernel: decoder_rnn_forward.1
$region0: #{decoder_rnn_forward.1}
  #allocation0 [shape = 'u32[]', space=smem, size = 0x4, offset = 0x4, fixed_abs, tag = 'smem constant byte address 0x4 - core index']
  #allocation1 [shape = 'u32[144,128]{1,0:T(1,128)}', space=vmem, size = 0x12000, scoped, tag = 'internal scratch']
  #allocation2 [shape = 'f32[64,1024]{1,0:T(8,128)}', space=vmem, size = 0x40000, scoped, tag = 'scratch operand']
  #allocation3 [shape = 'f32[64,256]{1,0:T(8,128)}', space=vmem, size = 0x10000, scoped, tag = 'scratch operand']
  %s0 = inlined_call_operand.vmem [shape: f32[64,128], index: 0, kind: input, shape index: {}]
  %s1 = inlined_call_operand.hbm [shape: f32[128,1024], index: 1, kind: input, shape index: {}]
  %s2 = inlined_call_operand.vmem [shape: f32[1,1024], index: 2, kind: input, shape index: {}]
  %s3 = inlined_call_operand.hbm [shape: f32[128,512], index: 3, kind: input, shape index: {}]
  %s4 = inlined_call_operand.hbm [shape: f32[128,512], index: 4, kind: input, shape index: {}]
  %s5 = inlined_call_operand.hbm [shape: f32[256,256], index: 5, kind: input, shape index: {}]
  %s6 = inlined_call_operand.vmem [shape: f32[1,256], index: 6, kind: input, shape index: {}]
  %s7 = inlined_call_operand.vmem [shape: f32[64,256], index: 7, kind: output, shape index: {}]
  %s8 = sld [smem:[#allocation0]]
  $region54: #{decoder_rnn_forward.1} parent=0
    _
  %s10 = ssub.s32 1, %s8
  %s11 = scalar_select 0, %s10, %s8
  $region1: #{decoder_rnn_forward.1} parent=0
    #allocation4 [shape = 'u8[524288]{0}', space=vmem, size = 0x80000, scoped, tag = 'input window, operand 1, single buffered']
    #allocation5 [shape = 's32[1]{0}', space=sflag, size = 0x4, scoped, tag = 'scoped memory for decoder_rnn_forward.1']
    #allocation6 [shape = 'u8[262144]{0}', space=vmem, size = 0x40000, scoped, tag = 'input window, operand 3, single buffered']
    #allocation7 [shape = 's32[1]{0}', space=sflag, size = 0x4, scoped, tag = 'scoped memory for decoder_rnn_forward.1']
    #allocation8 [shape = 'u8[262144]{0}', space=vmem, size = 0x40000, scoped, tag = 'input window, operand 4, single buffered']
    #allocation9 [shape = 'u8[262144]{0}', space=vmem, size = 0x40000, scoped, tag = 'input window, operand 5, single buffered']
    #allocation10 [shape = 's32[1]{0}', space=sflag, size = 0x4, scoped, tag = 'scoped memory for decoder_rnn_forward.1']
    %12 = vsyncpa [#allocation5], 0
    %13 = vsyncpa [#allocation7], 0
    %14 = vsyncpa [#allocation10], 0
    // Predicated region
    $region2: #{decoder_rnn_forward.1} parent=1 // pred_check
      _
    $region3: #{decoder_rnn_forward.1} parent=1 // pred_check_branch
      %16 = sbr.rel (0) target = $region5
    $region4: #{decoder_rnn_forward.1} parent=1 // pred_region
      _
    $region5: #{decoder_rnn_forward.1} parent=1 // pred_fallthru
      _
    // Predicated region
    $region6: #{decoder_rnn_forward.1} parent=1 // pred_check
      _
    $region7: #{decoder_rnn_forward.1} parent=1 // pred_check_branch
      %18 = sbr.rel (0) target = $region9
    $region8: #{decoder_rnn_forward.1} parent=1 // pred_region
      %s20 = ssub.s32 16384, 16384
      %21 = vsyncadd [#allocation5], %s20
      %s22 = sshll.u32 [#allocation4], 4
      %s23 = int_to_ptr.vmem [resolvable:$true] %s22
      %28 = dma.hbm_to_vmem [thread:$0]  %s1, 16384, %s23, [#allocation5], 1024, 1024, 64
    $region9: #{decoder_rnn_forward.1} parent=1 // pred_fallthru
      _
    // Predicated region
    $region10: #{decoder_rnn_forward.1} parent=1 // pred_check
      _
    $region11: #{decoder_rnn_forward.1} parent=1 // pred_check_branch
      %30 = sbr.rel (0) target = $region13
    $region12: #{decoder_rnn_forward.1} parent=1 // pred_region
      _
    $region13: #{decoder_rnn_forward.1} parent=1 // pred_fallthru
      _
    // Predicated region
    $region14: #{decoder_rnn_forward.1} parent=1 // pred_check
      _
    $region15: #{decoder_rnn_forward.1} parent=1 // pred_check_branch
      %32 = sbr.rel (0) target = $region17
    $region16: #{decoder_rnn_forward.1} parent=1 // pred_region
      %s34 = ssub.s32 8192, 8192
      %35 = vsyncadd [#allocation7], %s34
      %s36 = sshll.u32 [#allocation6], 4
      %s37 = int_to_ptr.vmem [resolvable:$true] %s36
      %42 = dma.hbm_to_vmem [thread:$0]  %s3, 8192, %s37, [#allocation7], 512, 512, 32
    $region17: #{decoder_rnn_forward.1} parent=1 // pred_fallthru
      _
    // Predicated region
    $region18: #{decoder_rnn_forward.1} parent=1 // pred_check
      _
    $region19: #{decoder_rnn_forward.1} parent=1 // pred_check_branch
      %44 = sbr.rel (0) target = $region21
    $region20: #{decoder_rnn_forward.1} parent=1 // pred_region
      %s46 = ssub.s32 8192, 8192
      %47 = vsyncadd [#allocation7], %s46
      %s48 = sshll.u32 [#allocation8], 4
      %s49 = int_to_ptr.vmem [resolvable:$true] %s48
      %54 = dma.hbm_to_vmem [thread:$0]  %s4, 8192, %s49, [#allocation7], 512, 512, 32
    $region21: #{decoder_rnn_forward.1} parent=1 // pred_fallthru
      _
    // Predicated region
    $region22: #{decoder_rnn_forward.1} parent=1 // pred_check
      _
    $region23: #{decoder_rnn_forward.1} parent=1 // pred_check_branch
      %56 = sbr.rel (0) target = $region25
    $region24: #{decoder_rnn_forward.1} parent=1 // pred_region
      %s58 = ssub.s32 8192, 8192
      %59 = vsyncadd [#allocation10], %s58
      %s60 = sshll.u32 [#allocation9], 4
      %s61 = int_to_ptr.vmem [resolvable:$true] %s60
      %66 = dma.hbm_to_vmem [thread:$0]  %s5, 8192, %s61, [#allocation10], 256, 256, 16
    $region25: #{decoder_rnn_forward.1} parent=1 // pred_fallthru
      _
    // Predicated region
    $region26: #{decoder_rnn_forward.1} parent=1 // pred_check
      _
    $region27: #{decoder_rnn_forward.1} parent=1 // pred_check_branch
      %68 = sbr.rel (0) target = $region29
    $region28: #{decoder_rnn_forward.1} parent=1 // pred_region
      _
    $region29: #{decoder_rnn_forward.1} parent=1 // pred_fallthru
      _
    // Predicated region
    $region30: #{decoder_rnn_forward.1} parent=1 // pred_check
      _
    $region31: #{decoder_rnn_forward.1} parent=1 // pred_check_branch
      %70 = sbr.rel (0) target = $region33
    $region32: #{decoder_rnn_forward.1} parent=1 // pred_region
      %71 = dma.done [#allocation5], 16384
    $region33: #{decoder_rnn_forward.1} parent=1 // pred_fallthru
      _
    // Predicated region
    $region34: #{decoder_rnn_forward.1} parent=1 // pred_check
      _
    $region35: #{decoder_rnn_forward.1} parent=1 // pred_check_branch
      %73 = sbr.rel (0) target = $region37
    $region36: #{decoder_rnn_forward.1} parent=1 // pred_region
      %74 = dma.done [#allocation7], 8192
    $region37: #{decoder_rnn_forward.1} parent=1 // pred_fallthru
      _
    // Predicated region
    $region38: #{decoder_rnn_forward.1} parent=1 // pred_check
      _
    $region39: #{decoder_rnn_forward.1} parent=1 // pred_check_branch
      %76 = sbr.rel (0) target = $region41
    $region40: #{decoder_rnn_forward.1} parent=1 // pred_region
      %77 = dma.done [#allocation7], 8192
    $region41: #{decoder_rnn_forward.1} parent=1 // pred_fallthru
      _
    // Predicated region
    $region42: #{decoder_rnn_forward.1} parent=1 // pred_check
      _
    $region43: #{decoder_rnn_forward.1} parent=1 // pred_check_branch
      %79 = sbr.rel (0) target = $region45
    $region44: #{decoder_rnn_forward.1} parent=1 // pred_region
      %80 = dma.done [#allocation10], 8192
    $region45: #{decoder_rnn_forward.1} parent=1 // pred_fallthru
      _
    %v81 = vld [vmem:[%s0] sm:$0xff]
    %v82 = vld [vmem:[%s0 + $0x8] sm:$0xff]
    %v83 = vld [vmem:[%s0 + $0x10] sm:$0xff]
    %v84 = vld [vmem:[%s0 + $0x18] sm:$0xff]
    %v85 = vld [vmem:[%s0 + $0x20] sm:$0xff]
    %v86 = vld [vmem:[%s0 + $0x28] sm:$0xff]
    %v87 = vld [vmem:[%s0 + $0x30] sm:$0xff]
    %v88 = vld [vmem:[%s0 + $0x38] sm:$0xff]
    %v89 = vld [vmem:[#allocation4] sm:$0xff]
    %v90 = vld [vmem:[#allocation4 + $0x8] sm:$0xff]
    %v91 = vld [vmem:[#allocation4 + $0x10] sm:$0xff]
    %v92 = vld [vmem:[#allocation4 + $0x18] sm:$0xff]
    %v93 = vld [vmem:[#allocation4 + $0x20] sm:$0xff]
    %v94 = vld [vmem:[#allocation4 + $0x28] sm:$0xff]
    %v95 = vld [vmem:[#allocation4 + $0x30] sm:$0xff]
    %v96 = vld [vmem:[#allocation4 + $0x38] sm:$0xff]
    %v97 = vld [vmem:[#allocation4 + $0x40] sm:$0xff]
    %v98 = vld [vmem:[#allocation4 + $0x48] sm:$0xff]
    %v99 = vld [vmem:[#allocation4 + $0x50] sm:$0xff]
    %v100 = vld [vmem:[#allocation4 + $0x58] sm:$0xff]
    %v101 = vld [vmem:[#allocation4 + $0x60] sm:$0xff]
    %v102 = vld [vmem:[#allocation4 + $0x68] sm:$0xff]
    %v103 = vld [vmem:[#allocation4 + $0x70] sm:$0xff]
    %v104 = vld [vmem:[#allocation4 + $0x78] sm:$0xff]
    %v105 = vld [vmem:[#allocation4 + $0x80] sm:$0xff]
    %v106 = vld [vmem:[#allocation4 + $0x88] sm:$0xff]
    %v107 = vld [vmem:[#allocation4 + $0x90] sm:$0xff]
    %v108 = vld [vmem:[#allocation4 + $0x98] sm:$0xff]
    %v109 = vld [vmem:[#allocation4 + $0xa0] sm:$0xff]
    %v110 = vld [vmem:[#allocation4 + $0xa8] sm:$0xff]
    %v111 = vld [vmem:[#allocation4 + $0xb0] sm:$0xff]
    %v112 = vld [vmem:[#allocation4 + $0xb8] sm:$0xff]
    %v113 = vld [vmem:[#allocation4 + $0xc0] sm:$0xff]
    %v114 = vld [vmem:[#allocation4 + $0xc8] sm:$0xff]
    %v115 = vld [vmem:[#allocation4 + $0xd0] sm:$0xff]
    %v116 = vld [vmem:[#allocation4 + $0xd8] sm:$0xff]
    %v117 = vld [vmem:[#allocation4 + $0xe0] sm:$0xff]
    %v118 = vld [vmem:[#allocation4 + $0xe8] sm:$0xff]
    %v119 = vld [vmem:[#allocation4 + $0xf0] sm:$0xff]
    %v120 = vld [vmem:[#allocation4 + $0xf8] sm:$0xff]
    %v121 = vld [vmem:[#allocation4 + $0x100] sm:$0xff]
    %v122 = vld [vmem:[#allocation4 + $0x108] sm:$0xff]
    %v123 = vld [vmem:[#allocation4 + $0x110] sm:$0xff]
    %v124 = vld [vmem:[#allocation4 + $0x118] sm:$0xff]
    %v125 = vld [vmem:[#allocation4 + $0x120] sm:$0xff]
    %v126 = vld [vmem:[#allocation4 + $0x128] sm:$0xff]
    %v127 = vld [vmem:[#allocation4 + $0x130] sm:$0xff]
    %v128 = vld [vmem:[#allocation4 + $0x138] sm:$0xff]
    %v129 = vld [vmem:[#allocation4 + $0x140] sm:$0xff]
    %v130 = vld [vmem:[#allocation4 + $0x148] sm:$0xff]
    %v131 = vld [vmem:[#allocation4 + $0x150] sm:$0xff]
    %v132 = vld [vmem:[#allocation4 + $0x158] sm:$0xff]
    %v133 = vld [vmem:[#allocation4 + $0x160] sm:$0xff]
    %v134 = vld [vmem:[#allocation4 + $0x168] sm:$0xff]
    %v135 = vld [vmem:[#allocation4 + $0x170] sm:$0xff]
    %v136 = vld [vmem:[#allocation4 + $0x178] sm:$0xff]
    %v137 = vld [vmem:[#allocation4 + $0x180] sm:$0xff]
    %v138 = vld [vmem:[#allocation4 + $0x188] sm:$0xff]
    %v139 = vld [vmem:[#allocation4 + $0x190] sm:$0xff]
    %v140 = vld [vmem:[#allocation4 + $0x198] sm:$0xff]
    %v141 = vld [vmem:[#allocation4 + $0x1a0] sm:$0xff]
    %v142 = vld [vmem:[#allocation4 + $0x1a8] sm:$0xff]
    %v143 = vld [vmem:[#allocation4 + $0x1b0] sm:$0xff]
    %v144 = vld [vmem:[#allocation4 + $0x1b8] sm:$0xff]
    %v145 = vld [vmem:[#allocation4 + $0x1c0] sm:$0xff]
    %v146 = vld [vmem:[#allocation4 + $0x1c8] sm:$0xff]
    %v147 = vld [vmem:[#allocation4 + $0x1d0] sm:$0xff]
    %v148 = vld [vmem:[#allocation4 + $0x1d8] sm:$0xff]
    %v149 = vld [vmem:[#allocation4 + $0x1e0] sm:$0xff]
    %v150 = vld [vmem:[#allocation4 + $0x1e8] sm:$0xff]
    %v151 = vld [vmem:[#allocation4 + $0x1f0] sm:$0xff]
    %v152 = vld [vmem:[#allocation4 + $0x1f8] sm:$0xff]
    %v153 = vld [vmem:[#allocation4 + $0x200] sm:$0xff]
    %v154 = vld [vmem:[#allocation4 + $0x208] sm:$0xff]
    %v155 = vld [vmem:[#allocation4 + $0x210] sm:$0xff]
    %v156 = vld [vmem:[#allocation4 + $0x218] sm:$0xff]
    %v157 = vld [vmem:[#allocation4 + $0x220] sm:$0xff]
    %v158 = vld [vmem:[#allocation4 + $0x228] sm:$0xff]
    %v159 = vld [vmem:[#allocation4 + $0x230] sm:$0xff]
    %v160 = vld [vmem:[#allocation4 + $0x238] sm:$0xff]
    %v161 = vld [vmem:[#allocation4 + $0x240] sm:$0xff]
    %v162 = vld [vmem:[#allocation4 + $0x248] sm:$0xff]
    %v163 = vld [vmem:[#allocation4 + $0x250] sm:$0xff]
    %v164 = vld [vmem:[#allocation4 + $0x258] sm:$0xff]
    %v165 = vld [vmem:[#allocation4 + $0x260] sm:$0xff]
    %v166 = vld [vmem:[#allocation4 + $0x268] sm:$0xff]
    %v167 = vld [vmem:[#allocation4 + $0x270] sm:$0xff]
    %v168 = vld [vmem:[#allocation4 + $0x278] sm:$0xff]
    %v169 = vld [vmem:[#allocation4 + $0x280] sm:$0xff]
    %v170 = vld [vmem:[#allocation4 + $0x288] sm:$0xff]
    %v171 = vld [vmem:[#allocation4 + $0x290] sm:$0xff]
    %v172 = vld [vmem:[#allocation4 + $0x298] sm:$0xff]
    %v173 = vld [vmem:[#allocation4 + $0x2a0] sm:$0xff]
    %v174 = vld [vmem:[#allocation4 + $0x2a8] sm:$0xff]
    %v175 = vld [vmem:[#allocation4 + $0x2b0] sm:$0xff]
    %v176 = vld [vmem:[#allocation4 + $0x2b8] sm:$0xff]
    %v177 = vld [vmem:[#allocation4 + $0x2c0] sm:$0xff]
    %v178 = vld [vmem:[#allocation4 + $0x2c8] sm:$0xff]
    %v179 = vld [vmem:[#allocation4 + $0x2d0] sm:$0xff]
    %v180 = vld [vmem:[#allocation4 + $0x2d8] sm:$0xff]
    %v181 = vld [vmem:[#allocation4 + $0x2e0] sm:$0xff]
    %v182 = vld [vmem:[#allocation4 + $0x2e8] sm:$0xff]
    %v183 = vld [vmem:[#allocation4 + $0x2f0] sm:$0xff]
    %v184 = vld [vmem:[#allocation4 + $0x2f8] sm:$0xff]
    %v185 = vld [vmem:[#allocation4 + $0x300] sm:$0xff]
    %v186 = vld [vmem:[#allocation4 + $0x308] sm:$0xff]
    %v187 = vld [vmem:[#allocation4 + $0x310] sm:$0xff]
    %v188 = vld [vmem:[#allocation4 + $0x318] sm:$0xff]
    %v189 = vld [vmem:[#allocation4 + $0x320] sm:$0xff]
    %v190 = vld [vmem:[#allocation4 + $0x328] sm:$0xff]
    %v191 = vld [vmem:[#allocation4 + $0x330] sm:$0xff]
    %v192 = vld [vmem:[#allocation4 + $0x338] sm:$0xff]
    %v193 = vld [vmem:[#allocation4 + $0x340] sm:$0xff]
    %v194 = vld [vmem:[#allocation4 + $0x348] sm:$0xff]
    %v195 = vld [vmem:[#allocation4 + $0x350] sm:$0xff]
    %v196 = vld [vmem:[#allocation4 + $0x358] sm:$0xff]
    %v197 = vld [vmem:[#allocation4 + $0x360] sm:$0xff]
    %v198 = vld [vmem:[#allocation4 + $0x368] sm:$0xff]
    %v199 = vld [vmem:[#allocation4 + $0x370] sm:$0xff]
    %v200 = vld [vmem:[#allocation4 + $0x378] sm:$0xff]
    %v201 = vld [vmem:[#allocation4 + $0x380] sm:$0xff]
    %v202 = vld [vmem:[#allocation4 + $0x388] sm:$0xff]
    %v203 = vld [vmem:[#allocation4 + $0x390] sm:$0xff]
    %v204 = vld [vmem:[#allocation4 + $0x398] sm:$0xff]
    %v205 = vld [vmem:[#allocation4 + $0x3a0] sm:$0xff]
    %v206 = vld [vmem:[#allocation4 + $0x3a8] sm:$0xff]
    %v207 = vld [vmem:[#allocation4 + $0x3b0] sm:$0xff]
    %v208 = vld [vmem:[#allocation4 + $0x3b8] sm:$0xff]
    %v209 = vld [vmem:[#allocation4 + $0x3c0] sm:$0xff]
    %v210 = vld [vmem:[#allocation4 + $0x3c8] sm:$0xff]
    %v211 = vld [vmem:[#allocation4 + $0x3d0] sm:$0xff]
    %v212 = vld [vmem:[#allocation4 + $0x3d8] sm:$0xff]
    %v213 = vld [vmem:[#allocation4 + $0x3e0] sm:$0xff]
    %v214 = vld [vmem:[#allocation4 + $0x3e8] sm:$0xff]
    %v215 = vld [vmem:[#allocation4 + $0x3f0] sm:$0xff]
    %v216 = vld [vmem:[#allocation4 + $0x3f8] sm:$0xff]
    %v217 = vld [vmem:[%s2] sm:$0xff]
    %v219 = vlaneseq
    %v220 = vshrl.u32 %v219, 7
    %v221 = vsub.s32 0, %v220
    %v222 = vrot.slane %v217, %v221
    %v223 = vlaneseq
    %v224 = vshrl.u32 %v223, 7
    %v225 = vsub.s32 1, %v224
    %v226 = vrot.slane %v217, %v225
    %v227 = vlaneseq
    %v228 = vshrl.u32 %v227, 7
    %v229 = vsub.s32 2, %v228
    %v230 = vrot.slane %v217, %v229
    %v231 = vlaneseq
    %v232 = vshrl.u32 %v231, 7
    %v233 = vsub.s32 3, %v232
    %v234 = vrot.slane %v217, %v233
    %v235 = vlaneseq
    %v236 = vshrl.u32 %v235, 7
    %v237 = vsub.s32 4, %v236
    %v238 = vrot.slane %v217, %v237
    %v239 = vlaneseq
    %v240 = vshrl.u32 %v239, 7
    %v241 = vsub.s32 5, %v240
    %v242 = vrot.slane %v217, %v241
    %v243 = vlaneseq
    %v244 = vshrl.u32 %v243, 7
    %v245 = vsub.s32 6, %v244
    %v246 = vrot.slane %v217, %v245
    %v247 = vlaneseq
    %v248 = vshrl.u32 %v247, 7
    %v249 = vsub.s32 7, %v248
    %v250 = vrot.slane %v217, %v249
    %259 = vmatprep.subr.mxu0 %v210
    %260 = vmatpush1.msra.mxu0 %v209
    %261 = vmatprep.subr.mxu0 %v202
    %262 = vmatpush1.msra.mxu0 %v201
    %263 = vmatprep.subr.mxu0 %v194
    %264 = vmatpush1.msra.mxu0 %v193
    %265 = vmatprep.subr.mxu0 %v186
    %266 = vmatpush1.msra.mxu0 %v185
    %267 = vmatprep.subr.mxu0 %v178
    %268 = vmatpush1.msra.mxu0 %v177
    %269 = vmatprep.subr.mxu0 %v170
    %270 = vmatpush1.msra.mxu0 %v169
    %271 = vmatprep.subr.mxu0 %v162
    %272 = vmatpush1.msra.mxu0 %v161
    %273 = vmatprep.subr.mxu0 %v154
    %274 = vmatpush1.msra.mxu0 %v153
    %275 = vmatprep.subr.mxu0 %v146
    %276 = vmatpush1.msra.mxu0 %v145
    %277 = vmatprep.subr.mxu0 %v138
    %278 = vmatpush1.msra.mxu0 %v137
    %279 = vmatprep.subr.mxu0 %v130
    %280 = vmatpush1.msra.mxu0 %v129
    %281 = vmatprep.subr.mxu0 %v122
    %282 = vmatpush1.msra.mxu0 %v121
    %283 = vmatprep.subr.mxu0 %v114
    %284 = vmatpush1.msra.mxu0 %v113
    %285 = vmatprep.subr.mxu0 %v106
    %286 = vmatpush1.msra.mxu0 %v105
    %287 = vmatprep.subr.mxu0 %v98
    %288 = vmatpush1.msra.mxu0 %v97
    %289 = vmatprep.subr.mxu0 %v90
    %290 = vmatpush1.msra.mxu0 %v89
    %291 = vmatprep.subr.mxu0 0.0
    %292 = vmatpush2.msra.mxu0 0.0
    %293 = vmatprep.subr.mxu0 0.0
    %294 = vmatpush2.msra.mxu0 0.0
    %295 = vmatprep.subr.mxu0 0.0
    %296 = vmatpush2.msra.mxu0 0.0
    %297 = vmatprep.subr.mxu0 0.0
    %298 = vmatpush2.msra.mxu0 0.0
    %299 = vmatprep.subr.mxu0 0.0
    %300 = vmatpush2.msra.mxu0 0.0
    %301 = vmatprep.subr.mxu0 0.0
    %302 = vmatpush2.msra.mxu0 0.0
    %303 = vmatprep.subr.mxu0 0.0
    %304 = vmatpush2.msra.mxu0 0.0
    %305 = vmatprep.subr.mxu0 0.0
    %306 = vmatpush2.msra.mxu0 0.0
    %307 = vmatprep.subr.mxu0 0.0
    %308 = vmatpush2.msra.mxu0 0.0
    %309 = vmatprep.subr.mxu0 0.0
    %310 = vmatpush2.msra.mxu0 0.0
    %311 = vmatprep.subr.mxu0 0.0
    %312 = vmatpush2.msra.mxu0 0.0
    %313 = vmatprep.subr.mxu0 0.0
    %314 = vmatpush2.msra.mxu0 0.0
    %315 = vmatprep.subr.mxu0 0.0
    %316 = vmatpush2.msra.mxu0 0.0
    %317 = vmatprep.subr.mxu0 0.0
    %318 = vmatpush2.msra.mxu0 0.0
    %319 = vmatprep.subr.mxu0 0.0
    %320 = vmatpush2.msra.mxu0 0.0
    %321 = vmatprep.subr.mxu0 0.0
    %322 = vmatpush2.msra.mxu0 0.0
    %323 = vmatprep.mubr.f32.mxu0 0.0
    %324 = vmatmul.mubr.f32.gmra.mxu0 %v81
    %v325 = vpop.f32.mrf.mxu0
    %v326 = vadd.f32 %v222, %v325
    %v327 = vpop.f32.mrf.mxu0
    %v328 = vadd.f32 %v226, %v327
    %329 = vmatprep.mubr.f32.mxu0 0.0
    %330 = vmatmul.mubr.f32.gmra.mxu0 %v82
    %v331 = vpop.f32.mrf.mxu0
    %v332 = vadd.f32 %v222, %v331
    %v333 = vpop.f32.mrf.mxu0
    %v334 = vadd.f32 %v226, %v333
    %335 = vmatprep.mubr.f32.mxu0 0.0
    %336 = vmatmul.mubr.f32.gmra.mxu0 %v83
    %v337 = vpop.f32.mrf.mxu0
    %v338 = vadd.f32 %v222, %v337
    %v339 = vpop.f32.mrf.mxu0
    %v340 = vadd.f32 %v226, %v339
    %341 = vmatprep.mubr.f32.mxu0 0.0
    %342 = vmatmul.mubr.f32.gmra.mxu0 %v84
    %v343 = vpop.f32.mrf.mxu0
    %v344 = vadd.f32 %v222, %v343
    %v345 = vpop.f32.mrf.mxu0
    %v346 = vadd.f32 %v226, %v345
    %347 = vmatprep.mubr.f32.mxu0 0.0
    %348 = vmatmul.mubr.f32.gmra.mxu0 %v85
    %v349 = vpop.f32.mrf.mxu0
    %v350 = vadd.f32 %v222, %v349
    %v351 = vpop.f32.mrf.mxu0
    %v352 = vadd.f32 %v226, %v351
    %353 = vmatprep.mubr.f32.mxu0 0.0
    %354 = vmatmul.mubr.f32.gmra.mxu0 %v86
    %v355 = vpop.f32.mrf.mxu0
    %v356 = vadd.f32 %v222, %v355
    %v357 = vpop.f32.mrf.mxu0
    %v358 = vadd.f32 %v226, %v357
    %359 = vmatprep.mubr.f32.mxu0 0.0
    %360 = vmatmul.mubr.f32.gmra.mxu0 %v87
    %v361 = vpop.f32.mrf.mxu0
    %v362 = vadd.f32 %v222, %v361
    %v363 = vpop.f32.mrf.mxu0
    %v364 = vadd.f32 %v226, %v363
    %365 = vmatprep.mubr.f32.mxu0 0.0
    %366 = vmatmul.mubr.f32.gmra.mxu0 %v88
    %v367 = vpop.f32.mrf.mxu0
    %v368 = vadd.f32 %v222, %v367
    %v369 = vpop.f32.mrf.mxu0
    %v370 = vadd.f32 %v226, %v369
    %371 = vdwg.mxu0
    %372 = vmatprep.subr.mxu0 %v212
    %373 = vmatpush1.msra.mxu0 %v211
    %374 = vmatprep.subr.mxu0 %v204
    %375 = vmatpush1.msra.mxu0 %v203
    %376 = vmatprep.subr.mxu0 %v196
    %377 = vmatpush1.msra.mxu0 %v195
    %378 = vmatprep.subr.mxu0 %v188
    %379 = vmatpush1.msra.mxu0 %v187
    %380 = vmatprep.subr.mxu0 %v180
    %381 = vmatpush1.msra.mxu0 %v179
    %382 = vmatprep.subr.mxu0 %v172
    %383 = vmatpush1.msra.mxu0 %v171
    %384 = vmatprep.subr.mxu0 %v164
    %385 = vmatpush1.msra.mxu0 %v163
    %386 = vmatprep.subr.mxu0 %v156
    %387 = vmatpush1.msra.mxu0 %v155
    %388 = vmatprep.subr.mxu0 %v148
    %389 = vmatpush1.msra.mxu0 %v147
    %390 = vmatprep.subr.mxu0 %v140
    %391 = vmatpush1.msra.mxu0 %v139
    %392 = vmatprep.subr.mxu0 %v132
    %393 = vmatpush1.msra.mxu0 %v131
    %394 = vmatprep.subr.mxu0 %v124
    %395 = vmatpush1.msra.mxu0 %v123
    %396 = vmatprep.subr.mxu0 %v116
    %397 = vmatpush1.msra.mxu0 %v115
    %398 = vmatprep.subr.mxu0 %v108
    %399 = vmatpush1.msra.mxu0 %v107
    %400 = vmatprep.subr.mxu0 %v100
    %401 = vmatpush1.msra.mxu0 %v99
    %402 = vmatprep.subr.mxu0 %v92
    %403 = vmatpush1.msra.mxu0 %v91
    %404 = vmatprep.subr.mxu0 0.0
    %405 = vmatpush2.msra.mxu0 0.0
    %406 = vmatprep.subr.mxu0 0.0
    %407 = vmatpush2.msra.mxu0 0.0
    %408 = vmatprep.subr.mxu0 0.0
    %409 = vmatpush2.msra.mxu0 0.0
    %410 = vmatprep.subr.mxu0 0.0
    %411 = vmatpush2.msra.mxu0 0.0
    %412 = vmatprep.subr.mxu0 0.0
    %413 = vmatpush2.msra.mxu0 0.0
    %414 = vmatprep.subr.mxu0 0.0
    %415 = vmatpush2.msra.mxu0 0.0
    %416 = vmatprep.subr.mxu0 0.0
    %417 = vmatpush2.msra.mxu0 0.0
    %418 = vmatprep.subr.mxu0 0.0
    %419 = vmatpush2.msra.mxu0 0.0
    %420 = vmatprep.subr.mxu0 0.0
    %421 = vmatpush2.msra.mxu0 0.0
    %422 = vmatprep.subr.mxu0 0.0
    %423 = vmatpush2.msra.mxu0 0.0
    %424 = vmatprep.subr.mxu0 0.0
    %425 = vmatpush2.msra.mxu0 0.0
    %426 = vmatprep.subr.mxu0 0.0
    %427 = vmatpush2.msra.mxu0 0.0
    %428 = vmatprep.subr.mxu0 0.0
    %429 = vmatpush2.msra.mxu0 0.0
    %430 = vmatprep.subr.mxu0 0.0
    %431 = vmatpush2.msra.mxu0 0.0
    %432 = vmatprep.subr.mxu0 0.0
    %433 = vmatpush2.msra.mxu0 0.0
    %434 = vmatprep.subr.mxu0 0.0
    %435 = vmatpush2.msra.mxu0 0.0
    %436 = vmatprep.mubr.f32.mxu0 0.0
    %437 = vmatmul.mubr.f32.gmra.mxu0 %v81
    %v438 = vpop.f32.mrf.mxu0
    %v439 = vadd.f32 %v230, %v438
    %v440 = vpop.f32.mrf.mxu0
    %v441 = vadd.f32 %v234, %v440
    %442 = vmatprep.mubr.f32.mxu0 0.0
    %443 = vmatmul.mubr.f32.gmra.mxu0 %v82
    %v444 = vpop.f32.mrf.mxu0
    %v445 = vadd.f32 %v230, %v444
    %v446 = vpop.f32.mrf.mxu0
    %v447 = vadd.f32 %v234, %v446
    %448 = vmatprep.mubr.f32.mxu0 0.0
    %449 = vmatmul.mubr.f32.gmra.mxu0 %v83
    %v450 = vpop.f32.mrf.mxu0
    %v451 = vadd.f32 %v230, %v450
    %v452 = vpop.f32.mrf.mxu0
    %v453 = vadd.f32 %v234, %v452
    %454 = vmatprep.mubr.f32.mxu0 0.0
    %455 = vmatmul.mubr.f32.gmra.mxu0 %v84
    %v456 = vpop.f32.mrf.mxu0
    %v457 = vadd.f32 %v230, %v456
    %v458 = vpop.f32.mrf.mxu0
    %v459 = vadd.f32 %v234, %v458
    %460 = vmatprep.mubr.f32.mxu0 0.0
    %461 = vmatmul.mubr.f32.gmra.mxu0 %v85
    %v462 = vpop.f32.mrf.mxu0
    %v463 = vadd.f32 %v230, %v462
    %v464 = vpop.f32.mrf.mxu0
    %v465 = vadd.f32 %v234, %v464
    %466 = vmatprep.mubr.f32.mxu0 0.0
    %467 = vmatmul.mubr.f32.gmra.mxu0 %v86
    %v468 = vpop.f32.mrf.mxu0
    %v469 = vadd.f32 %v230, %v468
    %v470 = vpop.f32.mrf.mxu0
    %v471 = vadd.f32 %v234, %v470
    %472 = vmatprep.mubr.f32.mxu0 0.0
    %473 = vmatmul.mubr.f32.gmra.mxu0 %v87
    %v474 = vpop.f32.mrf.mxu0
    %v475 = vadd.f32 %v230, %v474
    %v476 = vpop.f32.mrf.mxu0
    %v477 = vadd.f32 %v234, %v476
    %478 = vmatprep.mubr.f32.mxu0 0.0
    %479 = vmatmul.mubr.f32.gmra.mxu0 %v88
    %v480 = vpop.f32.mrf.mxu0
    %v481 = vadd.f32 %v230, %v480
    %v482 = vpop.f32.mrf.mxu0
    %v483 = vadd.f32 %v234, %v482
    %484 = vdwg.mxu0
    %485 = vmatprep.subr.mxu0 %v214
    %486 = vmatpush1.msra.mxu0 %v213
    %487 = vmatprep.subr.mxu0 %v206
    %488 = vmatpush1.msra.mxu0 %v205
    %489 = vmatprep.subr.mxu0 %v198
    %490 = vmatpush1.msra.mxu0 %v197
    %491 = vmatprep.subr.mxu0 %v190
    %492 = vmatpush1.msra.mxu0 %v189
    %493 = vmatprep.subr.mxu0 %v182
    %494 = vmatpush1.msra.mxu0 %v181
    %495 = vmatprep.subr.mxu0 %v174
    %496 = vmatpush1.msra.mxu0 %v173
    %497 = vmatprep.subr.mxu0 %v166
    %498 = vmatpush1.msra.mxu0 %v165
    %499 = vmatprep.subr.mxu0 %v158
    %500 = vmatpush1.msra.mxu0 %v157
    %501 = vmatprep.subr.mxu0 %v150
    %502 = vmatpush1.msra.mxu0 %v149
    %503 = vmatprep.subr.mxu0 %v142
    %504 = vmatpush1.msra.mxu0 %v141
    %505 = vmatprep.subr.mxu0 %v134
    %506 = vmatpush1.msra.mxu0 %v133
    %507 = vmatprep.subr.mxu0 %v126
    %508 = vmatpush1.msra.mxu0 %v125
    %509 = vmatprep.subr.mxu0 %v118
    %510 = vmatpush1.msra.mxu0 %v117
    %511 = vmatprep.subr.mxu0 %v110
    %512 = vmatpush1.msra.mxu0 %v109
    %513 = vmatprep.subr.mxu0 %v102
    %514 = vmatpush1.msra.mxu0 %v101
    %515 = vmatprep.subr.mxu0 %v94
    %516 = vmatpush1.msra.mxu0 %v93
    %517 = vmatprep.subr.mxu0 0.0
    %518 = vmatpush2.msra.mxu0 0.0
    %519 = vmatprep.subr.mxu0 0.0
    %520 = vmatpush2.msra.mxu0 0.0
    %521 = vmatprep.subr.mxu0 0.0
    %522 = vmatpush2.msra.mxu0 0.0
    %523 = vmatprep.subr.mxu0 0.0
    %524 = vmatpush2.msra.mxu0 0.0
    %525 = vmatprep.subr.mxu0 0.0
    %526 = vmatpush2.msra.mxu0 0.0
    %527 = vmatprep.subr.mxu0 0.0
    %528 = vmatpush2.msra.mxu0 0.0
    %529 = vmatprep.subr.mxu0 0.0
    %530 = vmatpush2.msra.mxu0 0.0
    %531 = vmatprep.subr.mxu0 0.0
    %532 = vmatpush2.msra.mxu0 0.0
    %533 = vmatprep.subr.mxu0 0.0
    %534 = vmatpush2.msra.mxu0 0.0
    %535 = vmatprep.subr.mxu0 0.0
    %536 = vmatpush2.msra.mxu0 0.0
    %537 = vmatprep.subr.mxu0 0.0
    %538 = vmatpush2.msra.mxu0 0.0
    %539 = vmatprep.subr.mxu0 0.0
    %540 = vmatpush2.msra.mxu0 0.0
    %541 = vmatprep.subr.mxu0 0.0
    %542 = vmatpush2.msra.mxu0 0.0
    %543 = vmatprep.subr.mxu0 0.0
    %544 = vmatpush2.msra.mxu0 0.0
    %545 = vmatprep.subr.mxu0 0.0
    %546 = vmatpush2.msra.mxu0 0.0
    %547 = vmatprep.subr.mxu0 0.0
    %548 = vmatpush2.msra.mxu0 0.0
    %549 = vmatprep.mubr.f32.mxu0 0.0
    %550 = vmatmul.mubr.f32.gmra.mxu0 %v81
    %v551 = vpop.f32.mrf.mxu0
    %v552 = vadd.f32 %v238, %v551
    %v553 = vpop.f32.mrf.mxu0
    %v554 = vadd.f32 %v242, %v553
    %555 = vmatprep.mubr.f32.mxu0 0.0
    %556 = vmatmul.mubr.f32.gmra.mxu0 %v82
    %v557 = vpop.f32.mrf.mxu0
    %v558 = vadd.f32 %v238, %v557
    %v559 = vpop.f32.mrf.mxu0
    %v560 = vadd.f32 %v242, %v559
    %561 = vmatprep.mubr.f32.mxu0 0.0
    %562 = vmatmul.mubr.f32.gmra.mxu0 %v83
    %v563 = vpop.f32.mrf.mxu0
    %v564 = vadd.f32 %v238, %v563
    %v565 = vpop.f32.mrf.mxu0
    %v566 = vadd.f32 %v242, %v565
    %567 = vmatprep.mubr.f32.mxu0 0.0
    %568 = vmatmul.mubr.f32.gmra.mxu0 %v84
    %v569 = vpop.f32.mrf.mxu0
    %v570 = vadd.f32 %v238, %v569
    %v571 = vpop.f32.mrf.mxu0
    %v572 = vadd.f32 %v242, %v571
    %573 = vmatprep.mubr.f32.mxu0 0.0
    %574 = vmatmul.mubr.f32.gmra.mxu0 %v85
    %v575 = vpop.f32.mrf.mxu0
    %v576 = vadd.f32 %v238, %v575
    %v577 = vpop.f32.mrf.mxu0
    %v578 = vadd.f32 %v242, %v577
    %579 = vmatprep.mubr.f32.mxu0 0.0
    %580 = vmatmul.mubr.f32.gmra.mxu0 %v86
    %v581 = vpop.f32.mrf.mxu0
    %v582 = vadd.f32 %v238, %v581
    %v583 = vpop.f32.mrf.mxu0
    %v584 = vadd.f32 %v242, %v583
    %585 = vmatprep.mubr.f32.mxu0 0.0
    %586 = vmatmul.mubr.f32.gmra.mxu0 %v87
    %v587 = vpop.f32.mrf.mxu0
    %v588 = vadd.f32 %v238, %v587
    %v589 = vpop.f32.mrf.mxu0
    %v590 = vadd.f32 %v242, %v589
    %591 = vmatprep.mubr.f32.mxu0 0.0
    %592 = vmatmul.mubr.f32.gmra.mxu0 %v88
    %v593 = vpop.f32.mrf.mxu0
    %v594 = vadd.f32 %v238, %v593
    %v595 = vpop.f32.mrf.mxu0
    %v596 = vadd.f32 %v242, %v595
    %597 = vdwg.mxu0
    %598 = vmatprep.subr.mxu0 %v216
    %599 = vmatpush1.msra.mxu0 %v215
    %600 = vmatprep.subr.mxu0 %v208
    %601 = vmatpush1.msra.mxu0 %v207
    %602 = vmatprep.subr.mxu0 %v200
    %603 = vmatpush1.msra.mxu0 %v199
    %604 = vmatprep.subr.mxu0 %v192
    %605 = vmatpush1.msra.mxu0 %v191
    %606 = vmatprep.subr.mxu0 %v184
    %607 = vmatpush1.msra.mxu0 %v183
    %608 = vmatprep.subr.mxu0 %v176
    %609 = vmatpush1.msra.mxu0 %v175
    %610 = vmatprep.subr.mxu0 %v168
    %611 = vmatpush1.msra.mxu0 %v167
    %612 = vmatprep.subr.mxu0 %v160
    %613 = vmatpush1.msra.mxu0 %v159
    %614 = vmatprep.subr.mxu0 %v152
    %615 = vmatpush1.msra.mxu0 %v151
    %616 = vmatprep.subr.mxu0 %v144
    %617 = vmatpush1.msra.mxu0 %v143
    %618 = vmatprep.subr.mxu0 %v136
    %619 = vmatpush1.msra.mxu0 %v135
    %620 = vmatprep.subr.mxu0 %v128
    %621 = vmatpush1.msra.mxu0 %v127
    %622 = vmatprep.subr.mxu0 %v120
    %623 = vmatpush1.msra.mxu0 %v119
    %624 = vmatprep.subr.mxu0 %v112
    %625 = vmatpush1.msra.mxu0 %v111
    %626 = vmatprep.subr.mxu0 %v104
    %627 = vmatpush1.msra.mxu0 %v103
    %628 = vmatprep.subr.mxu0 %v96
    %629 = vmatpush1.msra.mxu0 %v95
    %630 = vmatprep.subr.mxu0 0.0
    %631 = vmatpush2.msra.mxu0 0.0
    %632 = vmatprep.subr.mxu0 0.0
    %633 = vmatpush2.msra.mxu0 0.0
    %634 = vmatprep.subr.mxu0 0.0
    %635 = vmatpush2.msra.mxu0 0.0
    %636 = vmatprep.subr.mxu0 0.0
    %637 = vmatpush2.msra.mxu0 0.0
    %638 = vmatprep.subr.mxu0 0.0
    %639 = vmatpush2.msra.mxu0 0.0
    %640 = vmatprep.subr.mxu0 0.0
    %641 = vmatpush2.msra.mxu0 0.0
    %642 = vmatprep.subr.mxu0 0.0
    %643 = vmatpush2.msra.mxu0 0.0
    %644 = vmatprep.subr.mxu0 0.0
    %645 = vmatpush2.msra.mxu0 0.0
    %646 = vmatprep.subr.mxu0 0.0
    %647 = vmatpush2.msra.mxu0 0.0
    %648 = vmatprep.subr.mxu0 0.0
    %649 = vmatpush2.msra.mxu0 0.0
    %650 = vmatprep.subr.mxu0 0.0
    %651 = vmatpush2.msra.mxu0 0.0
    %652 = vmatprep.subr.mxu0 0.0
    %653 = vmatpush2.msra.mxu0 0.0
    %654 = vmatprep.subr.mxu0 0.0
    %655 = vmatpush2.msra.mxu0 0.0
    %656 = vmatprep.subr.mxu0 0.0
    %657 = vmatpush2.msra.mxu0 0.0
    %658 = vmatprep.subr.mxu0 0.0
    %659 = vmatpush2.msra.mxu0 0.0
    %660 = vmatprep.subr.mxu0 0.0
    %661 = vmatpush2.msra.mxu0 0.0
    %662 = vmatprep.mubr.f32.mxu0 0.0
    %663 = vmatmul.mubr.f32.gmra.mxu0 %v81
    %v664 = vpop.f32.mrf.mxu0
    %v665 = vadd.f32 %v246, %v664
    %v666 = vpop.f32.mrf.mxu0
    %v667 = vadd.f32 %v250, %v666
    %668 = vmatprep.mubr.f32.mxu0 0.0
    %669 = vmatmul.mubr.f32.gmra.mxu0 %v82
    %v670 = vpop.f32.mrf.mxu0
    %v671 = vadd.f32 %v246, %v670
    %v672 = vpop.f32.mrf.mxu0
    %v673 = vadd.f32 %v250, %v672
    %674 = vmatprep.mubr.f32.mxu0 0.0
    %675 = vmatmul.mubr.f32.gmra.mxu0 %v83
    %v676 = vpop.f32.mrf.mxu0
    %v677 = vadd.f32 %v246, %v676
    %v678 = vpop.f32.mrf.mxu0
    %v679 = vadd.f32 %v250, %v678
    %680 = vmatprep.mubr.f32.mxu0 0.0
    %681 = vmatmul.mubr.f32.gmra.mxu0 %v84
    %v682 = vpop.f32.mrf.mxu0
    %v683 = vadd.f32 %v246, %v682
    %v684 = vpop.f32.mrf.mxu0
    %v685 = vadd.f32 %v250, %v684
    %686 = vmatprep.mubr.f32.mxu0 0.0
    %687 = vmatmul.mubr.f32.gmra.mxu0 %v85
    %v688 = vpop.f32.mrf.mxu0
    %v689 = vadd.f32 %v246, %v688
    %v690 = vpop.f32.mrf.mxu0
    %v691 = vadd.f32 %v250, %v690
    %692 = vmatprep.mubr.f32.mxu0 0.0
    %693 = vmatmul.mubr.f32.gmra.mxu0 %v86
    %v694 = vpop.f32.mrf.mxu0
    %v695 = vadd.f32 %v246, %v694
    %v696 = vpop.f32.mrf.mxu0
    %v697 = vadd.f32 %v250, %v696
    %698 = vmatprep.mubr.f32.mxu0 0.0
    %699 = vmatmul.mubr.f32.gmra.mxu0 %v87
    %v700 = vpop.f32.mrf.mxu0
    %v701 = vadd.f32 %v246, %v700
    %v702 = vpop.f32.mrf.mxu0
    %v703 = vadd.f32 %v250, %v702
    %704 = vmatprep.mubr.f32.mxu0 0.0
    %705 = vmatmul.mubr.f32.gmra.mxu0 %v88
    %v706 = vpop.f32.mrf.mxu0
    %v707 = vadd.f32 %v246, %v706
    %v708 = vpop.f32.mrf.mxu0
    %v709 = vadd.f32 %v250, %v708
    %710 = vdwg.mxu0
    %711 = vst [vmem:[#allocation2] sm:$0xff] %v326
    %712 = vst [vmem:[#allocation2 + $0x8] sm:$0xff] %v328
    %713 = vst [vmem:[#allocation2 + $0x10] sm:$0xff] %v439
    %714 = vst [vmem:[#allocation2 + $0x18] sm:$0xff] %v441
    %715 = vst [vmem:[#allocation2 + $0x20] sm:$0xff] %v552
    %716 = vst [vmem:[#allocation2 + $0x28] sm:$0xff] %v554
    %717 = vst [vmem:[#allocation2 + $0x30] sm:$0xff] %v665
    %718 = vst [vmem:[#allocation2 + $0x38] sm:$0xff] %v667
    %719 = vst [vmem:[#allocation2 + $0x40] sm:$0xff] %v332
    %720 = vst [vmem:[#allocation2 + $0x48] sm:$0xff] %v334
    %721 = vst [vmem:[#allocation2 + $0x50] sm:$0xff] %v445
    %722 = vst [vmem:[#allocation2 + $0x58] sm:$0xff] %v447
    %723 = vst [vmem:[#allocation2 + $0x60] sm:$0xff] %v558
    %724 = vst [vmem:[#allocation2 + $0x68] sm:$0xff] %v560
    %725 = vst [vmem:[#allocation2 + $0x70] sm:$0xff] %v671
    %726 = vst [vmem:[#allocation2 + $0x78] sm:$0xff] %v673
    %727 = vst [vmem:[#allocation2 + $0x80] sm:$0xff] %v338
    %728 = vst [vmem:[#allocation2 + $0x88] sm:$0xff] %v340
    %729 = vst [vmem:[#allocation2 + $0x90] sm:$0xff] %v451
    %730 = vst [vmem:[#allocation2 + $0x98] sm:$0xff] %v453
    %731 = vst [vmem:[#allocation2 + $0xa0] sm:$0xff] %v564
    %732 = vst [vmem:[#allocation2 + $0xa8] sm:$0xff] %v566
    %733 = vst [vmem:[#allocation2 + $0xb0] sm:$0xff] %v677
    %734 = vst [vmem:[#allocation2 + $0xb8] sm:$0xff] %v679
    %735 = vst [vmem:[#allocation2 + $0xc0] sm:$0xff] %v344
    %736 = vst [vmem:[#allocation2 + $0xc8] sm:$0xff] %v346
    %737 = vst [vmem:[#allocation2 + $0xd0] sm:$0xff] %v457
    %738 = vst [vmem:[#allocation2 + $0xd8] sm:$0xff] %v459
    %739 = vst [vmem:[#allocation2 + $0xe0] sm:$0xff] %v570
    %740 = vst [vmem:[#allocation2 + $0xe8] sm:$0xff] %v572
    %741 = vst [vmem:[#allocation2 + $0xf0] sm:$0xff] %v683
    %742 = vst [vmem:[#allocation2 + $0xf8] sm:$0xff] %v685
    %743 = vst [vmem:[#allocation2 + $0x100] sm:$0xff] %v350
    %744 = vst [vmem:[#allocation2 + $0x108] sm:$0xff] %v352
    %745 = vst [vmem:[#allocation2 + $0x110] sm:$0xff] %v463
    %746 = vst [vmem:[#allocation2 + $0x118] sm:$0xff] %v465
    %747 = vst [vmem:[#allocation2 + $0x120] sm:$0xff] %v576
    %748 = vst [vmem:[#allocation2 + $0x128] sm:$0xff] %v578
    %749 = vst [vmem:[#allocation2 + $0x130] sm:$0xff] %v689
    %750 = vst [vmem:[#allocation2 + $0x138] sm:$0xff] %v691
    %751 = vst [vmem:[#allocation2 + $0x140] sm:$0xff] %v356
    %752 = vst [vmem:[#allocation2 + $0x148] sm:$0xff] %v358
    %753 = vst [vmem:[#allocation2 + $0x150] sm:$0xff] %v469
    %754 = vst [vmem:[#allocation2 + $0x158] sm:$0xff] %v471
    %755 = vst [vmem:[#allocation2 + $0x160] sm:$0xff] %v582
    %756 = vst [vmem:[#allocation2 + $0x168] sm:$0xff] %v584
    %757 = vst [vmem:[#allocation2 + $0x170] sm:$0xff] %v695
    %758 = vst [vmem:[#allocation2 + $0x178] sm:$0xff] %v697
    %759 = vst [vmem:[#allocation2 + $0x180] sm:$0xff] %v362
    %760 = vst [vmem:[#allocation2 + $0x188] sm:$0xff] %v364
    %761 = vst [vmem:[#allocation2 + $0x190] sm:$0xff] %v475
    %762 = vst [vmem:[#allocation2 + $0x198] sm:$0xff] %v477
    %763 = vst [vmem:[#allocation2 + $0x1a0] sm:$0xff] %v588
    %764 = vst [vmem:[#allocation2 + $0x1a8] sm:$0xff] %v590
    %765 = vst [vmem:[#allocation2 + $0x1b0] sm:$0xff] %v701
    %766 = vst [vmem:[#allocation2 + $0x1b8] sm:$0xff] %v703
    %767 = vst [vmem:[#allocation2 + $0x1c0] sm:$0xff] %v368
    %768 = vst [vmem:[#allocation2 + $0x1c8] sm:$0xff] %v370
    %769 = vst [vmem:[#allocation2 + $0x1d0] sm:$0xff] %v481
    %770 = vst [vmem:[#allocation2 + $0x1d8] sm:$0xff] %v483
    %771 = vst [vmem:[#allocation2 + $0x1e0] sm:$0xff] %v594
    %772 = vst [vmem:[#allocation2 + $0x1e8] sm:$0xff] %v596
    %773 = vst [vmem:[#allocation2 + $0x1f0] sm:$0xff] %v707
    %774 = vst [vmem:[#allocation2 + $0x1f8] sm:$0xff] %v709
    %v775 = vld [vmem:[#allocation2] sm:$0xff]
    %v776 = vld [vmem:[#allocation2 + $0x8] sm:$0xff]
    %v777 = vld [vmem:[#allocation2 + $0x10] sm:$0xff]
    %v778 = vld [vmem:[#allocation2 + $0x18] sm:$0xff]
    %v779 = vld [vmem:[#allocation2 + $0x1e0] sm:$0xff]
    %v780 = vld [vmem:[#allocation2 + $0x1e8] sm:$0xff]
    %v781 = vld [vmem:[#allocation2 + $0x1f0] sm:$0xff]
    %v782 = vld [vmem:[#allocation2 + $0x1f8] sm:$0xff]
    %v783 = vld [vmem:[#allocation6] sm:$0xff]
    %v784 = vld [vmem:[#allocation6 + $0x8] sm:$0xff]
    %v785 = vld [vmem:[#allocation6 + $0x10] sm:$0xff]
    %v786 = vld [vmem:[#allocation6 + $0x18] sm:$0xff]
    %v787 = vld [vmem:[#allocation6 + $0x20] sm:$0xff]
    %v788 = vld [vmem:[#allocation6 + $0x28] sm:$0xff]
    %v789 = vld [vmem:[#allocation6 + $0x30] sm:$0xff]
    %v790 = vld [vmem:[#allocation6 + $0x38] sm:$0xff]
    %v791 = vld [vmem:[#allocation6 + $0x40] sm:$0xff]
    %v792 = vld [vmem:[#allocation6 + $0x48] sm:$0xff]
    %v793 = vld [vmem:[#allocation6 + $0x50] sm:$0xff]
    %v794 = vld [vmem:[#allocation6 + $0x58] sm:$0xff]
    %v795 = vld [vmem:[#allocation6 + $0x60] sm:$0xff]
    %v796 = vld [vmem:[#allocation6 + $0x68] sm:$0xff]
    %v797 = vld [vmem:[#allocation6 + $0x70] sm:$0xff]
    %v798 = vld [vmem:[#allocation6 + $0x78] sm:$0xff]
    %v799 = vld [vmem:[#allocation6 + $0x80] sm:$0xff]
    %v800 = vld [vmem:[#allocation6 + $0x88] sm:$0xff]
    %v801 = vld [vmem:[#allocation6 + $0x90] sm:$0xff]
    %v802 = vld [vmem:[#allocation6 + $0x98] sm:$0xff]
    %v803 = vld [vmem:[#allocation6 + $0xa0] sm:$0xff]
    %v804 = vld [vmem:[#allocation6 + $0xa8] sm:$0xff]
    %v805 = vld [vmem:[#allocation6 + $0xb0] sm:$0xff]
    %v806 = vld [vmem:[#allocation6 + $0xb8] sm:$0xff]
    %v807 = vld [vmem:[#allocation6 + $0xc0] sm:$0xff]
    %v808 = vld [vmem:[#allocation6 + $0xc8] sm:$0xff]
    %v809 = vld [vmem:[#allocation6 + $0xd0] sm:$0xff]
    %v810 = vld [vmem:[#allocation6 + $0xd8] sm:$0xff]
    %v811 = vld [vmem:[#allocation6 + $0xe0] sm:$0xff]
    %v812 = vld [vmem:[#allocation6 + $0xe8] sm:$0xff]
    %v813 = vld [vmem:[#allocation6 + $0xf0] sm:$0xff]
    %v814 = vld [vmem:[#allocation6 + $0xf8] sm:$0xff]
    %v815 = vld [vmem:[#allocation6 + $0x100] sm:$0xff]
    %v816 = vld [vmem:[#allocation6 + $0x108] sm:$0xff]
    %v817 = vld [vmem:[#allocation6 + $0x110] sm:$0xff]
    %v818 = vld [vmem:[#allocation6 + $0x118] sm:$0xff]
    %v819 = vld [vmem:[#allocation6 + $0x120] sm:$0xff]
    %v820 = vld [vmem:[#allocation6 + $0x128] sm:$0xff]
    %v821 = vld [vmem:[#allocation6 + $0x130] sm:$0xff]
    %v822 = vld [vmem:[#allocation6 + $0x138] sm:$0xff]
    %v823 = vld [vmem:[#allocation6 + $0x140] sm:$0xff]
    %v824 = vld [vmem:[#allocation6 + $0x148] sm:$0xff]
    %v825 = vld [vmem:[#allocation6 + $0x150] sm:$0xff]
    %v826 = vld [vmem:[#allocation6 + $0x158] sm:$0xff]
    %v827 = vld [vmem:[#allocation6 + $0x160] sm:$0xff]
    %v828 = vld [vmem:[#allocation6 + $0x168] sm:$0xff]
    %v829 = vld [vmem:[#allocation6 + $0x170] sm:$0xff]
    %v830 = vld [vmem:[#allocation6 + $0x178] sm:$0xff]
    %v831 = vld [vmem:[#allocation6 + $0x180] sm:$0xff]
    %v832 = vld [vmem:[#allocation6 + $0x188] sm:$0xff]
    %v833 = vld [vmem:[#allocation6 + $0x190] sm:$0xff]
    %v834 = vld [vmem:[#allocation6 + $0x198] sm:$0xff]
    %v835 = vld [vmem:[#allocation6 + $0x1a0] sm:$0xff]
    %v836 = vld [vmem:[#allocation6 + $0x1a8] sm:$0xff]
    %v837 = vld [vmem:[#allocation6 + $0x1b0] sm:$0xff]
    %v838 = vld [vmem:[#allocation6 + $0x1b8] sm:$0xff]
    %v839 = vld [vmem:[#allocation6 + $0x1c0] sm:$0xff]
    %v840 = vld [vmem:[#allocation6 + $0x1c8] sm:$0xff]
    %v841 = vld [vmem:[#allocation6 + $0x1d0] sm:$0xff]
    %v842 = vld [vmem:[#allocation6 + $0x1d8] sm:$0xff]
    %v843 = vld [vmem:[#allocation6 + $0x1e0] sm:$0xff]
    %v844 = vld [vmem:[#allocation6 + $0x1e8] sm:$0xff]
    %v845 = vld [vmem:[#allocation6 + $0x1f0] sm:$0xff]
    %v846 = vld [vmem:[#allocation6 + $0x1f8] sm:$0xff]
    %847 = vmatprep.subr.mxu0 %v844
    %848 = vmatpush1.msra.mxu0 %v843
    %849 = vmatprep.subr.mxu0 %v840
    %850 = vmatpush1.msra.mxu0 %v839
    %851 = vmatprep.subr.mxu0 %v836
    %852 = vmatpush1.msra.mxu0 %v835
    %853 = vmatprep.subr.mxu0 %v832
    %854 = vmatpush1.msra.mxu0 %v831
    %855 = vmatprep.subr.mxu0 %v828
    %856 = vmatpush1.msra.mxu0 %v827
    %857 = vmatprep.subr.mxu0 %v824
    %858 = vmatpush1.msra.mxu0 %v823
    %859 = vmatprep.subr.mxu0 %v820
    %860 = vmatpush1.msra.mxu0 %v819
    %861 = vmatprep.subr.mxu0 %v816
    %862 = vmatpush1.msra.mxu0 %v815
    %863 = vmatprep.subr.mxu0 %v812
    %864 = vmatpush1.msra.mxu0 %v811
    %865 = vmatprep.subr.mxu0 %v808
    %866 = vmatpush1.msra.mxu0 %v807
    %867 = vmatprep.subr.mxu0 %v804
    %868 = vmatpush1.msra.mxu0 %v803
    %869 = vmatprep.subr.mxu0 %v800
    %870 = vmatpush1.msra.mxu0 %v799
    %871 = vmatprep.subr.mxu0 %v796
    %872 = vmatpush1.msra.mxu0 %v795
    %873 = vmatprep.subr.mxu0 %v792
    %874 = vmatpush1.msra.mxu0 %v791
    %875 = vmatprep.subr.mxu0 %v788
    %876 = vmatpush1.msra.mxu0 %v787
    %877 = vmatprep.subr.mxu0 %v784
    %878 = vmatpush1.msra.mxu0 %v783
    %879 = vmatprep.subr.mxu0 0.0
    %880 = vmatpush2.msra.mxu0 0.0
    %881 = vmatprep.subr.mxu0 0.0
    %882 = vmatpush2.msra.mxu0 0.0
    %883 = vmatprep.subr.mxu0 0.0
    %884 = vmatpush2.msra.mxu0 0.0
    %885 = vmatprep.subr.mxu0 0.0
    %886 = vmatpush2.msra.mxu0 0.0
    %887 = vmatprep.subr.mxu0 0.0
    %888 = vmatpush2.msra.mxu0 0.0
    %889 = vmatprep.subr.mxu0 0.0
    %890 = vmatpush2.msra.mxu0 0.0
    %891 = vmatprep.subr.mxu0 0.0
    %892 = vmatpush2.msra.mxu0 0.0
    %893 = vmatprep.subr.mxu0 0.0
    %894 = vmatpush2.msra.mxu0 0.0
    %895 = vmatprep.subr.mxu0 0.0
    %896 = vmatpush2.msra.mxu0 0.0
    %897 = vmatprep.subr.mxu0 0.0
    %898 = vmatpush2.msra.mxu0 0.0
    %899 = vmatprep.subr.mxu0 0.0
    %900 = vmatpush2.msra.mxu0 0.0
    %901 = vmatprep.subr.mxu0 0.0
    %902 = vmatpush2.msra.mxu0 0.0
    %903 = vmatprep.subr.mxu0 0.0
    %904 = vmatpush2.msra.mxu0 0.0
    %905 = vmatprep.subr.mxu0 0.0
    %906 = vmatpush2.msra.mxu0 0.0
    %907 = vmatprep.subr.mxu0 0.0
    %908 = vmatpush2.msra.mxu0 0.0
    %909 = vmatprep.subr.mxu0 0.0
    %910 = vmatpush2.msra.mxu0 0.0
    %911 = vmatprep.mubr.f32.mxu0 0.0
    %912 = vmatmul.mubr.f32.gmra.mxu0 0.0
    %v913 = vpop.f32.mrf.mxu0
    %v914 = vadd.f32 0.0, %v913
    %v915 = vpop.f32.mrf.mxu0
    %v916 = vadd.f32 0.0, %v915
    %917 = vdwg.mxu0
    %918 = vmatprep.subr.mxu0 %v846
    %919 = vmatpush1.msra.mxu0 %v845
    %920 = vmatprep.subr.mxu0 %v842
    %921 = vmatpush1.msra.mxu0 %v841
    %922 = vmatprep.subr.mxu0 %v838
    %923 = vmatpush1.msra.mxu0 %v837
    %924 = vmatprep.subr.mxu0 %v834
    %925 = vmatpush1.msra.mxu0 %v833
    %926 = vmatprep.subr.mxu0 %v830
    %927 = vmatpush1.msra.mxu0 %v829
    %928 = vmatprep.subr.mxu0 %v826
    %929 = vmatpush1.msra.mxu0 %v825
    %930 = vmatprep.subr.mxu0 %v822
    %931 = vmatpush1.msra.mxu0 %v821
    %932 = vmatprep.subr.mxu0 %v818
    %933 = vmatpush1.msra.mxu0 %v817
    %934 = vmatprep.subr.mxu0 %v814
    %935 = vmatpush1.msra.mxu0 %v813
    %936 = vmatprep.subr.mxu0 %v810
    %937 = vmatpush1.msra.mxu0 %v809
    %938 = vmatprep.subr.mxu0 %v806
    %939 = vmatpush1.msra.mxu0 %v805
    %940 = vmatprep.subr.mxu0 %v802
    %941 = vmatpush1.msra.mxu0 %v801
    %942 = vmatprep.subr.mxu0 %v798
    %943 = vmatpush1.msra.mxu0 %v797
    %944 = vmatprep.subr.mxu0 %v794
    %945 = vmatpush1.msra.mxu0 %v793
    %946 = vmatprep.subr.mxu0 %v790
    %947 = vmatpush1.msra.mxu0 %v789
    %948 = vmatprep.subr.mxu0 %v786
    %949 = vmatpush1.msra.mxu0 %v785
    %950 = vmatprep.subr.mxu0 0.0
    %951 = vmatpush2.msra.mxu0 0.0
    %952 = vmatprep.subr.mxu0 0.0
    %953 = vmatpush2.msra.mxu0 0.0
    %954 = vmatprep.subr.mxu0 0.0
    %955 = vmatpush2.msra.mxu0 0.0
    %956 = vmatprep.subr.mxu0 0.0
    %957 = vmatpush2.msra.mxu0 0.0
    %958 = vmatprep.subr.mxu0 0.0
    %959 = vmatpush2.msra.mxu0 0.0
    %960 = vmatprep.subr.mxu0 0.0
    %961 = vmatpush2.msra.mxu0 0.0
    %962 = vmatprep.subr.mxu0 0.0
    %963 = vmatpush2.msra.mxu0 0.0
    %964 = vmatprep.subr.mxu0 0.0
    %965 = vmatpush2.msra.mxu0 0.0
    %966 = vmatprep.subr.mxu0 0.0
    %967 = vmatpush2.msra.mxu0 0.0
    %968 = vmatprep.subr.mxu0 0.0
    %969 = vmatpush2.msra.mxu0 0.0
    %970 = vmatprep.subr.mxu0 0.0
    %971 = vmatpush2.msra.mxu0 0.0
    %972 = vmatprep.subr.mxu0 0.0
    %973 = vmatpush2.msra.mxu0 0.0
    %974 = vmatprep.subr.mxu0 0.0
    %975 = vmatpush2.msra.mxu0 0.0
    %976 = vmatprep.subr.mxu0 0.0
    %977 = vmatpush2.msra.mxu0 0.0
    %978 = vmatprep.subr.mxu0 0.0
    %979 = vmatpush2.msra.mxu0 0.0
    %980 = vmatprep.subr.mxu0 0.0
    %981 = vmatpush2.msra.mxu0 0.0
    %982 = vmatprep.mubr.f32.mxu0 0.0
    %983 = vmatmul.mubr.f32.gmra.mxu0 0.0
    %v984 = vpop.f32.mrf.mxu0
    %v985 = vadd.f32 0.0, %v984
    %v986 = vpop.f32.mrf.mxu0
    %v987 = vadd.f32 0.0, %v986
    %988 = vdwg.mxu0
    %v989 = vadd.f32 %v775, %v914
    %v990 = vadd.f32 %v776, %v916
    %v991 = vadd.f32 %v777, %v985
    %v992 = vadd.f32 %v778, %v987
    %v993 = vxor.u32 %v989, 2147483648
    %v994 = vmul.f32 %v993, 1.442695
    %v995 = vpow.pop %v994
    %v996 = vadd.f32 %v995, 1.0
    %v997 = vrcp.pop %v996
    %v998 = vmul.f32 1.0, %v997
    %v999 = vxor.u32 %v990, 2147483648
    %v1000 = vmul.f32 %v999, 1.442695
    %v1001 = vpow.pop %v1000
    %v1002 = vadd.f32 %v1001, 1.0
    %v1003 = vrcp.pop %v1002
    %v1004 = vmul.f32 1.0, %v1003
    %v1005 = vtanh.pop %v991
    %v1006 = vxor.u32 %v992, 2147483648
    %v1007 = vmul.f32 %v1006, 1.442695
    %v1008 = vpow.pop %v1007
    %v1009 = vadd.f32 %v1008, 1.0
    %v1010 = vrcp.pop %v1009
    %v1011 = vmul.f32 1.0, %v1010
    %v1012 = vmul.f32 %v1004, 0.0
    %v1013 = vmul.f32 %v998, %v1005
    %v1014 = vadd.f32 %v1012, %v1013
    %v1015 = vtanh.pop %v1014
    %v1016 = vmul.f32 %v1011, %v1015
    %v1017 = vld [vmem:[#allocation8] sm:$0xff]
    %v1018 = vld [vmem:[#allocation8 + $0x8] sm:$0xff]
    %v1019 = vld [vmem:[#allocation8 + $0x10] sm:$0xff]
    %v1020 = vld [vmem:[#allocation8 + $0x18] sm:$0xff]
    %v1021 = vld [vmem:[#allocation8 + $0x20] sm:$0xff]
    %v1022 = vld [vmem:[#allocation8 + $0x28] sm:$0xff]
    %v1023 = vld [vmem:[#allocation8 + $0x30] sm:$0xff]
    %v1024 = vld [vmem:[#allocation8 + $0x38] sm:$0xff]
    %v1025 = vld [vmem:[#allocation8 + $0x40] sm:$0xff]
    %v1026 = vld [vmem:[#allocation8 + $0x48] sm:$0xff]
    %v1027 = vld [vmem:[#allocation8 + $0x50] sm:$0xff]
    %v1028 = vld [vmem:[#allocation8 + $0x58] sm:$0xff]
    %v1029 = vld [vmem:[#allocation8 + $0x60] sm:$0xff]
    %v1030 = vld [vmem:[#allocation8 + $0x68] sm:$0xff]
    %v1031 = vld [vmem:[#allocation8 + $0x70] sm:$0xff]
    %v1032 = vld [vmem:[#allocation8 + $0x78] sm:$0xff]
    %v1033 = vld [vmem:[#allocation8 + $0x80] sm:$0xff]
    %v1034 = vld [vmem:[#allocation8 + $0x88] sm:$0xff]
    %v1035 = vld [vmem:[#allocation8 + $0x90] sm:$0xff]
    %v1036 = vld [vmem:[#allocation8 + $0x98] sm:$0xff]
    %v1037 = vld [vmem:[#allocation8 + $0xa0] sm:$0xff]
    %v1038 = vld [vmem:[#allocation8 + $0xa8] sm:$0xff]
    %v1039 = vld [vmem:[#allocation8 + $0xb0] sm:$0xff]
    %v1040 = vld [vmem:[#allocation8 + $0xb8] sm:$0xff]
    %v1041 = vld [vmem:[#allocation8 + $0xc0] sm:$0xff]
    %v1042 = vld [vmem:[#allocation8 + $0xc8] sm:$0xff]
    %v1043 = vld [vmem:[#allocation8 + $0xd0] sm:$0xff]
    %v1044 = vld [vmem:[#allocation8 + $0xd8] sm:$0xff]
    %v1045 = vld [vmem:[#allocation8 + $0xe0] sm:$0xff]
    %v1046 = vld [vmem:[#allocation8 + $0xe8] sm:$0xff]
    %v1047 = vld [vmem:[#allocation8 + $0xf0] sm:$0xff]
    %v1048 = vld [vmem:[#allocation8 + $0xf8] sm:$0xff]
    %v1049 = vld [vmem:[#allocation8 + $0x100] sm:$0xff]
    %v1050 = vld [vmem:[#allocation8 + $0x108] sm:$0xff]
    %v1051 = vld [vmem:[#allocation8 + $0x110] sm:$0xff]
    %v1052 = vld [vmem:[#allocation8 + $0x118] sm:$0xff]
    %v1053 = vld [vmem:[#allocation8 + $0x120] sm:$0xff]
    %v1054 = vld [vmem:[#allocation8 + $0x128] sm:$0xff]
    %v1055 = vld [vmem:[#allocation8 + $0x130] sm:$0xff]
    %v1056 = vld [vmem:[#allocation8 + $0x138] sm:$0xff]
    %v1057 = vld [vmem:[#allocation8 + $0x140] sm:$0xff]
    %v1058 = vld [vmem:[#allocation8 + $0x148] sm:$0xff]
    %v1059 = vld [vmem:[#allocation8 + $0x150] sm:$0xff]
    %v1060 = vld [vmem:[#allocation8 + $0x158] sm:$0xff]
    %v1061 = vld [vmem:[#allocation8 + $0x160] sm:$0xff]
    %v1062 = vld [vmem:[#allocation8 + $0x168] sm:$0xff]
    %v1063 = vld [vmem:[#allocation8 + $0x170] sm:$0xff]
    %v1064 = vld [vmem:[#allocation8 + $0x178] sm:$0xff]
    %v1065 = vld [vmem:[#allocation8 + $0x180] sm:$0xff]
    %v1066 = vld [vmem:[#allocation8 + $0x188] sm:$0xff]
    %v1067 = vld [vmem:[#allocation8 + $0x190] sm:$0xff]
    %v1068 = vld [vmem:[#allocation8 + $0x198] sm:$0xff]
    %v1069 = vld [vmem:[#allocation8 + $0x1a0] sm:$0xff]
    %v1070 = vld [vmem:[#allocation8 + $0x1a8] sm:$0xff]
    %v1071 = vld [vmem:[#allocation8 + $0x1b0] sm:$0xff]
    %v1072 = vld [vmem:[#allocation8 + $0x1b8] sm:$0xff]
    %v1073 = vld [vmem:[#allocation8 + $0x1c0] sm:$0xff]
    %v1074 = vld [vmem:[#allocation8 + $0x1c8] sm:$0xff]
    %v1075 = vld [vmem:[#allocation8 + $0x1d0] sm:$0xff]
    %v1076 = vld [vmem:[#allocation8 + $0x1d8] sm:$0xff]
    %v1077 = vld [vmem:[#allocation8 + $0x1e0] sm:$0xff]
    %v1078 = vld [vmem:[#allocation8 + $0x1e8] sm:$0xff]
    %v1079 = vld [vmem:[#allocation8 + $0x1f0] sm:$0xff]
    %v1080 = vld [vmem:[#allocation8 + $0x1f8] sm:$0xff]
    %1081 = vmatprep.subr.mxu0 %v1078
    %1082 = vmatpush1.msra.mxu0 %v1077
    %1083 = vmatprep.subr.mxu0 %v1074
    %1084 = vmatpush1.msra.mxu0 %v1073
    %1085 = vmatprep.subr.mxu0 %v1070
    %1086 = vmatpush1.msra.mxu0 %v1069
    %1087 = vmatprep.subr.mxu0 %v1066
    %1088 = vmatpush1.msra.mxu0 %v1065
    %1089 = vmatprep.subr.mxu0 %v1062
    %1090 = vmatpush1.msra.mxu0 %v1061
    %1091 = vmatprep.subr.mxu0 %v1058
    %1092 = vmatpush1.msra.mxu0 %v1057
    %1093 = vmatprep.subr.mxu0 %v1054
    %1094 = vmatpush1.msra.mxu0 %v1053
    %1095 = vmatprep.subr.mxu0 %v1050
    %1096 = vmatpush1.msra.mxu0 %v1049
    %1097 = vmatprep.subr.mxu0 %v1046
    %1098 = vmatpush1.msra.mxu0 %v1045
    %1099 = vmatprep.subr.mxu0 %v1042
    %1100 = vmatpush1.msra.mxu0 %v1041
    %1101 = vmatprep.subr.mxu0 %v1038
    %1102 = vmatpush1.msra.mxu0 %v1037
    %1103 = vmatprep.subr.mxu0 %v1034
    %1104 = vmatpush1.msra.mxu0 %v1033
    %1105 = vmatprep.subr.mxu0 %v1030
    %1106 = vmatpush1.msra.mxu0 %v1029
    %1107 = vmatprep.subr.mxu0 %v1026
    %1108 = vmatpush1.msra.mxu0 %v1025
    %1109 = vmatprep.subr.mxu0 %v1022
    %1110 = vmatpush1.msra.mxu0 %v1021
    %1111 = vmatprep.subr.mxu0 %v1018
    %1112 = vmatpush1.msra.mxu0 %v1017
    %1113 = vmatprep.subr.mxu0 0.0
    %1114 = vmatpush2.msra.mxu0 0.0
    %1115 = vmatprep.subr.mxu0 0.0
    %1116 = vmatpush2.msra.mxu0 0.0
    %1117 = vmatprep.subr.mxu0 0.0
    %1118 = vmatpush2.msra.mxu0 0.0
    %1119 = vmatprep.subr.mxu0 0.0
    %1120 = vmatpush2.msra.mxu0 0.0
    %1121 = vmatprep.subr.mxu0 0.0
    %1122 = vmatpush2.msra.mxu0 0.0
    %1123 = vmatprep.subr.mxu0 0.0
    %1124 = vmatpush2.msra.mxu0 0.0
    %1125 = vmatprep.subr.mxu0 0.0
    %1126 = vmatpush2.msra.mxu0 0.0
    %1127 = vmatprep.subr.mxu0 0.0
    %1128 = vmatpush2.msra.mxu0 0.0
    %1129 = vmatprep.subr.mxu0 0.0
    %1130 = vmatpush2.msra.mxu0 0.0
    %1131 = vmatprep.subr.mxu0 0.0
    %1132 = vmatpush2.msra.mxu0 0.0
    %1133 = vmatprep.subr.mxu0 0.0
    %1134 = vmatpush2.msra.mxu0 0.0
    %1135 = vmatprep.subr.mxu0 0.0
    %1136 = vmatpush2.msra.mxu0 0.0
    %1137 = vmatprep.subr.mxu0 0.0
    %1138 = vmatpush2.msra.mxu0 0.0
    %1139 = vmatprep.subr.mxu0 0.0
    %1140 = vmatpush2.msra.mxu0 0.0
    %1141 = vmatprep.subr.mxu0 0.0
    %1142 = vmatpush2.msra.mxu0 0.0
    %1143 = vmatprep.subr.mxu0 0.0
    %1144 = vmatpush2.msra.mxu0 0.0
    %1145 = vmatprep.mubr.f32.mxu0 0.0
    %1146 = vmatmul.mubr.f32.gmra.mxu0 0.0
    %v1147 = vpop.f32.mrf.mxu0
    %v1148 = vadd.f32 0.0, %v1147
    %v1149 = vpop.f32.mrf.mxu0
    %v1150 = vadd.f32 0.0, %v1149
    %1151 = vdwg.mxu0
    %1152 = vmatprep.subr.mxu0 %v1080
    %1153 = vmatpush1.msra.mxu0 %v1079
    %1154 = vmatprep.subr.mxu0 %v1076
    %1155 = vmatpush1.msra.mxu0 %v1075
    %1156 = vmatprep.subr.mxu0 %v1072
    %1157 = vmatpush1.msra.mxu0 %v1071
    %1158 = vmatprep.subr.mxu0 %v1068
    %1159 = vmatpush1.msra.mxu0 %v1067
    %1160 = vmatprep.subr.mxu0 %v1064
    %1161 = vmatpush1.msra.mxu0 %v1063
    %1162 = vmatprep.subr.mxu0 %v1060
    %1163 = vmatpush1.msra.mxu0 %v1059
    %1164 = vmatprep.subr.mxu0 %v1056
    %1165 = vmatpush1.msra.mxu0 %v1055
    %1166 = vmatprep.subr.mxu0 %v1052
    %1167 = vmatpush1.msra.mxu0 %v1051
    %1168 = vmatprep.subr.mxu0 %v1048
    %1169 = vmatpush1.msra.mxu0 %v1047
    %1170 = vmatprep.subr.mxu0 %v1044
    %1171 = vmatpush1.msra.mxu0 %v1043
    %1172 = vmatprep.subr.mxu0 %v1040
    %1173 = vmatpush1.msra.mxu0 %v1039
    %1174 = vmatprep.subr.mxu0 %v1036
    %1175 = vmatpush1.msra.mxu0 %v1035
    %1176 = vmatprep.subr.mxu0 %v1032
    %1177 = vmatpush1.msra.mxu0 %v1031
    %1178 = vmatprep.subr.mxu0 %v1028
    %1179 = vmatpush1.msra.mxu0 %v1027
    %1180 = vmatprep.subr.mxu0 %v1024
    %1181 = vmatpush1.msra.mxu0 %v1023
    %1182 = vmatprep.subr.mxu0 %v1020
    %1183 = vmatpush1.msra.mxu0 %v1019
    %1184 = vmatprep.subr.mxu0 0.0
    %1185 = vmatpush2.msra.mxu0 0.0
    %1186 = vmatprep.subr.mxu0 0.0
    %1187 = vmatpush2.msra.mxu0 0.0
    %1188 = vmatprep.subr.mxu0 0.0
    %1189 = vmatpush2.msra.mxu0 0.0
    %1190 = vmatprep.subr.mxu0 0.0
    %1191 = vmatpush2.msra.mxu0 0.0
    %1192 = vmatprep.subr.mxu0 0.0
    %1193 = vmatpush2.msra.mxu0 0.0
    %1194 = vmatprep.subr.mxu0 0.0
    %1195 = vmatpush2.msra.mxu0 0.0
    %1196 = vmatprep.subr.mxu0 0.0
    %1197 = vmatpush2.msra.mxu0 0.0
    %1198 = vmatprep.subr.mxu0 0.0
    %1199 = vmatpush2.msra.mxu0 0.0
    %1200 = vmatprep.subr.mxu0 0.0
    %1201 = vmatpush2.msra.mxu0 0.0
    %1202 = vmatprep.subr.mxu0 0.0
    %1203 = vmatpush2.msra.mxu0 0.0
    %1204 = vmatprep.subr.mxu0 0.0
    %1205 = vmatpush2.msra.mxu0 0.0
    %1206 = vmatprep.subr.mxu0 0.0
    %1207 = vmatpush2.msra.mxu0 0.0
    %1208 = vmatprep.subr.mxu0 0.0
    %1209 = vmatpush2.msra.mxu0 0.0
    %1210 = vmatprep.subr.mxu0 0.0
    %1211 = vmatpush2.msra.mxu0 0.0
    %1212 = vmatprep.subr.mxu0 0.0
    %1213 = vmatpush2.msra.mxu0 0.0
    %1214 = vmatprep.subr.mxu0 0.0
    %1215 = vmatpush2.msra.mxu0 0.0
    %1216 = vmatprep.mubr.f32.mxu0 0.0
    %1217 = vmatmul.mubr.f32.gmra.mxu0 0.0
    %v1218 = vpop.f32.mrf.mxu0
    %v1219 = vadd.f32 0.0, %v1218
    %v1220 = vpop.f32.mrf.mxu0
    %v1221 = vadd.f32 0.0, %v1220
    %1222 = vdwg.mxu0
    %v1223 = vadd.f32 %v779, %v1148
    %v1224 = vadd.f32 %v780, %v1150
    %v1225 = vadd.f32 %v781, %v1219
    %v1226 = vadd.f32 %v782, %v1221
    %v1227 = vxor.u32 %v1223, 2147483648
    %v1228 = vmul.f32 %v1227, 1.442695
    %v1229 = vpow.pop %v1228
    %v1230 = vadd.f32 %v1229, 1.0
    %v1231 = vrcp.pop %v1230
    %v1232 = vmul.f32 1.0, %v1231
    %v1233 = vxor.u32 %v1224, 2147483648
    %v1234 = vmul.f32 %v1233, 1.442695
    %v1235 = vpow.pop %v1234
    %v1236 = vadd.f32 %v1235, 1.0
    %v1237 = vrcp.pop %v1236
    %v1238 = vmul.f32 1.0, %v1237
    %v1239 = vtanh.pop %v1225
    %v1240 = vxor.u32 %v1226, 2147483648
    %v1241 = vmul.f32 %v1240, 1.442695
    %v1242 = vpow.pop %v1241
    %v1243 = vadd.f32 %v1242, 1.0
    %v1244 = vrcp.pop %v1243
    %v1245 = vmul.f32 1.0, %v1244
    %v1246 = vmul.f32 %v1238, 0.0
    %v1247 = vmul.f32 %v1232, %v1239
    %v1248 = vadd.f32 %v1246, %v1247
    %v1249 = vtanh.pop %v1248
    %v1250 = vmul.f32 %v1245, %v1249
    %1251 = vst [vmem:[#allocation3] sm:$0xff] %v1016
    %1252 = vst [vmem:[#allocation3 + $0x78] sm:$0xff] %v1250
    %v1253 = vld [vmem:[#allocation2 + $0x40] sm:$0xff]
    %v1254 = vld [vmem:[#allocation2 + $0x48] sm:$0xff]
    %v1255 = vld [vmem:[#allocation2 + $0x50] sm:$0xff]
    %v1256 = vld [vmem:[#allocation2 + $0x58] sm:$0xff]
    %v1257 = vld [vmem:[#allocation2 + $0x1a0] sm:$0xff]
    %v1258 = vld [vmem:[#allocation2 + $0x1a8] sm:$0xff]
    %v1259 = vld [vmem:[#allocation2 + $0x1b0] sm:$0xff]
    %v1260 = vld [vmem:[#allocation2 + $0x1b8] sm:$0xff]
    %v1261 = vld [vmem:[#allocation6] sm:$0xff]
    %v1262 = vld [vmem:[#allocation6 + $0x8] sm:$0xff]
    %v1263 = vld [vmem:[#allocation6 + $0x10] sm:$0xff]
    %v1264 = vld [vmem:[#allocation6 + $0x18] sm:$0xff]
    %v1265 = vld [vmem:[#allocation6 + $0x20] sm:$0xff]
    %v1266 = vld [vmem:[#allocation6 + $0x28] sm:$0xff]
    %v1267 = vld [vmem:[#allocation6 + $0x30] sm:$0xff]
    %v1268 = vld [vmem:[#allocation6 + $0x38] sm:$0xff]
    %v1269 = vld [vmem:[#allocation6 + $0x40] sm:$0xff]
    %v1270 = vld [vmem:[#allocation6 + $0x48] sm:$0xff]
    %v1271 = vld [vmem:[#allocation6 + $0x50] sm:$0xff]
    %v1272 = vld [vmem:[#allocation6 + $0x58] sm:$0xff]
    %v1273 = vld [vmem:[#allocation6 + $0x60] sm:$0xff]
    %v1274 = vld [vmem:[#allocation6 + $0x68] sm:$0xff]
    %v1275 = vld [vmem:[#allocation6 + $0x70] sm:$0xff]
    %v1276 = vld [vmem:[#allocation6 + $0x78] sm:$0xff]
    %v1277 = vld [vmem:[#allocation6 + $0x80] sm:$0xff]
    %v1278 = vld [vmem:[#allocation6 + $0x88] sm:$0xff]
    %v1279 = vld [vmem:[#allocation6 + $0x90] sm:$0xff]
    %v1280 = vld [vmem:[#allocation6 + $0x98] sm:$0xff]
    %v1281 = vld [vmem:[#allocation6 + $0xa0] sm:$0xff]
    %v1282 = vld [vmem:[#allocation6 + $0xa8] sm:$0xff]
    %v1283 = vld [vmem:[#allocation6 + $0xb0] sm:$0xff]
    %v1284 = vld [vmem:[#allocation6 + $0xb8] sm:$0xff]
    %v1285 = vld [vmem:[#allocation6 + $0xc0] sm:$0xff]
    %v1286 = vld [vmem:[#allocation6 + $0xc8] sm:$0xff]
    %v1287 = vld [vmem:[#allocation6 + $0xd0] sm:$0xff]
    %v1288 = vld [vmem:[#allocation6 + $0xd8] sm:$0xff]
    %v1289 = vld [vmem:[#allocation6 + $0xe0] sm:$0xff]
    %v1290 = vld [vmem:[#allocation6 + $0xe8] sm:$0xff]
    %v1291 = vld [vmem:[#allocation6 + $0xf0] sm:$0xff]
    %v1292 = vld [vmem:[#allocation6 + $0xf8] sm:$0xff]
    %v1293 = vld [vmem:[#allocation6 + $0x100] sm:$0xff]
    %v1294 = vld [vmem:[#allocation6 + $0x108] sm:$0xff]
    %v1295 = vld [vmem:[#allocation6 + $0x110] sm:$0xff]
    %v1296 = vld [vmem:[#allocation6 + $0x118] sm:$0xff]
    %v1297 = vld [vmem:[#allocation6 + $0x120] sm:$0xff]
    %v1298 = vld [vmem:[#allocation6 + $0x128] sm:$0xff]
    %v1299 = vld [vmem:[#allocation6 + $0x130] sm:$0xff]
    %v1300 = vld [vmem:[#allocation6 + $0x138] sm:$0xff]
    %v1301 = vld [vmem:[#allocation6 + $0x140] sm:$0xff]
    %v1302 = vld [vmem:[#allocation6 + $0x148] sm:$0xff]
    %v1303 = vld [vmem:[#allocation6 + $0x150] sm:$0xff]
    %v1304 = vld [vmem:[#allocation6 + $0x158] sm:$0xff]
    %v1305 = vld [vmem:[#allocation6 + $0x160] sm:$0xff]
    %v1306 = vld [vmem:[#allocation6 + $0x168] sm:$0xff]
    %v1307 = vld [vmem:[#allocation6 + $0x170] sm:$0xff]
    %v1308 = vld [vmem:[#allocation6 + $0x178] sm:$0xff]
    %v1309 = vld [vmem:[#allocation6 + $0x180] sm:$0xff]
    %v1310 = vld [vmem:[#allocation6 + $0x188] sm:$0xff]
    %v1311 = vld [vmem:[#allocation6 + $0x190] sm:$0xff]
    %v1312 = vld [vmem:[#allocation6 + $0x198] sm:$0xff]
    %v1313 = vld [vmem:[#allocation6 + $0x1a0] sm:$0xff]
    %v1314 = vld [vmem:[#allocation6 + $0x1a8] sm:$0xff]
    %v1315 = vld [vmem:[#allocation6 + $0x1b0] sm:$0xff]
    %v1316 = vld [vmem:[#allocation6 + $0x1b8] sm:$0xff]
    %v1317 = vld [vmem:[#allocation6 + $0x1c0] sm:$0xff]
    %v1318 = vld [vmem:[#allocation6 + $0x1c8] sm:$0xff]
    %v1319 = vld [vmem:[#allocation6 + $0x1d0] sm:$0xff]
    %v1320 = vld [vmem:[#allocation6 + $0x1d8] sm:$0xff]
    %v1321 = vld [vmem:[#allocation6 + $0x1e0] sm:$0xff]
    %v1322 = vld [vmem:[#allocation6 + $0x1e8] sm:$0xff]
    %v1323 = vld [vmem:[#allocation6 + $0x1f0] sm:$0xff]
    %v1324 = vld [vmem:[#allocation6 + $0x1f8] sm:$0xff]
    %1325 = vmatprep.subr.mxu0 %v1322
    %1326 = vmatpush1.msra.mxu0 %v1321
    %1327 = vmatprep.subr.mxu0 %v1318
    %1328 = vmatpush1.msra.mxu0 %v1317
    %1329 = vmatprep.subr.mxu0 %v1314
    %1330 = vmatpush1.msra.mxu0 %v1313
    %1331 = vmatprep.subr.mxu0 %v1310
    %1332 = vmatpush1.msra.mxu0 %v1309
    %1333 = vmatprep.subr.mxu0 %v1306
    %1334 = vmatpush1.msra.mxu0 %v1305
    %1335 = vmatprep.subr.mxu0 %v1302
    %1336 = vmatpush1.msra.mxu0 %v1301
    %1337 = vmatprep.subr.mxu0 %v1298
    %1338 = vmatpush1.msra.mxu0 %v1297
    %1339 = vmatprep.subr.mxu0 %v1294
    %1340 = vmatpush1.msra.mxu0 %v1293
    %1341 = vmatprep.subr.mxu0 %v1290
    %1342 = vmatpush1.msra.mxu0 %v1289
    %1343 = vmatprep.subr.mxu0 %v1286
    %1344 = vmatpush1.msra.mxu0 %v1285
    %1345 = vmatprep.subr.mxu0 %v1282
    %1346 = vmatpush1.msra.mxu0 %v1281
    %1347 = vmatprep.subr.mxu0 %v1278
    %1348 = vmatpush1.msra.mxu0 %v1277
    %1349 = vmatprep.subr.mxu0 %v1274
    %1350 = vmatpush1.msra.mxu0 %v1273
    %1351 = vmatprep.subr.mxu0 %v1270
    %1352 = vmatpush1.msra.mxu0 %v1269
    %1353 = vmatprep.subr.mxu0 %v1266
    %1354 = vmatpush1.msra.mxu0 %v1265
    %1355 = vmatprep.subr.mxu0 %v1262
    %1356 = vmatpush1.msra.mxu0 %v1261
    %1357 = vmatprep.subr.mxu0 0.0
    %1358 = vmatpush2.msra.mxu0 0.0
    %1359 = vmatprep.subr.mxu0 0.0
    %1360 = vmatpush2.msra.mxu0 0.0
    %1361 = vmatprep.subr.mxu0 0.0
    %1362 = vmatpush2.msra.mxu0 0.0
    %1363 = vmatprep.subr.mxu0 0.0
    %1364 = vmatpush2.msra.mxu0 0.0
    %1365 = vmatprep.subr.mxu0 0.0
    %1366 = vmatpush2.msra.mxu0 0.0
    %1367 = vmatprep.subr.mxu0 0.0
    %1368 = vmatpush2.msra.mxu0 0.0
    %1369 = vmatprep.subr.mxu0 0.0
    %1370 = vmatpush2.msra.mxu0 0.0
    %1371 = vmatprep.subr.mxu0 0.0
    %1372 = vmatpush2.msra.mxu0 0.0
    %1373 = vmatprep.subr.mxu0 0.0
    %1374 = vmatpush2.msra.mxu0 0.0
    %1375 = vmatprep.subr.mxu0 0.0
    %1376 = vmatpush2.msra.mxu0 0.0
    %1377 = vmatprep.subr.mxu0 0.0
    %1378 = vmatpush2.msra.mxu0 0.0
    %1379 = vmatprep.subr.mxu0 0.0
    %1380 = vmatpush2.msra.mxu0 0.0
    %1381 = vmatprep.subr.mxu0 0.0
    %1382 = vmatpush2.msra.mxu0 0.0
    %1383 = vmatprep.subr.mxu0 0.0
    %1384 = vmatpush2.msra.mxu0 0.0
    %1385 = vmatprep.subr.mxu0 0.0
    %1386 = vmatpush2.msra.mxu0 0.0
    %1387 = vmatprep.subr.mxu0 0.0
    %1388 = vmatpush2.msra.mxu0 0.0
    %1389 = vmatprep.mubr.f32.mxu0 0.0
    %1390 = vmatmul.mubr.f32.gmra.mxu0 %v1016
    %v1391 = vpop.f32.mrf.mxu0
    %v1392 = vadd.f32 0.0, %v1391
    %v1393 = vpop.f32.mrf.mxu0
    %v1394 = vadd.f32 0.0, %v1393
    %1395 = vdwg.mxu0
    %1396 = vmatprep.subr.mxu0 %v1324
    %1397 = vmatpush1.msra.mxu0 %v1323
    %1398 = vmatprep.subr.mxu0 %v1320
    %1399 = vmatpush1.msra.mxu0 %v1319
    %1400 = vmatprep.subr.mxu0 %v1316
    %1401 = vmatpush1.msra.mxu0 %v1315
    %1402 = vmatprep.subr.mxu0 %v1312
    %1403 = vmatpush1.msra.mxu0 %v1311
    %1404 = vmatprep.subr.mxu0 %v1308
    %1405 = vmatpush1.msra.mxu0 %v1307
    %1406 = vmatprep.subr.mxu0 %v1304
    %1407 = vmatpush1.msra.mxu0 %v1303
    %1408 = vmatprep.subr.mxu0 %v1300
    %1409 = vmatpush1.msra.mxu0 %v1299
    %1410 = vmatprep.subr.mxu0 %v1296
    %1411 = vmatpush1.msra.mxu0 %v1295
    %1412 = vmatprep.subr.mxu0 %v1292
    %1413 = vmatpush1.msra.mxu0 %v1291
    %1414 = vmatprep.subr.mxu0 %v1288
    %1415 = vmatpush1.msra.mxu0 %v1287
    %1416 = vmatprep.subr.mxu0 %v1284
    %1417 = vmatpush1.msra.mxu0 %v1283
    %1418 = vmatprep.subr.mxu0 %v1280
    %1419 = vmatpush1.msra.mxu0 %v1279
    %1420 = vmatprep.subr.mxu0 %v1276
    %1421 = vmatpush1.msra.mxu0 %v1275
    %1422 = vmatprep.subr.mxu0 %v1272
    %1423 = vmatpush1.msra.mxu0 %v1271
    %1424 = vmatprep.subr.mxu0 %v1268
    %1425 = vmatpush1.msra.mxu0 %v1267
    %1426 = vmatprep.subr.mxu0 %v1264
    %1427 = vmatpush1.msra.mxu0 %v1263
    %1428 = vmatprep.subr.mxu0 0.0
    %1429 = vmatpush2.msra.mxu0 0.0
    %1430 = vmatprep.subr.mxu0 0.0
    %1431 = vmatpush2.msra.mxu0 0.0
    %1432 = vmatprep.subr.mxu0 0.0
    %1433 = vmatpush2.msra.mxu0 0.0
    %1434 = vmatprep.subr.mxu0 0.0
    %1435 = vmatpush2.msra.mxu0 0.0
    %1436 = vmatprep.subr.mxu0 0.0
    %1437 = vmatpush2.msra.mxu0 0.0
    %1438 = vmatprep.subr.mxu0 0.0
    %1439 = vmatpush2.msra.mxu0 0.0
    %1440 = vmatprep.subr.mxu0 0.0
    %1441 = vmatpush2.msra.mxu0 0.0
    %1442 = vmatprep.subr.mxu0 0.0
    %1443 = vmatpush2.msra.mxu0 0.0
    %1444 = vmatprep.subr.mxu0 0.0
    %1445 = vmatpush2.msra.mxu0 0.0
    %1446 = vmatprep.subr.mxu0 0.0
    %1447 = vmatpush2.msra.mxu0 0.0
    %1448 = vmatprep.subr.mxu0 0.0
    %1449 = vmatpush2.msra.mxu0 0.0
    %1450 = vmatprep.subr.mxu0 0.0
    %1451 = vmatpush2.msra.mxu0 0.0
    %1452 = vmatprep.subr.mxu0 0.0
    %1453 = vmatpush2.msra.mxu0 0.0
    %1454 = vmatprep.subr.mxu0 0.0
    %1455 = vmatpush2.msra.mxu0 0.0
    %1456 = vmatprep.subr.mxu0 0.0
    %1457 = vmatpush2.msra.mxu0 0.0
    %1458 = vmatprep.subr.mxu0 0.0
    %1459 = vmatpush2.msra.mxu0 0.0
    %1460 = vmatprep.mubr.f32.mxu0 0.0
    %1461 = vmatmul.mubr.f32.gmra.mxu0 %v1016
    %v1462 = vpop.f32.mrf.mxu0
    %v1463 = vadd.f32 0.0, %v1462
    %v1464 = vpop.f32.mrf.mxu0
    %v1465 = vadd.f32 0.0, %v1464
    %1466 = vdwg.mxu0
    %v1467 = vadd.f32 %v1253, %v1392
    %v1468 = vadd.f32 %v1254, %v1394
    %v1469 = vadd.f32 %v1255, %v1463
    %v1470 = vadd.f32 %v1256, %v1465
    %v1471 = vxor.u32 %v1467, 2147483648
    %v1472 = vmul.f32 %v1471, 1.442695
    %v1473 = vpow.pop %v1472
    %v1474 = vadd.f32 %v1473, 1.0
    %v1475 = vrcp.pop %v1474
    %v1476 = vmul.f32 1.0, %v1475
    %v1477 = vxor.u32 %v1468, 2147483648
    %v1478 = vmul.f32 %v1477, 1.442695
    %v1479 = vpow.pop %v1478
    %v1480 = vadd.f32 %v1479, 1.0
    %v1481 = vrcp.pop %v1480
    %v1482 = vmul.f32 1.0, %v1481
    %v1483 = vtanh.pop %v1469
    %v1484 = vxor.u32 %v1470, 2147483648
    %v1485 = vmul.f32 %v1484, 1.442695
    %v1486 = vpow.pop %v1485
    %v1487 = vadd.f32 %v1486, 1.0
    %v1488 = vrcp.pop %v1487
    %v1489 = vmul.f32 1.0, %v1488
    %v1490 = vmul.f32 %v1482, %v1014
    %v1491 = vmul.f32 %v1476, %v1483
    %v1492 = vadd.f32 %v1490, %v1491
    %v1493 = vtanh.pop %v1492
    %v1494 = vmul.f32 %v1489, %v1493
    %v1495 = vld [vmem:[#allocation8] sm:$0xff]
    %v1496 = vld [vmem:[#allocation8 + $0x8] sm:$0xff]
    %v1497 = vld [vmem:[#allocation8 + $0x10] sm:$0xff]
    %v1498 = vld [vmem:[#allocation8 + $0x18] sm:$0xff]
    %v1499 = vld [vmem:[#allocation8 + $0x20] sm:$0xff]
    %v1500 = vld [vmem:[#allocation8 + $0x28] sm:$0xff]
    %v1501 = vld [vmem:[#allocation8 + $0x30] sm:$0xff]
    %v1502 = vld [vmem:[#allocation8 + $0x38] sm:$0xff]
    %v1503 = vld [vmem:[#allocation8 + $0x40] sm:$0xff]
    %v1504 = vld [vmem:[#allocation8 + $0x48] sm:$0xff]
    %v1505 = vld [vmem:[#allocation8 + $0x50] sm:$0xff]
    %v1506 = vld [vmem:[#allocation8 + $0x58] sm:$0xff]
    %v1507 = vld [vmem:[#allocation8 + $0x60] sm:$0xff]
    %v1508 = vld [vmem:[#allocation8 + $0x68] sm:$0xff]
    %v1509 = vld [vmem:[#allocation8 + $0x70] sm:$0xff]
    %v1510 = vld [vmem:[#allocation8 + $0x78] sm:$0xff]
    %v1511 = vld [vmem:[#allocation8 + $0x80] sm:$0xff]
    %v1512 = vld [vmem:[#allocation8 + $0x88] sm:$0xff]
    %v1513 = vld [vmem:[#allocation8 + $0x90] sm:$0xff]
    %v1514 = vld [vmem:[#allocation8 + $0x98] sm:$0xff]
    %v1515 = vld [vmem:[#allocation8 + $0xa0] sm:$0xff]
    %v1516 = vld [vmem:[#allocation8 + $0xa8] sm:$0xff]
    %v1517 = vld [vmem:[#allocation8 + $0xb0] sm:$0xff]
    %v1518 = vld [vmem:[#allocation8 + $0xb8] sm:$0xff]
    %v1519 = vld [vmem:[#allocation8 + $0xc0] sm:$0xff]
    %v1520 = vld [vmem:[#allocation8 + $0xc8] sm:$0xff]
    %v1521 = vld [vmem:[#allocation8 + $0xd0] sm:$0xff]
    %v1522 = vld [vmem:[#allocation8 + $0xd8] sm:$0xff]
    %v1523 = vld [vmem:[#allocation8 + $0xe0] sm:$0xff]
    %v1524 = vld [vmem:[#allocation8 + $0xe8] sm:$0xff]
    %v1525 = vld [vmem:[#allocation8 + $0xf0] sm:$0xff]
    %v1526 = vld [vmem:[#allocation8 + $0xf8] sm:$0xff]
    %v1527 = vld [vmem:[#allocation8 + $0x100] sm:$0xff]
    %v1528 = vld [vmem:[#allocation8 + $0x108] sm:$0xff]
    %v1529 = vld [vmem:[#allocation8 + $0x110] sm:$0xff]
    %v1530 = vld [vmem:[#allocation8 + $0x118] sm:$0xff]
    %v1531 = vld [vmem:[#allocation8 + $0x120] sm:$0xff]
    %v1532 = vld [vmem:[#allocation8 + $0x128] sm:$0xff]
    %v1533 = vld [vmem:[#allocation8 + $0x130] sm:$0xff]
    %v1534 = vld [vmem:[#allocation8 + $0x138] sm:$0xff]
    %v1535 = vld [vmem:[#allocation8 + $0x140] sm:$0xff]
    %v1536 = vld [vmem:[#allocation8 + $0x148] sm:$0xff]
    %v1537 = vld [vmem:[#allocation8 + $0x150] sm:$0xff]
    %v1538 = vld [vmem:[#allocation8 + $0x158] sm:$0xff]
    %v1539 = vld [vmem:[#allocation8 + $0x160] sm:$0xff]
    %v1540 = vld [vmem:[#allocation8 + $0x168] sm:$0xff]
    %v1541 = vld [vmem:[#allocation8 + $0x170] sm:$0xff]
    %v1542 = vld [vmem:[#allocation8 + $0x178] sm:$0xff]
    %v1543 = vld [vmem:[#allocation8 + $0x180] sm:$0xff]
    %v1544 = vld [vmem:[#allocation8 + $0x188] sm:$0xff]
    %v1545 = vld [vmem:[#allocation8 + $0x190] sm:$0xff]
    %v1546 = vld [vmem:[#allocation8 + $0x198] sm:$0xff]
    %v1547 = vld [vmem:[#allocation8 + $0x1a0] sm:$0xff]
    %v1548 = vld [vmem:[#allocation8 + $0x1a8] sm:$0xff]
    %v1549 = vld [vmem:[#allocation8 + $0x1b0] sm:$0xff]
    %v1550 = vld [vmem:[#allocation8 + $0x1b8] sm:$0xff]
    %v1551 = vld [vmem:[#allocation8 + $0x1c0] sm:$0xff]
    %v1552 = vld [vmem:[#allocation8 + $0x1c8] sm:$0xff]
    %v1553 = vld [vmem:[#allocation8 + $0x1d0] sm:$0xff]
    %v1554 = vld [vmem:[#allocation8 + $0x1d8] sm:$0xff]
    %v1555 = vld [vmem:[#allocation8 + $0x1e0] sm:$0xff]
    %v1556 = vld [vmem:[#allocation8 + $0x1e8] sm:$0xff]
    %v1557 = vld [vmem:[#allocation8 + $0x1f0] sm:$0xff]
    %v1558 = vld [vmem:[#allocation8 + $0x1f8] sm:$0xff]
    %1559 = vmatprep.subr.mxu0 %v1556
    %1560 = vmatpush1.msra.mxu0 %v1555
    %1561 = vmatprep.subr.mxu0 %v1552
    %1562 = vmatpush1.msra.mxu0 %v1551
    %1563 = vmatprep.subr.mxu0 %v1548
    %1564 = vmatpush1.msra.mxu0 %v1547
    %1565 = vmatprep.subr.mxu0 %v1544
    %1566 = vmatpush1.msra.mxu0 %v1543
    %1567 = vmatprep.subr.mxu0 %v1540
    %1568 = vmatpush1.msra.mxu0 %v1539
    %1569 = vmatprep.subr.mxu0 %v1536
    %1570 = vmatpush1.msra.mxu0 %v1535
    %1571 = vmatprep.subr.mxu0 %v1532
    %1572 = vmatpush1.msra.mxu0 %v1531
    %1573 = vmatprep.subr.mxu0 %v1528
    %1574 = vmatpush1.msra.mxu0 %v1527
    %1575 = vmatprep.subr.mxu0 %v1524
    %1576 = vmatpush1.msra.mxu0 %v1523
    %1577 = vmatprep.subr.mxu0 %v1520
    %1578 = vmatpush1.msra.mxu0 %v1519
    %1579 = vmatprep.subr.mxu0 %v1516
    %1580 = vmatpush1.msra.mxu0 %v1515
    %1581 = vmatprep.subr.mxu0 %v1512
    %1582 = vmatpush1.msra.mxu0 %v1511
    %1583 = vmatprep.subr.mxu0 %v1508
    %1584 = vmatpush1.msra.mxu0 %v1507
    %1585 = vmatprep.subr.mxu0 %v1504
    %1586 = vmatpush1.msra.mxu0 %v1503
    %1587 = vmatprep.subr.mxu0 %v1500
    %1588 = vmatpush1.msra.mxu0 %v1499
    %1589 = vmatprep.subr.mxu0 %v1496
    %1590 = vmatpush1.msra.mxu0 %v1495
    %1591 = vmatprep.subr.mxu0 0.0
    %1592 = vmatpush2.msra.mxu0 0.0
    %1593 = vmatprep.subr.mxu0 0.0
    %1594 = vmatpush2.msra.mxu0 0.0
    %1595 = vmatprep.subr.mxu0 0.0
    %1596 = vmatpush2.msra.mxu0 0.0
    %1597 = vmatprep.subr.mxu0 0.0
    %1598 = vmatpush2.msra.mxu0 0.0
    %1599 = vmatprep.subr.mxu0 0.0
    %1600 = vmatpush2.msra.mxu0 0.0
    %1601 = vmatprep.subr.mxu0 0.0
    %1602 = vmatpush2.msra.mxu0 0.0
    %1603 = vmatprep.subr.mxu0 0.0
    %1604 = vmatpush2.msra.mxu0 0.0
    %1605 = vmatprep.subr.mxu0 0.0
    %1606 = vmatpush2.msra.mxu0 0.0
    %1607 = vmatprep.subr.mxu0 0.0
    %1608 = vmatpush2.msra.mxu0 0.0
    %1609 = vmatprep.subr.mxu0 0.0
    %1610 = vmatpush2.msra.mxu0 0.0
    %1611 = vmatprep.subr.mxu0 0.0
    %1612 = vmatpush2.msra.mxu0 0.0
    %1613 = vmatprep.subr.mxu0 0.0
    %1614 = vmatpush2.msra.mxu0 0.0
    %1615 = vmatprep.subr.mxu0 0.0
    %1616 = vmatpush2.msra.mxu0 0.0
    %1617 = vmatprep.subr.mxu0 0.0
    %1618 = vmatpush2.msra.mxu0 0.0
    %1619 = vmatprep.subr.mxu0 0.0
    %1620 = vmatpush2.msra.mxu0 0.0
    %1621 = vmatprep.subr.mxu0 0.0
    %1622 = vmatpush2.msra.mxu0 0.0
    %1623 = vmatprep.mubr.f32.mxu0 0.0
    %1624 = vmatmul.mubr.f32.gmra.mxu0 %v1250
    %v1625 = vpop.f32.mrf.mxu0
    %v1626 = vadd.f32 0.0, %v1625
    %v1627 = vpop.f32.mrf.mxu0
    %v1628 = vadd.f32 0.0, %v1627
    %1629 = vdwg.mxu0
    %1630 = vmatprep.subr.mxu0 %v1558
    %1631 = vmatpush1.msra.mxu0 %v1557
    %1632 = vmatprep.subr.mxu0 %v1554
    %1633 = vmatpush1.msra.mxu0 %v1553
    %1634 = vmatprep.subr.mxu0 %v1550
    %1635 = vmatpush1.msra.mxu0 %v1549
    %1636 = vmatprep.subr.mxu0 %v1546
    %1637 = vmatpush1.msra.mxu0 %v1545
    %1638 = vmatprep.subr.mxu0 %v1542
    %1639 = vmatpush1.msra.mxu0 %v1541
    %1640 = vmatprep.subr.mxu0 %v1538
    %1641 = vmatpush1.msra.mxu0 %v1537
    %1642 = vmatprep.subr.mxu0 %v1534
    %1643 = vmatpush1.msra.mxu0 %v1533
    %1644 = vmatprep.subr.mxu0 %v1530
    %1645 = vmatpush1.msra.mxu0 %v1529
    %1646 = vmatprep.subr.mxu0 %v1526
    %1647 = vmatpush1.msra.mxu0 %v1525
    %1648 = vmatprep.subr.mxu0 %v1522
    %1649 = vmatpush1.msra.mxu0 %v1521
    %1650 = vmatprep.subr.mxu0 %v1518
    %1651 = vmatpush1.msra.mxu0 %v1517
    %1652 = vmatprep.subr.mxu0 %v1514
    %1653 = vmatpush1.msra.mxu0 %v1513
    %1654 = vmatprep.subr.mxu0 %v1510
    %1655 = vmatpush1.msra.mxu0 %v1509
    %1656 = vmatprep.subr.mxu0 %v1506
    %1657 = vmatpush1.msra.mxu0 %v1505
    %1658 = vmatprep.subr.mxu0 %v1502
    %1659 = vmatpush1.msra.mxu0 %v1501
    %1660 = vmatprep.subr.mxu0 %v1498
    %1661 = vmatpush1.msra.mxu0 %v1497
    %1662 = vmatprep.subr.mxu0 0.0
    %1663 = vmatpush2.msra.mxu0 0.0
    %1664 = vmatprep.subr.mxu0 0.0
    %1665 = vmatpush2.msra.mxu0 0.0
    %1666 = vmatprep.subr.mxu0 0.0
    %1667 = vmatpush2.msra.mxu0 0.0
    %1668 = vmatprep.subr.mxu0 0.0
    %1669 = vmatpush2.msra.mxu0 0.0
    %1670 = vmatprep.subr.mxu0 0.0
    %1671 = vmatpush2.msra.mxu0 0.0
    %1672 = vmatprep.subr.mxu0 0.0
    %1673 = vmatpush2.msra.mxu0 0.0
    %1674 = vmatprep.subr.mxu0 0.0
    %1675 = vmatpush2.msra.mxu0 0.0
    %1676 = vmatprep.subr.mxu0 0.0
    %1677 = vmatpush2.msra.mxu0 0.0
    %1678 = vmatprep.subr.mxu0 0.0
    %1679 = vmatpush2.msra.mxu0 0.0
    %1680 = vmatprep.subr.mxu0 0.0
    %1681 = vmatpush2.msra.mxu0 0.0
    %1682 = vmatprep.subr.mxu0 0.0
    %1683 = vmatpush2.msra.mxu0 0.0
    %1684 = vmatprep.subr.mxu0 0.0
    %1685 = vmatpush2.msra.mxu0 0.0
    %1686 = vmatprep.subr.mxu0 0.0
    %1687 = vmatpush2.msra.mxu0 0.0
    %1688 = vmatprep.subr.mxu0 0.0
    %1689 = vmatpush2.msra.mxu0 0.0
    %1690 = vmatprep.subr.mxu0 0.0
    %1691 = vmatpush2.msra.mxu0 0.0
    %1692 = vmatprep.subr.mxu0 0.0
    %1693 = vmatpush2.msra.mxu0 0.0
    %1694 = vmatprep.mubr.f32.mxu0 0.0
    %1695 = vmatmul.mubr.f32.gmra.mxu0 %v1250
    %v1696 = vpop.f32.mrf.mxu0
    %v1697 = vadd.f32 0.0, %v1696
    %v1698 = vpop.f32.mrf.mxu0
    %v1699 = vadd.f32 0.0, %v1698
    %1700 = vdwg.mxu0
    %v1701 = vadd.f32 %v1257, %v1626
    %v1702 = vadd.f32 %v1258, %v1628
    %v1703 = vadd.f32 %v1259, %v1697
    %v1704 = vadd.f32 %v1260, %v1699
    %v1705 = vxor.u32 %v1701, 2147483648
    %v1706 = vmul.f32 %v1705, 1.442695
    %v1707 = vpow.pop %v1706
    %v1708 = vadd.f32 %v1707, 1.0
    %v1709 = vrcp.pop %v1708
    %v1710 = vmul.f32 1.0, %v1709
    %v1711 = vxor.u32 %v1702, 2147483648
    %v1712 = vmul.f32 %v1711, 1.442695
    %v1713 = vpow.pop %v1712
    %v1714 = vadd.f32 %v1713, 1.0
    %v1715 = vrcp.pop %v1714
    %v1716 = vmul.f32 1.0, %v1715
    %v1717 = vtanh.pop %v1703
    %v1718 = vxor.u32 %v1704, 2147483648
    %v1719 = vmul.f32 %v1718, 1.442695
    %v1720 = vpow.pop %v1719
    %v1721 = vadd.f32 %v1720, 1.0
    %v1722 = vrcp.pop %v1721
    %v1723 = vmul.f32 1.0, %v1722
    %v1724 = vmul.f32 %v1716, %v1248
    %v1725 = vmul.f32 %v1710, %v1717
    %v1726 = vadd.f32 %v1724, %v1725
    %v1727 = vtanh.pop %v1726
    %v1728 = vmul.f32 %v1723, %v1727
    %1729 = vst [vmem:[#allocation3 + $0x10] sm:$0xff] %v1494
    %1730 = vst [vmem:[#allocation3 + $0x68] sm:$0xff] %v1728
    %v1731 = vld [vmem:[#allocation2 + $0x80] sm:$0xff]
    %v1732 = vld [vmem:[#allocation2 + $0x88] sm:$0xff]
    %v1733 = vld [vmem:[#allocation2 + $0x90] sm:$0xff]
    %v1734 = vld [vmem:[#allocation2 + $0x98] sm:$0xff]
    %v1735 = vld [vmem:[#allocation2 + $0x160] sm:$0xff]
    %v1736 = vld [vmem:[#allocation2 + $0x168] sm:$0xff]
    %v1737 = vld [vmem:[#allocation2 + $0x170] sm:$0xff]
    %v1738 = vld [vmem:[#allocation2 + $0x178] sm:$0xff]
    %v1739 = vld [vmem:[#allocation6] sm:$0xff]
    %v1740 = vld [vmem:[#allocation6 + $0x8] sm:$0xff]
    %v1741 = vld [vmem:[#allocation6 + $0x10] sm:$0xff]
    %v1742 = vld [vmem:[#allocation6 + $0x18] sm:$0xff]
    %v1743 = vld [vmem:[#allocation6 + $0x20] sm:$0xff]
    %v1744 = vld [vmem:[#allocation6 + $0x28] sm:$0xff]
    %v1745 = vld [vmem:[#allocation6 + $0x30] sm:$0xff]
    %v1746 = vld [vmem:[#allocation6 + $0x38] sm:$0xff]
    %v1747 = vld [vmem:[#allocation6 + $0x40] sm:$0xff]
    %v1748 = vld [vmem:[#allocation6 + $0x48] sm:$0xff]
    %v1749 = vld [vmem:[#allocation6 + $0x50] sm:$0xff]
    %v1750 = vld [vmem:[#allocation6 + $0x58] sm:$0xff]
    %v1751 = vld [vmem:[#allocation6 + $0x60] sm:$0xff]
    %v1752 = vld [vmem:[#allocation6 + $0x68] sm:$0xff]
    %v1753 = vld [vmem:[#allocation6 + $0x70] sm:$0xff]
    %v1754 = vld [vmem:[#allocation6 + $0x78] sm:$0xff]
    %v1755 = vld [vmem:[#allocation6 + $0x80] sm:$0xff]
    %v1756 = vld [vmem:[#allocation6 + $0x88] sm:$0xff]
    %v1757 = vld [vmem:[#allocation6 + $0x90] sm:$0xff]
    %v1758 = vld [vmem:[#allocation6 + $0x98] sm:$0xff]
    %v1759 = vld [vmem:[#allocation6 + $0xa0] sm:$0xff]
    %v1760 = vld [vmem:[#allocation6 + $0xa8] sm:$0xff]
    %v1761 = vld [vmem:[#allocation6 + $0xb0] sm:$0xff]
    %v1762 = vld [vmem:[#allocation6 + $0xb8] sm:$0xff]
    %v1763 = vld [vmem:[#allocation6 + $0xc0] sm:$0xff]
    %v1764 = vld [vmem:[#allocation6 + $0xc8] sm:$0xff]
    %v1765 = vld [vmem:[#allocation6 + $0xd0] sm:$0xff]
    %v1766 = vld [vmem:[#allocation6 + $0xd8] sm:$0xff]
    %v1767 = vld [vmem:[#allocation6 + $0xe0] sm:$0xff]
    %v1768 = vld [vmem:[#allocation6 + $0xe8] sm:$0xff]
    %v1769 = vld [vmem:[#allocation6 + $0xf0] sm:$0xff]
    %v1770 = vld [vmem:[#allocation6 + $0xf8] sm:$0xff]
    %v1771 = vld [vmem:[#allocation6 + $0x100] sm:$0xff]
    %v1772 = vld [vmem:[#allocation6 + $0x108] sm:$0xff]
    %v1773 = vld [vmem:[#allocation6 + $0x110] sm:$0xff]
    %v1774 = vld [vmem:[#allocation6 + $0x118] sm:$0xff]
    %v1775 = vld [vmem:[#allocation6 + $0x120] sm:$0xff]
    %v1776 = vld [vmem:[#allocation6 + $0x128] sm:$0xff]
    %v1777 = vld [vmem:[#allocation6 + $0x130] sm:$0xff]
    %v1778 = vld [vmem:[#allocation6 + $0x138] sm:$0xff]
    %v1779 = vld [vmem:[#allocation6 + $0x140] sm:$0xff]
    %v1780 = vld [vmem:[#allocation6 + $0x148] sm:$0xff]
    %v1781 = vld [vmem:[#allocation6 + $0x150] sm:$0xff]
    %v1782 = vld [vmem:[#allocation6 + $0x158] sm:$0xff]
    %v1783 = vld [vmem:[#allocation6 + $0x160] sm:$0xff]
    %v1784 = vld [vmem:[#allocation6 + $0x168] sm:$0xff]
    %v1785 = vld [vmem:[#allocation6 + $0x170] sm:$0xff]
    %v1786 = vld [vmem:[#allocation6 + $0x178] sm:$0xff]
    %v1787 = vld [vmem:[#allocation6 + $0x180] sm:$0xff]
    %v1788 = vld [vmem:[#allocation6 + $0x188] sm:$0xff]
    %v1789 = vld [vmem:[#allocation6 + $0x190] sm:$0xff]
    %v1790 = vld [vmem:[#allocation6 + $0x198] sm:$0xff]
    %v1791 = vld [vmem:[#allocation6 + $0x1a0] sm:$0xff]
    %v1792 = vld [vmem:[#allocation6 + $0x1a8] sm:$0xff]
    %v1793 = vld [vmem:[#allocation6 + $0x1b0] sm:$0xff]
    %v1794 = vld [vmem:[#allocation6 + $0x1b8] sm:$0xff]
    %v1795 = vld [vmem:[#allocation6 + $0x1c0] sm:$0xff]
    %v1796 = vld [vmem:[#allocation6 + $0x1c8] sm:$0xff]
    %v1797 = vld [vmem:[#allocation6 + $0x1d0] sm:$0xff]
    %v1798 = vld [vmem:[#allocation6 + $0x1d8] sm:$0xff]
    %v1799 = vld [vmem:[#allocation6 + $0x1e0] sm:$0xff]
    %v1800 = vld [vmem:[#allocation6 + $0x1e8] sm:$0xff]
    %v1801 = vld [vmem:[#allocation6 + $0x1f0] sm:$0xff]
    %v1802 = vld [vmem:[#allocation6 + $0x1f8] sm:$0xff]
    %1803 = vmatprep.subr.mxu0 %v1800
    %1804 = vmatpush1.msra.mxu0 %v1799
    %1805 = vmatprep.subr.mxu0 %v1796
    %1806 = vmatpush1.msra.mxu0 %v1795
    %1807 = vmatprep.subr.mxu0 %v1792
    %1808 = vmatpush1.msra.mxu0 %v1791
    %1809 = vmatprep.subr.mxu0 %v1788
    %1810 = vmatpush1.msra.mxu0 %v1787
    %1811 = vmatprep.subr.mxu0 %v1784
    %1812 = vmatpush1.msra.mxu0 %v1783
    %1813 = vmatprep.subr.mxu0 %v1780
    %1814 = vmatpush1.msra.mxu0 %v1779
    %1815 = vmatprep.subr.mxu0 %v1776
    %1816 = vmatpush1.msra.mxu0 %v1775
    %1817 = vmatprep.subr.mxu0 %v1772
    %1818 = vmatpush1.msra.mxu0 %v1771
    %1819 = vmatprep.subr.mxu0 %v1768
    %1820 = vmatpush1.msra.mxu0 %v1767
    %1821 = vmatprep.subr.mxu0 %v1764
    %1822 = vmatpush1.msra.mxu0 %v1763
    %1823 = vmatprep.subr.mxu0 %v1760
    %1824 = vmatpush1.msra.mxu0 %v1759
    %1825 = vmatprep.subr.mxu0 %v1756
    %1826 = vmatpush1.msra.mxu0 %v1755
    %1827 = vmatprep.subr.mxu0 %v1752
    %1828 = vmatpush1.msra.mxu0 %v1751
    %1829 = vmatprep.subr.mxu0 %v1748
    %1830 = vmatpush1.msra.mxu0 %v1747
    %1831 = vmatprep.subr.mxu0 %v1744
    %1832 = vmatpush1.msra.mxu0 %v1743
    %1833 = vmatprep.subr.mxu0 %v1740
    %1834 = vmatpush1.msra.mxu0 %v1739
    %1835 = vmatprep.subr.mxu0 0.0
    %1836 = vmatpush2.msra.mxu0 0.0
    %1837 = vmatprep.subr.mxu0 0.0
    %1838 = vmatpush2.msra.mxu0 0.0
    %1839 = vmatprep.subr.mxu0 0.0
    %1840 = vmatpush2.msra.mxu0 0.0
    %1841 = vmatprep.subr.mxu0 0.0
    %1842 = vmatpush2.msra.mxu0 0.0
    %1843 = vmatprep.subr.mxu0 0.0
    %1844 = vmatpush2.msra.mxu0 0.0
    %1845 = vmatprep.subr.mxu0 0.0
    %1846 = vmatpush2.msra.mxu0 0.0
    %1847 = vmatprep.subr.mxu0 0.0
    %1848 = vmatpush2.msra.mxu0 0.0
    %1849 = vmatprep.subr.mxu0 0.0
    %1850 = vmatpush2.msra.mxu0 0.0
    %1851 = vmatprep.subr.mxu0 0.0
    %1852 = vmatpush2.msra.mxu0 0.0
    %1853 = vmatprep.subr.mxu0 0.0
    %1854 = vmatpush2.msra.mxu0 0.0
    %1855 = vmatprep.subr.mxu0 0.0
    %1856 = vmatpush2.msra.mxu0 0.0
    %1857 = vmatprep.subr.mxu0 0.0
    %1858 = vmatpush2.msra.mxu0 0.0
    %1859 = vmatprep.subr.mxu0 0.0
    %1860 = vmatpush2.msra.mxu0 0.0
    %1861 = vmatprep.subr.mxu0 0.0
    %1862 = vmatpush2.msra.mxu0 0.0
    %1863 = vmatprep.subr.mxu0 0.0
    %1864 = vmatpush2.msra.mxu0 0.0
    %1865 = vmatprep.subr.mxu0 0.0
    %1866 = vmatpush2.msra.mxu0 0.0
    %1867 = vmatprep.mubr.f32.mxu0 0.0
    %1868 = vmatmul.mubr.f32.gmra.mxu0 %v1494
    %v1869 = vpop.f32.mrf.mxu0
    %v1870 = vadd.f32 0.0, %v1869
    %v1871 = vpop.f32.mrf.mxu0
    %v1872 = vadd.f32 0.0, %v1871
    %1873 = vdwg.mxu0
    %1874 = vmatprep.subr.mxu0 %v1802
    %1875 = vmatpush1.msra.mxu0 %v1801
    %1876 = vmatprep.subr.mxu0 %v1798
    %1877 = vmatpush1.msra.mxu0 %v1797
    %1878 = vmatprep.subr.mxu0 %v1794
    %1879 = vmatpush1.msra.mxu0 %v1793
    %1880 = vmatprep.subr.mxu0 %v1790
    %1881 = vmatpush1.msra.mxu0 %v1789
    %1882 = vmatprep.subr.mxu0 %v1786
    %1883 = vmatpush1.msra.mxu0 %v1785
    %1884 = vmatprep.subr.mxu0 %v1782
    %1885 = vmatpush1.msra.mxu0 %v1781
    %1886 = vmatprep.subr.mxu0 %v1778
    %1887 = vmatpush1.msra.mxu0 %v1777
    %1888 = vmatprep.subr.mxu0 %v1774
    %1889 = vmatpush1.msra.mxu0 %v1773
    %1890 = vmatprep.subr.mxu0 %v1770
    %1891 = vmatpush1.msra.mxu0 %v1769
    %1892 = vmatprep.subr.mxu0 %v1766
    %1893 = vmatpush1.msra.mxu0 %v1765
    %1894 = vmatprep.subr.mxu0 %v1762
    %1895 = vmatpush1.msra.mxu0 %v1761
    %1896 = vmatprep.subr.mxu0 %v1758
    %1897 = vmatpush1.msra.mxu0 %v1757
    %1898 = vmatprep.subr.mxu0 %v1754
    %1899 = vmatpush1.msra.mxu0 %v1753
    %1900 = vmatprep.subr.mxu0 %v1750
    %1901 = vmatpush1.msra.mxu0 %v1749
    %1902 = vmatprep.subr.mxu0 %v1746
    %1903 = vmatpush1.msra.mxu0 %v1745
    %1904 = vmatprep.subr.mxu0 %v1742
    %1905 = vmatpush1.msra.mxu0 %v1741
    %1906 = vmatprep.subr.mxu0 0.0
    %1907 = vmatpush2.msra.mxu0 0.0
    %1908 = vmatprep.subr.mxu0 0.0
    %1909 = vmatpush2.msra.mxu0 0.0
    %1910 = vmatprep.subr.mxu0 0.0
    %1911 = vmatpush2.msra.mxu0 0.0
    %1912 = vmatprep.subr.mxu0 0.0
    %1913 = vmatpush2.msra.mxu0 0.0
    %1914 = vmatprep.subr.mxu0 0.0
    %1915 = vmatpush2.msra.mxu0 0.0
    %1916 = vmatprep.subr.mxu0 0.0
    %1917 = vmatpush2.msra.mxu0 0.0
    %1918 = vmatprep.subr.mxu0 0.0
    %1919 = vmatpush2.msra.mxu0 0.0
    %1920 = vmatprep.subr.mxu0 0.0
    %1921 = vmatpush2.msra.mxu0 0.0
    %1922 = vmatprep.subr.mxu0 0.0
    %1923 = vmatpush2.msra.mxu0 0.0
    %1924 = vmatprep.subr.mxu0 0.0
    %1925 = vmatpush2.msra.mxu0 0.0
    %1926 = vmatprep.subr.mxu0 0.0
    %1927 = vmatpush2.msra.mxu0 0.0
    %1928 = vmatprep.subr.mxu0 0.0
    %1929 = vmatpush2.msra.mxu0 0.0
    %1930 = vmatprep.subr.mxu0 0.0
    %1931 = vmatpush2.msra.mxu0 0.0
    %1932 = vmatprep.subr.mxu0 0.0
    %1933 = vmatpush2.msra.mxu0 0.0
    %1934 = vmatprep.subr.mxu0 0.0
    %1935 = vmatpush2.msra.mxu0 0.0
    %1936 = vmatprep.subr.mxu0 0.0
    %1937 = vmatpush2.msra.mxu0 0.0
    %1938 = vmatprep.mubr.f32.mxu0 0.0
    %1939 = vmatmul.mubr.f32.gmra.mxu0 %v1494
    %v1940 = vpop.f32.mrf.mxu0
    %v1941 = vadd.f32 0.0, %v1940
    %v1942 = vpop.f32.mrf.mxu0
    %v1943 = vadd.f32 0.0, %v1942
    %1944 = vdwg.mxu0
    %v1945 = vadd.f32 %v1731, %v1870
    %v1946 = vadd.f32 %v1732, %v1872
    %v1947 = vadd.f32 %v1733, %v1941
    %v1948 = vadd.f32 %v1734, %v1943
    %v1949 = vxor.u32 %v1945, 2147483648
    %v1950 = vmul.f32 %v1949, 1.442695
    %v1951 = vpow.pop %v1950
    %v1952 = vadd.f32 %v1951, 1.0
    %v1953 = vrcp.pop %v1952
    %v1954 = vmul.f32 1.0, %v1953
    %v1955 = vxor.u32 %v1946, 2147483648
    %v1956 = vmul.f32 %v1955, 1.442695
    %v1957 = vpow.pop %v1956
    %v1958 = vadd.f32 %v1957, 1.0
    %v1959 = vrcp.pop %v1958
    %v1960 = vmul.f32 1.0, %v1959
    %v1961 = vtanh.pop %v1947
    %v1962 = vxor.u32 %v1948, 2147483648
    %v1963 = vmul.f32 %v1962, 1.442695
    %v1964 = vpow.pop %v1963
    %v1965 = vadd.f32 %v1964, 1.0
    %v1966 = vrcp.pop %v1965
    %v1967 = vmul.f32 1.0, %v1966
    %v1968 = vmul.f32 %v1960, %v1492
    %v1969 = vmul.f32 %v1954, %v1961
    %v1970 = vadd.f32 %v1968, %v1969
    %v1971 = vtanh.pop %v1970
    %v1972 = vmul.f32 %v1967, %v1971
    %v1973 = vld [vmem:[#allocation8] sm:$0xff]
    %v1974 = vld [vmem:[#allocation8 + $0x8] sm:$0xff]
    %v1975 = vld [vmem:[#allocation8 + $0x10] sm:$0xff]
    %v1976 = vld [vmem:[#allocation8 + $0x18] sm:$0xff]
    %v1977 = vld [vmem:[#allocation8 + $0x20] sm:$0xff]
    %v1978 = vld [vmem:[#allocation8 + $0x28] sm:$0xff]
    %v1979 = vld [vmem:[#allocation8 + $0x30] sm:$0xff]
    %v1980 = vld [vmem:[#allocation8 + $0x38] sm:$0xff]
    %v1981 = vld [vmem:[#allocation8 + $0x40] sm:$0xff]
    %v1982 = vld [vmem:[#allocation8 + $0x48] sm:$0xff]
    %v1983 = vld [vmem:[#allocation8 + $0x50] sm:$0xff]
    %v1984 = vld [vmem:[#allocation8 + $0x58] sm:$0xff]
    %v1985 = vld [vmem:[#allocation8 + $0x60] sm:$0xff]
    %v1986 = vld [vmem:[#allocation8 + $0x68] sm:$0xff]
    %v1987 = vld [vmem:[#allocation8 + $0x70] sm:$0xff]
    %v1988 = vld [vmem:[#allocation8 + $0x78] sm:$0xff]
    %v1989 = vld [vmem:[#allocation8 + $0x80] sm:$0xff]
    %v1990 = vld [vmem:[#allocation8 + $0x88] sm:$0xff]
    %v1991 = vld [vmem:[#allocation8 + $0x90] sm:$0xff]
    %v1992 = vld [vmem:[#allocation8 + $0x98] sm:$0xff]
    %v1993 = vld [vmem:[#allocation8 + $0xa0] sm:$0xff]
    %v1994 = vld [vmem:[#allocation8 + $0xa8] sm:$0xff]
    %v1995 = vld [vmem:[#allocation8 + $0xb0] sm:$0xff]
    %v1996 = vld [vmem:[#allocation8 + $0xb8] sm:$0xff]
    %v1997 = vld [vmem:[#allocation8 + $0xc0] sm:$0xff]
    %v1998 = vld [vmem:[#allocation8 + $0xc8] sm:$0xff]
    %v1999 = vld [vmem:[#allocation8 + $0xd0] sm:$0xff]
    %v2000 = vld [vmem:[#allocation8 + $0xd8] sm:$0xff]
    %v2001 = vld [vmem:[#allocation8 + $0xe0] sm:$0xff]
    %v2002 = vld [vmem:[#allocation8 + $0xe8] sm:$0xff]
    %v2003 = vld [vmem:[#allocation8 + $0xf0] sm:$0xff]
    %v2004 = vld [vmem:[#allocation8 + $0xf8] sm:$0xff]
    %v2005 = vld [vmem:[#allocation8 + $0x100] sm:$0xff]
    %v2006 = vld [vmem:[#allocation8 + $0x108] sm:$0xff]
    %v2007 = vld [vmem:[#allocation8 + $0x110] sm:$0xff]
    %v2008 = vld [vmem:[#allocation8 + $0x118] sm:$0xff]
    %v2009 = vld [vmem:[#allocation8 + $0x120] sm:$0xff]
    %v2010 = vld [vmem:[#allocation8 + $0x128] sm:$0xff]
    %v2011 = vld [vmem:[#allocation8 + $0x130] sm:$0xff]
    %v2012 = vld [vmem:[#allocation8 + $0x138] sm:$0xff]
    %v2013 = vld [vmem:[#allocation8 + $0x140] sm:$0xff]
    %v2014 = vld [vmem:[#allocation8 + $0x148] sm:$0xff]
    %v2015 = vld [vmem:[#allocation8 + $0x150] sm:$0xff]
    %v2016 = vld [vmem:[#allocation8 + $0x158] sm:$0xff]
    %v2017 = vld [vmem:[#allocation8 + $0x160] sm:$0xff]
    %v2018 = vld [vmem:[#allocation8 + $0x168] sm:$0xff]
    %v2019 = vld [vmem:[#allocation8 + $0x170] sm:$0xff]
    %v2020 = vld [vmem:[#allocation8 + $0x178] sm:$0xff]
    %v2021 = vld [vmem:[#allocation8 + $0x180] sm:$0xff]
    %v2022 = vld [vmem:[#allocation8 + $0x188] sm:$0xff]
    %v2023 = vld [vmem:[#allocation8 + $0x190] sm:$0xff]
    %v2024 = vld [vmem:[#allocation8 + $0x198] sm:$0xff]
    %v2025 = vld [vmem:[#allocation8 + $0x1a0] sm:$0xff]
    %v2026 = vld [vmem:[#allocation8 + $0x1a8] sm:$0xff]
    %v2027 = vld [vmem:[#allocation8 + $0x1b0] sm:$0xff]
    %v2028 = vld [vmem:[#allocation8 + $0x1b8] sm:$0xff]
    %v2029 = vld [vmem:[#allocation8 + $0x1c0] sm:$0xff]
    %v2030 = vld [vmem:[#allocation8 + $0x1c8] sm:$0xff]
    %v2031 = vld [vmem:[#allocation8 + $0x1d0] sm:$0xff]
    %v2032 = vld [vmem:[#allocation8 + $0x1d8] sm:$0xff]
    %v2033 = vld [vmem:[#allocation8 + $0x1e0] sm:$0xff]
    %v2034 = vld [vmem:[#allocation8 + $0x1e8] sm:$0xff]
    %v2035 = vld [vmem:[#allocation8 + $0x1f0] sm:$0xff]
    %v2036 = vld [vmem:[#allocation8 + $0x1f8] sm:$0xff]
    %2037 = vmatprep.subr.mxu0 %v2034
    %2038 = vmatpush1.msra.mxu0 %v2033
    %2039 = vmatprep.subr.mxu0 %v2030
    %2040 = vmatpush1.msra.mxu0 %v2029
    %2041 = vmatprep.subr.mxu0 %v2026
    %2042 = vmatpush1.msra.mxu0 %v2025
    %2043 = vmatprep.subr.mxu0 %v2022
    %2044 = vmatpush1.msra.mxu0 %v2021
    %2045 = vmatprep.subr.mxu0 %v2018
    %2046 = vmatpush1.msra.mxu0 %v2017
    %2047 = vmatprep.subr.mxu0 %v2014
    %2048 = vmatpush1.msra.mxu0 %v2013
    %2049 = vmatprep.subr.mxu0 %v2010
    %2050 = vmatpush1.msra.mxu0 %v2009
    %2051 = vmatprep.subr.mxu0 %v2006
    %2052 = vmatpush1.msra.mxu0 %v2005
    %2053 = vmatprep.subr.mxu0 %v2002
    %2054 = vmatpush1.msra.mxu0 %v2001
    %2055 = vmatprep.subr.mxu0 %v1998
    %2056 = vmatpush1.msra.mxu0 %v1997
    %2057 = vmatprep.subr.mxu0 %v1994
    %2058 = vmatpush1.msra.mxu0 %v1993
    %2059 = vmatprep.subr.mxu0 %v1990
    %2060 = vmatpush1.msra.mxu0 %v1989
    %2061 = vmatprep.subr.mxu0 %v1986
    %2062 = vmatpush1.msra.mxu0 %v1985
    %2063 = vmatprep.subr.mxu0 %v1982
    %2064 = vmatpush1.msra.mxu0 %v1981
    %2065 = vmatprep.subr.mxu0 %v1978
    %2066 = vmatpush1.msra.mxu0 %v1977
    %2067 = vmatprep.subr.mxu0 %v1974
    %2068 = vmatpush1.msra.mxu0 %v1973
    %2069 = vmatprep.subr.mxu0 0.0
    %2070 = vmatpush2.msra.mxu0 0.0
    %2071 = vmatprep.subr.mxu0 0.0
    %2072 = vmatpush2.msra.mxu0 0.0
    %2073 = vmatprep.subr.mxu0 0.0
    %2074 = vmatpush2.msra.mxu0 0.0
    %2075 = vmatprep.subr.mxu0 0.0
    %2076 = vmatpush2.msra.mxu0 0.0
    %2077 = vmatprep.subr.mxu0 0.0
    %2078 = vmatpush2.msra.mxu0 0.0
    %2079 = vmatprep.subr.mxu0 0.0
    %2080 = vmatpush2.msra.mxu0 0.0
    %2081 = vmatprep.subr.mxu0 0.0
    %2082 = vmatpush2.msra.mxu0 0.0
    %2083 = vmatprep.subr.mxu0 0.0
    %2084 = vmatpush2.msra.mxu0 0.0
    %2085 = vmatprep.subr.mxu0 0.0
    %2086 = vmatpush2.msra.mxu0 0.0
    %2087 = vmatprep.subr.mxu0 0.0
    %2088 = vmatpush2.msra.mxu0 0.0
    %2089 = vmatprep.subr.mxu0 0.0
    %2090 = vmatpush2.msra.mxu0 0.0
    %2091 = vmatprep.subr.mxu0 0.0
    %2092 = vmatpush2.msra.mxu0 0.0
    %2093 = vmatprep.subr.mxu0 0.0
    %2094 = vmatpush2.msra.mxu0 0.0
    %2095 = vmatprep.subr.mxu0 0.0
    %2096 = vmatpush2.msra.mxu0 0.0
    %2097 = vmatprep.subr.mxu0 0.0
    %2098 = vmatpush2.msra.mxu0 0.0
    %2099 = vmatprep.subr.mxu0 0.0
    %2100 = vmatpush2.msra.mxu0 0.0
    %2101 = vmatprep.mubr.f32.mxu0 0.0
    %2102 = vmatmul.mubr.f32.gmra.mxu0 %v1728
    %v2103 = vpop.f32.mrf.mxu0
    %v2104 = vadd.f32 0.0, %v2103
    %v2105 = vpop.f32.mrf.mxu0
    %v2106 = vadd.f32 0.0, %v2105
    %2107 = vdwg.mxu0
    %2108 = vmatprep.subr.mxu0 %v2036
    %2109 = vmatpush1.msra.mxu0 %v2035
    %2110 = vmatprep.subr.mxu0 %v2032
    %2111 = vmatpush1.msra.mxu0 %v2031
    %2112 = vmatprep.subr.mxu0 %v2028
    %2113 = vmatpush1.msra.mxu0 %v2027
    %2114 = vmatprep.subr.mxu0 %v2024
    %2115 = vmatpush1.msra.mxu0 %v2023
    %2116 = vmatprep.subr.mxu0 %v2020
    %2117 = vmatpush1.msra.mxu0 %v2019
    %2118 = vmatprep.subr.mxu0 %v2016
    %2119 = vmatpush1.msra.mxu0 %v2015
    %2120 = vmatprep.subr.mxu0 %v2012
    %2121 = vmatpush1.msra.mxu0 %v2011
    %2122 = vmatprep.subr.mxu0 %v2008
    %2123 = vmatpush1.msra.mxu0 %v2007
    %2124 = vmatprep.subr.mxu0 %v2004
    %2125 = vmatpush1.msra.mxu0 %v2003
    %2126 = vmatprep.subr.mxu0 %v2000
    %2127 = vmatpush1.msra.mxu0 %v1999
    %2128 = vmatprep.subr.mxu0 %v1996
    %2129 = vmatpush1.msra.mxu0 %v1995
    %2130 = vmatprep.subr.mxu0 %v1992
    %2131 = vmatpush1.msra.mxu0 %v1991
    %2132 = vmatprep.subr.mxu0 %v1988
    %2133 = vmatpush1.msra.mxu0 %v1987
    %2134 = vmatprep.subr.mxu0 %v1984
    %2135 = vmatpush1.msra.mxu0 %v1983
    %2136 = vmatprep.subr.mxu0 %v1980
    %2137 = vmatpush1.msra.mxu0 %v1979
    %2138 = vmatprep.subr.mxu0 %v1976
    %2139 = vmatpush1.msra.mxu0 %v1975
    %2140 = vmatprep.subr.mxu0 0.0
    %2141 = vmatpush2.msra.mxu0 0.0
    %2142 = vmatprep.subr.mxu0 0.0
    %2143 = vmatpush2.msra.mxu0 0.0
    %2144 = vmatprep.subr.mxu0 0.0
    %2145 = vmatpush2.msra.mxu0 0.0
    %2146 = vmatprep.subr.mxu0 0.0
    %2147 = vmatpush2.msra.mxu0 0.0
    %2148 = vmatprep.subr.mxu0 0.0
    %2149 = vmatpush2.msra.mxu0 0.0
    %2150 = vmatprep.subr.mxu0 0.0
    %2151 = vmatpush2.msra.mxu0 0.0
    %2152 = vmatprep.subr.mxu0 0.0
    %2153 = vmatpush2.msra.mxu0 0.0
    %2154 = vmatprep.subr.mxu0 0.0
    %2155 = vmatpush2.msra.mxu0 0.0
    %2156 = vmatprep.subr.mxu0 0.0
    %2157 = vmatpush2.msra.mxu0 0.0
    %2158 = vmatprep.subr.mxu0 0.0
    %2159 = vmatpush2.msra.mxu0 0.0
    %2160 = vmatprep.subr.mxu0 0.0
    %2161 = vmatpush2.msra.mxu0 0.0
    %2162 = vmatprep.subr.mxu0 0.0
    %2163 = vmatpush2.msra.mxu0 0.0
    %2164 = vmatprep.subr.mxu0 0.0
    %2165 = vmatpush2.msra.mxu0 0.0
    %2166 = vmatprep.subr.mxu0 0.0
    %2167 = vmatpush2.msra.mxu0 0.0
    %2168 = vmatprep.subr.mxu0 0.0
    %2169 = vmatpush2.msra.mxu0 0.0
    %2170 = vmatprep.subr.mxu0 0.0
    %2171 = vmatpush2.msra.mxu0 0.0
    %2172 = vmatprep.mubr.f32.mxu0 0.0
    %2173 = vmatmul.mubr.f32.gmra.mxu0 %v1728
    %v2174 = vpop.f32.mrf.mxu0
    %v2175 = vadd.f32 0.0, %v2174
    %v2176 = vpop.f32.mrf.mxu0
    %v2177 = vadd.f32 0.0, %v2176
    %2178 = vdwg.mxu0
    %v2179 = vadd.f32 %v1735, %v2104
    %v2180 = vadd.f32 %v1736, %v2106
    %v2181 = vadd.f32 %v1737, %v2175
    %v2182 = vadd.f32 %v1738, %v2177
    %v2183 = vxor.u32 %v2179, 2147483648
    %v2184 = vmul.f32 %v2183, 1.442695
    %v2185 = vpow.pop %v2184
    %v2186 = vadd.f32 %v2185, 1.0
    %v2187 = vrcp.pop %v2186
    %v2188 = vmul.f32 1.0, %v2187
    %v2189 = vxor.u32 %v2180, 2147483648
    %v2190 = vmul.f32 %v2189, 1.442695
    %v2191 = vpow.pop %v2190
    %v2192 = vadd.f32 %v2191, 1.0
    %v2193 = vrcp.pop %v2192
    %v2194 = vmul.f32 1.0, %v2193
    %v2195 = vtanh.pop %v2181
    %v2196 = vxor.u32 %v2182, 2147483648
    %v2197 = vmul.f32 %v2196, 1.442695
    %v2198 = vpow.pop %v2197
    %v2199 = vadd.f32 %v2198, 1.0
    %v2200 = vrcp.pop %v2199
    %v2201 = vmul.f32 1.0, %v2200
    %v2202 = vmul.f32 %v2194, %v1726
    %v2203 = vmul.f32 %v2188, %v2195
    %v2204 = vadd.f32 %v2202, %v2203
    %v2205 = vtanh.pop %v2204
    %v2206 = vmul.f32 %v2201, %v2205
    %2207 = vst [vmem:[#allocation3 + $0x20] sm:$0xff] %v1972
    %2208 = vst [vmem:[#allocation3 + $0x58] sm:$0xff] %v2206
    %v2209 = vld [vmem:[#allocation2 + $0xc0] sm:$0xff]
    %v2210 = vld [vmem:[#allocation2 + $0xc8] sm:$0xff]
    %v2211 = vld [vmem:[#allocation2 + $0xd0] sm:$0xff]
    %v2212 = vld [vmem:[#allocation2 + $0xd8] sm:$0xff]
    %v2213 = vld [vmem:[#allocation2 + $0x120] sm:$0xff]
    %v2214 = vld [vmem:[#allocation2 + $0x128] sm:$0xff]
    %v2215 = vld [vmem:[#allocation2 + $0x130] sm:$0xff]
    %v2216 = vld [vmem:[#allocation2 + $0x138] sm:$0xff]
    %v2217 = vld [vmem:[#allocation6] sm:$0xff]
    %v2218 = vld [vmem:[#allocation6 + $0x8] sm:$0xff]
    %v2219 = vld [vmem:[#allocation6 + $0x10] sm:$0xff]
    %v2220 = vld [vmem:[#allocation6 + $0x18] sm:$0xff]
    %v2221 = vld [vmem:[#allocation6 + $0x20] sm:$0xff]
    %v2222 = vld [vmem:[#allocation6 + $0x28] sm:$0xff]
    %v2223 = vld [vmem:[#allocation6 + $0x30] sm:$0xff]
    %v2224 = vld [vmem:[#allocation6 + $0x38] sm:$0xff]
    %v2225 = vld [vmem:[#allocation6 + $0x40] sm:$0xff]
    %v2226 = vld [vmem:[#allocation6 + $0x48] sm:$0xff]
    %v2227 = vld [vmem:[#allocation6 + $0x50] sm:$0xff]
    %v2228 = vld [vmem:[#allocation6 + $0x58] sm:$0xff]
    %v2229 = vld [vmem:[#allocation6 + $0x60] sm:$0xff]
    %v2230 = vld [vmem:[#allocation6 + $0x68] sm:$0xff]
    %v2231 = vld [vmem:[#allocation6 + $0x70] sm:$0xff]
    %v2232 = vld [vmem:[#allocation6 + $0x78] sm:$0xff]
    %v2233 = vld [vmem:[#allocation6 + $0x80] sm:$0xff]
    %v2234 = vld [vmem:[#allocation6 + $0x88] sm:$0xff]
    %v2235 = vld [vmem:[#allocation6 + $0x90] sm:$0xff]
    %v2236 = vld [vmem:[#allocation6 + $0x98] sm:$0xff]
    %v2237 = vld [vmem:[#allocation6 + $0xa0] sm:$0xff]
    %v2238 = vld [vmem:[#allocation6 + $0xa8] sm:$0xff]
    %v2239 = vld [vmem:[#allocation6 + $0xb0] sm:$0xff]
    %v2240 = vld [vmem:[#allocation6 + $0xb8] sm:$0xff]
    %v2241 = vld [vmem:[#allocation6 + $0xc0] sm:$0xff]
    %v2242 = vld [vmem:[#allocation6 + $0xc8] sm:$0xff]
    %v2243 = vld [vmem:[#allocation6 + $0xd0] sm:$0xff]
    %v2244 = vld [vmem:[#allocation6 + $0xd8] sm:$0xff]
    %v2245 = vld [vmem:[#allocation6 + $0xe0] sm:$0xff]
    %v2246 = vld [vmem:[#allocation6 + $0xe8] sm:$0xff]
    %v2247 = vld [vmem:[#allocation6 + $0xf0] sm:$0xff]
    %v2248 = vld [vmem:[#allocation6 + $0xf8] sm:$0xff]
    %v2249 = vld [vmem:[#allocation6 + $0x100] sm:$0xff]
    %v2250 = vld [vmem:[#allocation6 + $0x108] sm:$0xff]
    %v2251 = vld [vmem:[#allocation6 + $0x110] sm:$0xff]
    %v2252 = vld [vmem:[#allocation6 + $0x118] sm:$0xff]
    %v2253 = vld [vmem:[#allocation6 + $0x120] sm:$0xff]
    %v2254 = vld [vmem:[#allocation6 + $0x128] sm:$0xff]
    %v2255 = vld [vmem:[#allocation6 + $0x130] sm:$0xff]
    %v2256 = vld [vmem:[#allocation6 + $0x138] sm:$0xff]
    %v2257 = vld [vmem:[#allocation6 + $0x140] sm:$0xff]
    %v2258 = vld [vmem:[#allocation6 + $0x148] sm:$0xff]
    %v2259 = vld [vmem:[#allocation6 + $0x150] sm:$0xff]
    %v2260 = vld [vmem:[#allocation6 + $0x158] sm:$0xff]
    %v2261 = vld [vmem:[#allocation6 + $0x160] sm:$0xff]
    %v2262 = vld [vmem:[#allocation6 + $0x168] sm:$0xff]
    %v2263 = vld [vmem:[#allocation6 + $0x170] sm:$0xff]
    %v2264 = vld [vmem:[#allocation6 + $0x178] sm:$0xff]
    %v2265 = vld [vmem:[#allocation6 + $0x180] sm:$0xff]
    %v2266 = vld [vmem:[#allocation6 + $0x188] sm:$0xff]
    %v2267 = vld [vmem:[#allocation6 + $0x190] sm:$0xff]
    %v2268 = vld [vmem:[#allocation6 + $0x198] sm:$0xff]
    %v2269 = vld [vmem:[#allocation6 + $0x1a0] sm:$0xff]
    %v2270 = vld [vmem:[#allocation6 + $0x1a8] sm:$0xff]
    %v2271 = vld [vmem:[#allocation6 + $0x1b0] sm:$0xff]
    %v2272 = vld [vmem:[#allocation6 + $0x1b8] sm:$0xff]
    %v2273 = vld [vmem:[#allocation6 + $0x1c0] sm:$0xff]
    %v2274 = vld [vmem:[#allocation6 + $0x1c8] sm:$0xff]
    %v2275 = vld [vmem:[#allocation6 + $0x1d0] sm:$0xff]
    %v2276 = vld [vmem:[#allocation6 + $0x1d8] sm:$0xff]
    %v2277 = vld [vmem:[#allocation6 + $0x1e0] sm:$0xff]
    %v2278 = vld [vmem:[#allocation6 + $0x1e8] sm:$0xff]
    %v2279 = vld [vmem:[#allocation6 + $0x1f0] sm:$0xff]
    %v2280 = vld [vmem:[#allocation6 + $0x1f8] sm:$0xff]
    %2281 = vmatprep.subr.mxu0 %v2278
    %2282 = vmatpush1.msra.mxu0 %v2277
    %2283 = vmatprep.subr.mxu0 %v2274
    %2284 = vmatpush1.msra.mxu0 %v2273
    %2285 = vmatprep.subr.mxu0 %v2270
    %2286 = vmatpush1.msra.mxu0 %v2269
    %2287 = vmatprep.subr.mxu0 %v2266
    %2288 = vmatpush1.msra.mxu0 %v2265
    %2289 = vmatprep.subr.mxu0 %v2262
    %2290 = vmatpush1.msra.mxu0 %v2261
    %2291 = vmatprep.subr.mxu0 %v2258
    %2292 = vmatpush1.msra.mxu0 %v2257
    %2293 = vmatprep.subr.mxu0 %v2254
    %2294 = vmatpush1.msra.mxu0 %v2253
    %2295 = vmatprep.subr.mxu0 %v2250
    %2296 = vmatpush1.msra.mxu0 %v2249
    %2297 = vmatprep.subr.mxu0 %v2246
    %2298 = vmatpush1.msra.mxu0 %v2245
    %2299 = vmatprep.subr.mxu0 %v2242
    %2300 = vmatpush1.msra.mxu0 %v2241
    %2301 = vmatprep.subr.mxu0 %v2238
    %2302 = vmatpush1.msra.mxu0 %v2237
    %2303 = vmatprep.subr.mxu0 %v2234
    %2304 = vmatpush1.msra.mxu0 %v2233
    %2305 = vmatprep.subr.mxu0 %v2230
    %2306 = vmatpush1.msra.mxu0 %v2229
    %2307 = vmatprep.subr.mxu0 %v2226
    %2308 = vmatpush1.msra.mxu0 %v2225
    %2309 = vmatprep.subr.mxu0 %v2222
    %2310 = vmatpush1.msra.mxu0 %v2221
    %2311 = vmatprep.subr.mxu0 %v2218
    %2312 = vmatpush1.msra.mxu0 %v2217
    %2313 = vmatprep.subr.mxu0 0.0
    %2314 = vmatpush2.msra.mxu0 0.0
    %2315 = vmatprep.subr.mxu0 0.0
    %2316 = vmatpush2.msra.mxu0 0.0
    %2317 = vmatprep.subr.mxu0 0.0
    %2318 = vmatpush2.msra.mxu0 0.0
    %2319 = vmatprep.subr.mxu0 0.0
    %2320 = vmatpush2.msra.mxu0 0.0
    %2321 = vmatprep.subr.mxu0 0.0
    %2322 = vmatpush2.msra.mxu0 0.0
    %2323 = vmatprep.subr.mxu0 0.0
    %2324 = vmatpush2.msra.mxu0 0.0
    %2325 = vmatprep.subr.mxu0 0.0
    %2326 = vmatpush2.msra.mxu0 0.0
    %2327 = vmatprep.subr.mxu0 0.0
    %2328 = vmatpush2.msra.mxu0 0.0
    %2329 = vmatprep.subr.mxu0 0.0
    %2330 = vmatpush2.msra.mxu0 0.0
    %2331 = vmatprep.subr.mxu0 0.0
    %2332 = vmatpush2.msra.mxu0 0.0
    %2333 = vmatprep.subr.mxu0 0.0
    %2334 = vmatpush2.msra.mxu0 0.0
    %2335 = vmatprep.subr.mxu0 0.0
    %2336 = vmatpush2.msra.mxu0 0.0
    %2337 = vmatprep.subr.mxu0 0.0
    %2338 = vmatpush2.msra.mxu0 0.0
    %2339 = vmatprep.subr.mxu0 0.0
    %2340 = vmatpush2.msra.mxu0 0.0
    %2341 = vmatprep.subr.mxu0 0.0
    %2342 = vmatpush2.msra.mxu0 0.0
    %2343 = vmatprep.subr.mxu0 0.0
    %2344 = vmatpush2.msra.mxu0 0.0
    %2345 = vmatprep.mubr.f32.mxu0 0.0
    %2346 = vmatmul.mubr.f32.gmra.mxu0 %v1972
    %v2347 = vpop.f32.mrf.mxu0
    %v2348 = vadd.f32 0.0, %v2347
    %v2349 = vpop.f32.mrf.mxu0
    %v2350 = vadd.f32 0.0, %v2349
    %2351 = vdwg.mxu0
    %2352 = vmatprep.subr.mxu0 %v2280
    %2353 = vmatpush1.msra.mxu0 %v2279
    %2354 = vmatprep.subr.mxu0 %v2276
    %2355 = vmatpush1.msra.mxu0 %v2275
    %2356 = vmatprep.subr.mxu0 %v2272
    %2357 = vmatpush1.msra.mxu0 %v2271
    %2358 = vmatprep.subr.mxu0 %v2268
    %2359 = vmatpush1.msra.mxu0 %v2267
    %2360 = vmatprep.subr.mxu0 %v2264
    %2361 = vmatpush1.msra.mxu0 %v2263
    %2362 = vmatprep.subr.mxu0 %v2260
    %2363 = vmatpush1.msra.mxu0 %v2259
    %2364 = vmatprep.subr.mxu0 %v2256
    %2365 = vmatpush1.msra.mxu0 %v2255
    %2366 = vmatprep.subr.mxu0 %v2252
    %2367 = vmatpush1.msra.mxu0 %v2251
    %2368 = vmatprep.subr.mxu0 %v2248
    %2369 = vmatpush1.msra.mxu0 %v2247
    %2370 = vmatprep.subr.mxu0 %v2244
    %2371 = vmatpush1.msra.mxu0 %v2243
    %2372 = vmatprep.subr.mxu0 %v2240
    %2373 = vmatpush1.msra.mxu0 %v2239
    %2374 = vmatprep.subr.mxu0 %v2236
    %2375 = vmatpush1.msra.mxu0 %v2235
    %2376 = vmatprep.subr.mxu0 %v2232
    %2377 = vmatpush1.msra.mxu0 %v2231
    %2378 = vmatprep.subr.mxu0 %v2228
    %2379 = vmatpush1.msra.mxu0 %v2227
    %2380 = vmatprep.subr.mxu0 %v2224
    %2381 = vmatpush1.msra.mxu0 %v2223
    %2382 = vmatprep.subr.mxu0 %v2220
    %2383 = vmatpush1.msra.mxu0 %v2219
    %2384 = vmatprep.subr.mxu0 0.0
    %2385 = vmatpush2.msra.mxu0 0.0
    %2386 = vmatprep.subr.mxu0 0.0
    %2387 = vmatpush2.msra.mxu0 0.0
    %2388 = vmatprep.subr.mxu0 0.0
    %2389 = vmatpush2.msra.mxu0 0.0
    %2390 = vmatprep.subr.mxu0 0.0
    %2391 = vmatpush2.msra.mxu0 0.0
    %2392 = vmatprep.subr.mxu0 0.0
    %2393 = vmatpush2.msra.mxu0 0.0
    %2394 = vmatprep.subr.mxu0 0.0
    %2395 = vmatpush2.msra.mxu0 0.0
    %2396 = vmatprep.subr.mxu0 0.0
    %2397 = vmatpush2.msra.mxu0 0.0
    %2398 = vmatprep.subr.mxu0 0.0
    %2399 = vmatpush2.msra.mxu0 0.0
    %2400 = vmatprep.subr.mxu0 0.0
    %2401 = vmatpush2.msra.mxu0 0.0
    %2402 = vmatprep.subr.mxu0 0.0
    %2403 = vmatpush2.msra.mxu0 0.0
    %2404 = vmatprep.subr.mxu0 0.0
    %2405 = vmatpush2.msra.mxu0 0.0
    %2406 = vmatprep.subr.mxu0 0.0
    %2407 = vmatpush2.msra.mxu0 0.0
    %2408 = vmatprep.subr.mxu0 0.0
    %2409 = vmatpush2.msra.mxu0 0.0
    %2410 = vmatprep.subr.mxu0 0.0
    %2411 = vmatpush2.msra.mxu0 0.0
    %2412 = vmatprep.subr.mxu0 0.0
    %2413 = vmatpush2.msra.mxu0 0.0
    %2414 = vmatprep.subr.mxu0 0.0
    %2415 = vmatpush2.msra.mxu0 0.0
    %2416 = vmatprep.mubr.f32.mxu0 0.0
    %2417 = vmatmul.mubr.f32.gmra.mxu0 %v1972
    %v2418 = vpop.f32.mrf.mxu0
    %v2419 = vadd.f32 0.0, %v2418
    %v2420 = vpop.f32.mrf.mxu0
    %v2421 = vadd.f32 0.0, %v2420
    %2422 = vdwg.mxu0
    %v2423 = vadd.f32 %v2209, %v2348
    %v2424 = vadd.f32 %v2210, %v2350
    %v2425 = vadd.f32 %v2211, %v2419
    %v2426 = vadd.f32 %v2212, %v2421
    %v2427 = vxor.u32 %v2423, 2147483648
    %v2428 = vmul.f32 %v2427, 1.442695
    %v2429 = vpow.pop %v2428
    %v2430 = vadd.f32 %v2429, 1.0
    %v2431 = vrcp.pop %v2430
    %v2432 = vmul.f32 1.0, %v2431
    %v2433 = vxor.u32 %v2424, 2147483648
    %v2434 = vmul.f32 %v2433, 1.442695
    %v2435 = vpow.pop %v2434
    %v2436 = vadd.f32 %v2435, 1.0
    %v2437 = vrcp.pop %v2436
    %v2438 = vmul.f32 1.0, %v2437
    %v2439 = vtanh.pop %v2425
    %v2440 = vxor.u32 %v2426, 2147483648
    %v2441 = vmul.f32 %v2440, 1.442695
    %v2442 = vpow.pop %v2441
    %v2443 = vadd.f32 %v2442, 1.0
    %v2444 = vrcp.pop %v2443
    %v2445 = vmul.f32 1.0, %v2444
    %v2446 = vmul.f32 %v2438, %v1970
    %v2447 = vmul.f32 %v2432, %v2439
    %v2448 = vadd.f32 %v2446, %v2447
    %v2449 = vtanh.pop %v2448
    %v2450 = vmul.f32 %v2445, %v2449
    %v2451 = vld [vmem:[#allocation8] sm:$0xff]
    %v2452 = vld [vmem:[#allocation8 + $0x8] sm:$0xff]
    %v2453 = vld [vmem:[#allocation8 + $0x10] sm:$0xff]
    %v2454 = vld [vmem:[#allocation8 + $0x18] sm:$0xff]
    %v2455 = vld [vmem:[#allocation8 + $0x20] sm:$0xff]
    %v2456 = vld [vmem:[#allocation8 + $0x28] sm:$0xff]
    %v2457 = vld [vmem:[#allocation8 + $0x30] sm:$0xff]
    %v2458 = vld [vmem:[#allocation8 + $0x38] sm:$0xff]
    %v2459 = vld [vmem:[#allocation8 + $0x40] sm:$0xff]
    %v2460 = vld [vmem:[#allocation8 + $0x48] sm:$0xff]
    %v2461 = vld [vmem:[#allocation8 + $0x50] sm:$0xff]
    %v2462 = vld [vmem:[#allocation8 + $0x58] sm:$0xff]
    %v2463 = vld [vmem:[#allocation8 + $0x60] sm:$0xff]
    %v2464 = vld [vmem:[#allocation8 + $0x68] sm:$0xff]
    %v2465 = vld [vmem:[#allocation8 + $0x70] sm:$0xff]
    %v2466 = vld [vmem:[#allocation8 + $0x78] sm:$0xff]
    %v2467 = vld [vmem:[#allocation8 + $0x80] sm:$0xff]
    %v2468 = vld [vmem:[#allocation8 + $0x88] sm:$0xff]
    %v2469 = vld [vmem:[#allocation8 + $0x90] sm:$0xff]
    %v2470 = vld [vmem:[#allocation8 + $0x98] sm:$0xff]
    %v2471 = vld [vmem:[#allocation8 + $0xa0] sm:$0xff]
    %v2472 = vld [vmem:[#allocation8 + $0xa8] sm:$0xff]
    %v2473 = vld [vmem:[#allocation8 + $0xb0] sm:$0xff]
    %v2474 = vld [vmem:[#allocation8 + $0xb8] sm:$0xff]
    %v2475 = vld [vmem:[#allocation8 + $0xc0] sm:$0xff]
    %v2476 = vld [vmem:[#allocation8 + $0xc8] sm:$0xff]
    %v2477 = vld [vmem:[#allocation8 + $0xd0] sm:$0xff]
    %v2478 = vld [vmem:[#allocation8 + $0xd8] sm:$0xff]
    %v2479 = vld [vmem:[#allocation8 + $0xe0] sm:$0xff]
    %v2480 = vld [vmem:[#allocation8 + $0xe8] sm:$0xff]
    %v2481 = vld [vmem:[#allocation8 + $0xf0] sm:$0xff]
    %v2482 = vld [vmem:[#allocation8 + $0xf8] sm:$0xff]
    %v2483 = vld [vmem:[#allocation8 + $0x100] sm:$0xff]
    %v2484 = vld [vmem:[#allocation8 + $0x108] sm:$0xff]
    %v2485 = vld [vmem:[#allocation8 + $0x110] sm:$0xff]
    %v2486 = vld [vmem:[#allocation8 + $0x118] sm:$0xff]
    %v2487 = vld [vmem:[#allocation8 + $0x120] sm:$0xff]
    %v2488 = vld [vmem:[#allocation8 + $0x128] sm:$0xff]
    %v2489 = vld [vmem:[#allocation8 + $0x130] sm:$0xff]
    %v2490 = vld [vmem:[#allocation8 + $0x138] sm:$0xff]
    %v2491 = vld [vmem:[#allocation8 + $0x140] sm:$0xff]
    %v2492 = vld [vmem:[#allocation8 + $0x148] sm:$0xff]
    %v2493 = vld [vmem:[#allocation8 + $0x150] sm:$0xff]
    %v2494 = vld [vmem:[#allocation8 + $0x158] sm:$0xff]
    %v2495 = vld [vmem:[#allocation8 + $0x160] sm:$0xff]
    %v2496 = vld [vmem:[#allocation8 + $0x168] sm:$0xff]
    %v2497 = vld [vmem:[#allocation8 + $0x170] sm:$0xff]
    %v2498 = vld [vmem:[#allocation8 + $0x178] sm:$0xff]
    %v2499 = vld [vmem:[#allocation8 + $0x180] sm:$0xff]
    %v2500 = vld [vmem:[#allocation8 + $0x188] sm:$0xff]
    %v2501 = vld [vmem:[#allocation8 + $0x190] sm:$0xff]
    %v2502 = vld [vmem:[#allocation8 + $0x198] sm:$0xff]
    %v2503 = vld [vmem:[#allocation8 + $0x1a0] sm:$0xff]
    %v2504 = vld [vmem:[#allocation8 + $0x1a8] sm:$0xff]
    %v2505 = vld [vmem:[#allocation8 + $0x1b0] sm:$0xff]
    %v2506 = vld [vmem:[#allocation8 + $0x1b8] sm:$0xff]
    %v2507 = vld [vmem:[#allocation8 + $0x1c0] sm:$0xff]
    %v2508 = vld [vmem:[#allocation8 + $0x1c8] sm:$0xff]
    %v2509 = vld [vmem:[#allocation8 + $0x1d0] sm:$0xff]
    %v2510 = vld [vmem:[#allocation8 + $0x1d8] sm:$0xff]
    %v2511 = vld [vmem:[#allocation8 + $0x1e0] sm:$0xff]
    %v2512 = vld [vmem:[#allocation8 + $0x1e8] sm:$0xff]
    %v2513 = vld [vmem:[#allocation8 + $0x1f0] sm:$0xff]
    %v2514 = vld [vmem:[#allocation8 + $0x1f8] sm:$0xff]
    %2515 = vmatprep.subr.mxu0 %v2512
    %2516 = vmatpush1.msra.mxu0 %v2511
    %2517 = vmatprep.subr.mxu0 %v2508
    %2518 = vmatpush1.msra.mxu0 %v2507
    %2519 = vmatprep.subr.mxu0 %v2504
    %2520 = vmatpush1.msra.mxu0 %v2503
    %2521 = vmatprep.subr.mxu0 %v2500
    %2522 = vmatpush1.msra.mxu0 %v2499
    %2523 = vmatprep.subr.mxu0 %v2496
    %2524 = vmatpush1.msra.mxu0 %v2495
    %2525 = vmatprep.subr.mxu0 %v2492
    %2526 = vmatpush1.msra.mxu0 %v2491
    %2527 = vmatprep.subr.mxu0 %v2488
    %2528 = vmatpush1.msra.mxu0 %v2487
    %2529 = vmatprep.subr.mxu0 %v2484
    %2530 = vmatpush1.msra.mxu0 %v2483
    %2531 = vmatprep.subr.mxu0 %v2480
    %2532 = vmatpush1.msra.mxu0 %v2479
    %2533 = vmatprep.subr.mxu0 %v2476
    %2534 = vmatpush1.msra.mxu0 %v2475
    %2535 = vmatprep.subr.mxu0 %v2472
    %2536 = vmatpush1.msra.mxu0 %v2471
    %2537 = vmatprep.subr.mxu0 %v2468
    %2538 = vmatpush1.msra.mxu0 %v2467
    %2539 = vmatprep.subr.mxu0 %v2464
    %2540 = vmatpush1.msra.mxu0 %v2463
    %2541 = vmatprep.subr.mxu0 %v2460
    %2542 = vmatpush1.msra.mxu0 %v2459
    %2543 = vmatprep.subr.mxu0 %v2456
    %2544 = vmatpush1.msra.mxu0 %v2455
    %2545 = vmatprep.subr.mxu0 %v2452
    %2546 = vmatpush1.msra.mxu0 %v2451
    %2547 = vmatprep.subr.mxu0 0.0
    %2548 = vmatpush2.msra.mxu0 0.0
    %2549 = vmatprep.subr.mxu0 0.0
    %2550 = vmatpush2.msra.mxu0 0.0
    %2551 = vmatprep.subr.mxu0 0.0
    %2552 = vmatpush2.msra.mxu0 0.0
    %2553 = vmatprep.subr.mxu0 0.0
    %2554 = vmatpush2.msra.mxu0 0.0
    %2555 = vmatprep.subr.mxu0 0.0
    %2556 = vmatpush2.msra.mxu0 0.0
    %2557 = vmatprep.subr.mxu0 0.0
    %2558 = vmatpush2.msra.mxu0 0.0
    %2559 = vmatprep.subr.mxu0 0.0
    %2560 = vmatpush2.msra.mxu0 0.0
    %2561 = vmatprep.subr.mxu0 0.0
    %2562 = vmatpush2.msra.mxu0 0.0
    %2563 = vmatprep.subr.mxu0 0.0
    %2564 = vmatpush2.msra.mxu0 0.0
    %2565 = vmatprep.subr.mxu0 0.0
    %2566 = vmatpush2.msra.mxu0 0.0
    %2567 = vmatprep.subr.mxu0 0.0
    %2568 = vmatpush2.msra.mxu0 0.0
    %2569 = vmatprep.subr.mxu0 0.0
    %2570 = vmatpush2.msra.mxu0 0.0
    %2571 = vmatprep.subr.mxu0 0.0
    %2572 = vmatpush2.msra.mxu0 0.0
    %2573 = vmatprep.subr.mxu0 0.0
    %2574 = vmatpush2.msra.mxu0 0.0
    %2575 = vmatprep.subr.mxu0 0.0
    %2576 = vmatpush2.msra.mxu0 0.0
    %2577 = vmatprep.subr.mxu0 0.0
    %2578 = vmatpush2.msra.mxu0 0.0
    %2579 = vmatprep.mubr.f32.mxu0 0.0
    %2580 = vmatmul.mubr.f32.gmra.mxu0 %v2206
    %v2581 = vpop.f32.mrf.mxu0
    %v2582 = vadd.f32 0.0, %v2581
    %v2583 = vpop.f32.mrf.mxu0
    %v2584 = vadd.f32 0.0, %v2583
    %2585 = vdwg.mxu0
    %2586 = vmatprep.subr.mxu0 %v2514
    %2587 = vmatpush1.msra.mxu0 %v2513
    %2588 = vmatprep.subr.mxu0 %v2510
    %2589 = vmatpush1.msra.mxu0 %v2509
    %2590 = vmatprep.subr.mxu0 %v2506
    %2591 = vmatpush1.msra.mxu0 %v2505
    %2592 = vmatprep.subr.mxu0 %v2502
    %2593 = vmatpush1.msra.mxu0 %v2501
    %2594 = vmatprep.subr.mxu0 %v2498
    %2595 = vmatpush1.msra.mxu0 %v2497
    %2596 = vmatprep.subr.mxu0 %v2494
    %2597 = vmatpush1.msra.mxu0 %v2493
    %2598 = vmatprep.subr.mxu0 %v2490
    %2599 = vmatpush1.msra.mxu0 %v2489
    %2600 = vmatprep.subr.mxu0 %v2486
    %2601 = vmatpush1.msra.mxu0 %v2485
    %2602 = vmatprep.subr.mxu0 %v2482
    %2603 = vmatpush1.msra.mxu0 %v2481
    %2604 = vmatprep.subr.mxu0 %v2478
    %2605 = vmatpush1.msra.mxu0 %v2477
    %2606 = vmatprep.subr.mxu0 %v2474
    %2607 = vmatpush1.msra.mxu0 %v2473
    %2608 = vmatprep.subr.mxu0 %v2470
    %2609 = vmatpush1.msra.mxu0 %v2469
    %2610 = vmatprep.subr.mxu0 %v2466
    %2611 = vmatpush1.msra.mxu0 %v2465
    %2612 = vmatprep.subr.mxu0 %v2462
    %2613 = vmatpush1.msra.mxu0 %v2461
    %2614 = vmatprep.subr.mxu0 %v2458
    %2615 = vmatpush1.msra.mxu0 %v2457
    %2616 = vmatprep.subr.mxu0 %v2454
    %2617 = vmatpush1.msra.mxu0 %v2453
    %2618 = vmatprep.subr.mxu0 0.0
    %2619 = vmatpush2.msra.mxu0 0.0
    %2620 = vmatprep.subr.mxu0 0.0
    %2621 = vmatpush2.msra.mxu0 0.0
    %2622 = vmatprep.subr.mxu0 0.0
    %2623 = vmatpush2.msra.mxu0 0.0
    %2624 = vmatprep.subr.mxu0 0.0
    %2625 = vmatpush2.msra.mxu0 0.0
    %2626 = vmatprep.subr.mxu0 0.0
    %2627 = vmatpush2.msra.mxu0 0.0
    %2628 = vmatprep.subr.mxu0 0.0
    %2629 = vmatpush2.msra.mxu0 0.0
    %2630 = vmatprep.subr.mxu0 0.0
    %2631 = vmatpush2.msra.mxu0 0.0
    %2632 = vmatprep.subr.mxu0 0.0
    %2633 = vmatpush2.msra.mxu0 0.0
    %2634 = vmatprep.subr.mxu0 0.0
    %2635 = vmatpush2.msra.mxu0 0.0
    %2636 = vmatprep.subr.mxu0 0.0
    %2637 = vmatpush2.msra.mxu0 0.0
    %2638 = vmatprep.subr.mxu0 0.0
    %2639 = vmatpush2.msra.mxu0 0.0
    %2640 = vmatprep.subr.mxu0 0.0
    %2641 = vmatpush2.msra.mxu0 0.0
    %2642 = vmatprep.subr.mxu0 0.0
    %2643 = vmatpush2.msra.mxu0 0.0
    %2644 = vmatprep.subr.mxu0 0.0
    %2645 = vmatpush2.msra.mxu0 0.0
    %2646 = vmatprep.subr.mxu0 0.0
    %2647 = vmatpush2.msra.mxu0 0.0
    %2648 = vmatprep.subr.mxu0 0.0
    %2649 = vmatpush2.msra.mxu0 0.0
    %2650 = vmatprep.mubr.f32.mxu0 0.0
    %2651 = vmatmul.mubr.f32.gmra.mxu0 %v2206
    %v2652 = vpop.f32.mrf.mxu0
    %v2653 = vadd.f32 0.0, %v2652
    %v2654 = vpop.f32.mrf.mxu0
    %v2655 = vadd.f32 0.0, %v2654
    %2656 = vdwg.mxu0
    %v2657 = vadd.f32 %v2213, %v2582
    %v2658 = vadd.f32 %v2214, %v2584
    %v2659 = vadd.f32 %v2215, %v2653
    %v2660 = vadd.f32 %v2216, %v2655
    %v2661 = vxor.u32 %v2657, 2147483648
    %v2662 = vmul.f32 %v2661, 1.442695
    %v2663 = vpow.pop %v2662
    %v2664 = vadd.f32 %v2663, 1.0
    %v2665 = vrcp.pop %v2664
    %v2666 = vmul.f32 1.0, %v2665
    %v2667 = vxor.u32 %v2658, 2147483648
    %v2668 = vmul.f32 %v2667, 1.442695
    %v2669 = vpow.pop %v2668
    %v2670 = vadd.f32 %v2669, 1.0
    %v2671 = vrcp.pop %v2670
    %v2672 = vmul.f32 1.0, %v2671
    %v2673 = vtanh.pop %v2659
    %v2674 = vxor.u32 %v2660, 2147483648
    %v2675 = vmul.f32 %v2674, 1.442695
    %v2676 = vpow.pop %v2675
    %v2677 = vadd.f32 %v2676, 1.0
    %v2678 = vrcp.pop %v2677
    %v2679 = vmul.f32 1.0, %v2678
    %v2680 = vmul.f32 %v2672, %v2204
    %v2681 = vmul.f32 %v2666, %v2673
    %v2682 = vadd.f32 %v2680, %v2681
    %v2683 = vtanh.pop %v2682
    %v2684 = vmul.f32 %v2679, %v2683
    %2685 = vst [vmem:[#allocation3 + $0x30] sm:$0xff] %v2450
    %2686 = vst [vmem:[#allocation3 + $0x48] sm:$0xff] %v2684
    %v2687 = vld [vmem:[#allocation2 + $0x100] sm:$0xff]
    %v2688 = vld [vmem:[#allocation2 + $0x108] sm:$0xff]
    %v2689 = vld [vmem:[#allocation2 + $0x110] sm:$0xff]
    %v2690 = vld [vmem:[#allocation2 + $0x118] sm:$0xff]
    %v2691 = vld [vmem:[#allocation2 + $0xe0] sm:$0xff]
    %v2692 = vld [vmem:[#allocation2 + $0xe8] sm:$0xff]
    %v2693 = vld [vmem:[#allocation2 + $0xf0] sm:$0xff]
    %v2694 = vld [vmem:[#allocation2 + $0xf8] sm:$0xff]
    %v2695 = vld [vmem:[#allocation6] sm:$0xff]
    %v2696 = vld [vmem:[#allocation6 + $0x8] sm:$0xff]
    %v2697 = vld [vmem:[#allocation6 + $0x10] sm:$0xff]
    %v2698 = vld [vmem:[#allocation6 + $0x18] sm:$0xff]
    %v2699 = vld [vmem:[#allocation6 + $0x20] sm:$0xff]
    %v2700 = vld [vmem:[#allocation6 + $0x28] sm:$0xff]
    %v2701 = vld [vmem:[#allocation6 + $0x30] sm:$0xff]
    %v2702 = vld [vmem:[#allocation6 + $0x38] sm:$0xff]
    %v2703 = vld [vmem:[#allocation6 + $0x40] sm:$0xff]
    %v2704 = vld [vmem:[#allocation6 + $0x48] sm:$0xff]
    %v2705 = vld [vmem:[#allocation6 + $0x50] sm:$0xff]
    %v2706 = vld [vmem:[#allocation6 + $0x58] sm:$0xff]
    %v2707 = vld [vmem:[#allocation6 + $0x60] sm:$0xff]
    %v2708 = vld [vmem:[#allocation6 + $0x68] sm:$0xff]
    %v2709 = vld [vmem:[#allocation6 + $0x70] sm:$0xff]
    %v2710 = vld [vmem:[#allocation6 + $0x78] sm:$0xff]
    %v2711 = vld [vmem:[#allocation6 + $0x80] sm:$0xff]
    %v2712 = vld [vmem:[#allocation6 + $0x88] sm:$0xff]
    %v2713 = vld [vmem:[#allocation6 + $0x90] sm:$0xff]
    %v2714 = vld [vmem:[#allocation6 + $0x98] sm:$0xff]
    %v2715 = vld [vmem:[#allocation6 + $0xa0] sm:$0xff]
    %v2716 = vld [vmem:[#allocation6 + $0xa8] sm:$0xff]
    %v2717 = vld [vmem:[#allocation6 + $0xb0] sm:$0xff]
    %v2718 = vld [vmem:[#allocation6 + $0xb8] sm:$0xff]
    %v2719 = vld [vmem:[#allocation6 + $0xc0] sm:$0xff]
    %v2720 = vld [vmem:[#allocation6 + $0xc8] sm:$0xff]
    %v2721 = vld [vmem:[#allocation6 + $0xd0] sm:$0xff]
    %v2722 = vld [vmem:[#allocation6 + $0xd8] sm:$0xff]
    %v2723 = vld [vmem:[#allocation6 + $0xe0] sm:$0xff]
    %v2724 = vld [vmem:[#allocation6 + $0xe8] sm:$0xff]
    %v2725 = vld [vmem:[#allocation6 + $0xf0] sm:$0xff]
    %v2726 = vld [vmem:[#allocation6 + $0xf8] sm:$0xff]
    %v2727 = vld [vmem:[#allocation6 + $0x100] sm:$0xff]
    %v2728 = vld [vmem:[#allocation6 + $0x108] sm:$0xff]
    %v2729 = vld [vmem:[#allocation6 + $0x110] sm:$0xff]
    %v2730 = vld [vmem:[#allocation6 + $0x118] sm:$0xff]
    %v2731 = vld [vmem:[#allocation6 + $0x120] sm:$0xff]
    %v2732 = vld [vmem:[#allocation6 + $0x128] sm:$0xff]
    %v2733 = vld [vmem:[#allocation6 + $0x130] sm:$0xff]
    %v2734 = vld [vmem:[#allocation6 + $0x138] sm:$0xff]
    %v2735 = vld [vmem:[#allocation6 + $0x140] sm:$0xff]
    %v2736 = vld [vmem:[#allocation6 + $0x148] sm:$0xff]
    %v2737 = vld [vmem:[#allocation6 + $0x150] sm:$0xff]
    %v2738 = vld [vmem:[#allocation6 + $0x158] sm:$0xff]
    %v2739 = vld [vmem:[#allocation6 + $0x160] sm:$0xff]
    %v2740 = vld [vmem:[#allocation6 + $0x168] sm:$0xff]
    %v2741 = vld [vmem:[#allocation6 + $0x170] sm:$0xff]
    %v2742 = vld [vmem:[#allocation6 + $0x178] sm:$0xff]
    %v2743 = vld [vmem:[#allocation6 + $0x180] sm:$0xff]
    %v2744 = vld [vmem:[#allocation6 + $0x188] sm:$0xff]
    %v2745 = vld [vmem:[#allocation6 + $0x190] sm:$0xff]
    %v2746 = vld [vmem:[#allocation6 + $0x198] sm:$0xff]
    %v2747 = vld [vmem:[#allocation6 + $0x1a0] sm:$0xff]
    %v2748 = vld [vmem:[#allocation6 + $0x1a8] sm:$0xff]
    %v2749 = vld [vmem:[#allocation6 + $0x1b0] sm:$0xff]
    %v2750 = vld [vmem:[#allocation6 + $0x1b8] sm:$0xff]
    %v2751 = vld [vmem:[#allocation6 + $0x1c0] sm:$0xff]
    %v2752 = vld [vmem:[#allocation6 + $0x1c8] sm:$0xff]
    %v2753 = vld [vmem:[#allocation6 + $0x1d0] sm:$0xff]
    %v2754 = vld [vmem:[#allocation6 + $0x1d8] sm:$0xff]
    %v2755 = vld [vmem:[#allocation6 + $0x1e0] sm:$0xff]
    %v2756 = vld [vmem:[#allocation6 + $0x1e8] sm:$0xff]
    %v2757 = vld [vmem:[#allocation6 + $0x1f0] sm:$0xff]
    %v2758 = vld [vmem:[#allocation6 + $0x1f8] sm:$0xff]
    %2759 = vmatprep.subr.mxu0 %v2756
    %2760 = vmatpush1.msra.mxu0 %v2755
    %2761 = vmatprep.subr.mxu0 %v2752
    %2762 = vmatpush1.msra.mxu0 %v2751
    %2763 = vmatprep.subr.mxu0 %v2748
    %2764 = vmatpush1.msra.mxu0 %v2747
    %2765 = vmatprep.subr.mxu0 %v2744
    %2766 = vmatpush1.msra.mxu0 %v2743
    %2767 = vmatprep.subr.mxu0 %v2740
    %2768 = vmatpush1.msra.mxu0 %v2739
    %2769 = vmatprep.subr.mxu0 %v2736
    %2770 = vmatpush1.msra.mxu0 %v2735
    %2771 = vmatprep.subr.mxu0 %v2732
    %2772 = vmatpush1.msra.mxu0 %v2731
    %2773 = vmatprep.subr.mxu0 %v2728
    %2774 = vmatpush1.msra.mxu0 %v2727
    %2775 = vmatprep.subr.mxu0 %v2724
    %2776 = vmatpush1.msra.mxu0 %v2723
    %2777 = vmatprep.subr.mxu0 %v2720
    %2778 = vmatpush1.msra.mxu0 %v2719
    %2779 = vmatprep.subr.mxu0 %v2716
    %2780 = vmatpush1.msra.mxu0 %v2715
    %2781 = vmatprep.subr.mxu0 %v2712
    %2782 = vmatpush1.msra.mxu0 %v2711
    %2783 = vmatprep.subr.mxu0 %v2708
    %2784 = vmatpush1.msra.mxu0 %v2707
    %2785 = vmatprep.subr.mxu0 %v2704
    %2786 = vmatpush1.msra.mxu0 %v2703
    %2787 = vmatprep.subr.mxu0 %v2700
    %2788 = vmatpush1.msra.mxu0 %v2699
    %2789 = vmatprep.subr.mxu0 %v2696
    %2790 = vmatpush1.msra.mxu0 %v2695
    %2791 = vmatprep.subr.mxu0 0.0
    %2792 = vmatpush2.msra.mxu0 0.0
    %2793 = vmatprep.subr.mxu0 0.0
    %2794 = vmatpush2.msra.mxu0 0.0
    %2795 = vmatprep.subr.mxu0 0.0
    %2796 = vmatpush2.msra.mxu0 0.0
    %2797 = vmatprep.subr.mxu0 0.0
    %2798 = vmatpush2.msra.mxu0 0.0
    %2799 = vmatprep.subr.mxu0 0.0
    %2800 = vmatpush2.msra.mxu0 0.0
    %2801 = vmatprep.subr.mxu0 0.0
    %2802 = vmatpush2.msra.mxu0 0.0
    %2803 = vmatprep.subr.mxu0 0.0
    %2804 = vmatpush2.msra.mxu0 0.0
    %2805 = vmatprep.subr.mxu0 0.0
    %2806 = vmatpush2.msra.mxu0 0.0
    %2807 = vmatprep.subr.mxu0 0.0
    %2808 = vmatpush2.msra.mxu0 0.0
    %2809 = vmatprep.subr.mxu0 0.0
    %2810 = vmatpush2.msra.mxu0 0.0
    %2811 = vmatprep.subr.mxu0 0.0
    %2812 = vmatpush2.msra.mxu0 0.0
    %2813 = vmatprep.subr.mxu0 0.0
    %2814 = vmatpush2.msra.mxu0 0.0
    %2815 = vmatprep.subr.mxu0 0.0
    %2816 = vmatpush2.msra.mxu0 0.0
    %2817 = vmatprep.subr.mxu0 0.0
    %2818 = vmatpush2.msra.mxu0 0.0
    %2819 = vmatprep.subr.mxu0 0.0
    %2820 = vmatpush2.msra.mxu0 0.0
    %2821 = vmatprep.subr.mxu0 0.0
    %2822 = vmatpush2.msra.mxu0 0.0
    %2823 = vmatprep.mubr.f32.mxu0 0.0
    %2824 = vmatmul.mubr.f32.gmra.mxu0 %v2450
    %v2825 = vpop.f32.mrf.mxu0
    %v2826 = vadd.f32 0.0, %v2825
    %v2827 = vpop.f32.mrf.mxu0
    %v2828 = vadd.f32 0.0, %v2827
    %2829 = vdwg.mxu0
    %2830 = vmatprep.subr.mxu0 %v2758
    %2831 = vmatpush1.msra.mxu0 %v2757
    %2832 = vmatprep.subr.mxu0 %v2754
    %2833 = vmatpush1.msra.mxu0 %v2753
    %2834 = vmatprep.subr.mxu0 %v2750
    %2835 = vmatpush1.msra.mxu0 %v2749
    %2836 = vmatprep.subr.mxu0 %v2746
    %2837 = vmatpush1.msra.mxu0 %v2745
    %2838 = vmatprep.subr.mxu0 %v2742
    %2839 = vmatpush1.msra.mxu0 %v2741
    %2840 = vmatprep.subr.mxu0 %v2738
    %2841 = vmatpush1.msra.mxu0 %v2737
    %2842 = vmatprep.subr.mxu0 %v2734
    %2843 = vmatpush1.msra.mxu0 %v2733
    %2844 = vmatprep.subr.mxu0 %v2730
    %2845 = vmatpush1.msra.mxu0 %v2729
    %2846 = vmatprep.subr.mxu0 %v2726
    %2847 = vmatpush1.msra.mxu0 %v2725
    %2848 = vmatprep.subr.mxu0 %v2722
    %2849 = vmatpush1.msra.mxu0 %v2721
    %2850 = vmatprep.subr.mxu0 %v2718
    %2851 = vmatpush1.msra.mxu0 %v2717
    %2852 = vmatprep.subr.mxu0 %v2714
    %2853 = vmatpush1.msra.mxu0 %v2713
    %2854 = vmatprep.subr.mxu0 %v2710
    %2855 = vmatpush1.msra.mxu0 %v2709
    %2856 = vmatprep.subr.mxu0 %v2706
    %2857 = vmatpush1.msra.mxu0 %v2705
    %2858 = vmatprep.subr.mxu0 %v2702
    %2859 = vmatpush1.msra.mxu0 %v2701
    %2860 = vmatprep.subr.mxu0 %v2698
    %2861 = vmatpush1.msra.mxu0 %v2697
    %2862 = vmatprep.subr.mxu0 0.0
    %2863 = vmatpush2.msra.mxu0 0.0
    %2864 = vmatprep.subr.mxu0 0.0
    %2865 = vmatpush2.msra.mxu0 0.0
    %2866 = vmatprep.subr.mxu0 0.0
    %2867 = vmatpush2.msra.mxu0 0.0
    %2868 = vmatprep.subr.mxu0 0.0
    %2869 = vmatpush2.msra.mxu0 0.0
    %2870 = vmatprep.subr.mxu0 0.0
    %2871 = vmatpush2.msra.mxu0 0.0
    %2872 = vmatprep.subr.mxu0 0.0
    %2873 = vmatpush2.msra.mxu0 0.0
    %2874 = vmatprep.subr.mxu0 0.0
    %2875 = vmatpush2.msra.mxu0 0.0
    %2876 = vmatprep.subr.mxu0 0.0
    %2877 = vmatpush2.msra.mxu0 0.0
    %2878 = vmatprep.subr.mxu0 0.0
    %2879 = vmatpush2.msra.mxu0 0.0
    %2880 = vmatprep.subr.mxu0 0.0
    %2881 = vmatpush2.msra.mxu0 0.0
    %2882 = vmatprep.subr.mxu0 0.0
    %2883 = vmatpush2.msra.mxu0 0.0
    %2884 = vmatprep.subr.mxu0 0.0
    %2885 = vmatpush2.msra.mxu0 0.0
    %2886 = vmatprep.subr.mxu0 0.0
    %2887 = vmatpush2.msra.mxu0 0.0
    %2888 = vmatprep.subr.mxu0 0.0
    %2889 = vmatpush2.msra.mxu0 0.0
    %2890 = vmatprep.subr.mxu0 0.0
    %2891 = vmatpush2.msra.mxu0 0.0
    %2892 = vmatprep.subr.mxu0 0.0
    %2893 = vmatpush2.msra.mxu0 0.0
    %2894 = vmatprep.mubr.f32.mxu0 0.0
    %2895 = vmatmul.mubr.f32.gmra.mxu0 %v2450
    %v2896 = vpop.f32.mrf.mxu0
    %v2897 = vadd.f32 0.0, %v2896
    %v2898 = vpop.f32.mrf.mxu0
    %v2899 = vadd.f32 0.0, %v2898
    %2900 = vdwg.mxu0
    %v2901 = vadd.f32 %v2687, %v2826
    %v2902 = vadd.f32 %v2688, %v2828
    %v2903 = vadd.f32 %v2689, %v2897
    %v2904 = vadd.f32 %v2690, %v2899
    %v2905 = vxor.u32 %v2901, 2147483648
    %v2906 = vmul.f32 %v2905, 1.442695
    %v2907 = vpow.pop %v2906
    %v2908 = vadd.f32 %v2907, 1.0
    %v2909 = vrcp.pop %v2908
    %v2910 = vmul.f32 1.0, %v2909
    %v2911 = vxor.u32 %v2902, 2147483648
    %v2912 = vmul.f32 %v2911, 1.442695
    %v2913 = vpow.pop %v2912
    %v2914 = vadd.f32 %v2913, 1.0
    %v2915 = vrcp.pop %v2914
    %v2916 = vmul.f32 1.0, %v2915
    %v2917 = vtanh.pop %v2903
    %v2918 = vxor.u32 %v2904, 2147483648
    %v2919 = vmul.f32 %v2918, 1.442695
    %v2920 = vpow.pop %v2919
    %v2921 = vadd.f32 %v2920, 1.0
    %v2922 = vrcp.pop %v2921
    %v2923 = vmul.f32 1.0, %v2922
    %v2924 = vmul.f32 %v2916, %v2448
    %v2925 = vmul.f32 %v2910, %v2917
    %v2926 = vadd.f32 %v2924, %v2925
    %v2927 = vtanh.pop %v2926
    %v2928 = vmul.f32 %v2923, %v2927
    %v2929 = vld [vmem:[#allocation8] sm:$0xff]
    %v2930 = vld [vmem:[#allocation8 + $0x8] sm:$0xff]
    %v2931 = vld [vmem:[#allocation8 + $0x10] sm:$0xff]
    %v2932 = vld [vmem:[#allocation8 + $0x18] sm:$0xff]
    %v2933 = vld [vmem:[#allocation8 + $0x20] sm:$0xff]
    %v2934 = vld [vmem:[#allocation8 + $0x28] sm:$0xff]
    %v2935 = vld [vmem:[#allocation8 + $0x30] sm:$0xff]
    %v2936 = vld [vmem:[#allocation8 + $0x38] sm:$0xff]
    %v2937 = vld [vmem:[#allocation8 + $0x40] sm:$0xff]
    %v2938 = vld [vmem:[#allocation8 + $0x48] sm:$0xff]
    %v2939 = vld [vmem:[#allocation8 + $0x50] sm:$0xff]
    %v2940 = vld [vmem:[#allocation8 + $0x58] sm:$0xff]
    %v2941 = vld [vmem:[#allocation8 + $0x60] sm:$0xff]
    %v2942 = vld [vmem:[#allocation8 + $0x68] sm:$0xff]
    %v2943 = vld [vmem:[#allocation8 + $0x70] sm:$0xff]
    %v2944 = vld [vmem:[#allocation8 + $0x78] sm:$0xff]
    %v2945 = vld [vmem:[#allocation8 + $0x80] sm:$0xff]
    %v2946 = vld [vmem:[#allocation8 + $0x88] sm:$0xff]
    %v2947 = vld [vmem:[#allocation8 + $0x90] sm:$0xff]
    %v2948 = vld [vmem:[#allocation8 + $0x98] sm:$0xff]
    %v2949 = vld [vmem:[#allocation8 + $0xa0] sm:$0xff]
    %v2950 = vld [vmem:[#allocation8 + $0xa8] sm:$0xff]
    %v2951 = vld [vmem:[#allocation8 + $0xb0] sm:$0xff]
    %v2952 = vld [vmem:[#allocation8 + $0xb8] sm:$0xff]
    %v2953 = vld [vmem:[#allocation8 + $0xc0] sm:$0xff]
    %v2954 = vld [vmem:[#allocation8 + $0xc8] sm:$0xff]
    %v2955 = vld [vmem:[#allocation8 + $0xd0] sm:$0xff]
    %v2956 = vld [vmem:[#allocation8 + $0xd8] sm:$0xff]
    %v2957 = vld [vmem:[#allocation8 + $0xe0] sm:$0xff]
    %v2958 = vld [vmem:[#allocation8 + $0xe8] sm:$0xff]
    %v2959 = vld [vmem:[#allocation8 + $0xf0] sm:$0xff]
    %v2960 = vld [vmem:[#allocation8 + $0xf8] sm:$0xff]
    %v2961 = vld [vmem:[#allocation8 + $0x100] sm:$0xff]
    %v2962 = vld [vmem:[#allocation8 + $0x108] sm:$0xff]
    %v2963 = vld [vmem:[#allocation8 + $0x110] sm:$0xff]
    %v2964 = vld [vmem:[#allocation8 + $0x118] sm:$0xff]
    %v2965 = vld [vmem:[#allocation8 + $0x120] sm:$0xff]
    %v2966 = vld [vmem:[#allocation8 + $0x128] sm:$0xff]
    %v2967 = vld [vmem:[#allocation8 + $0x130] sm:$0xff]
    %v2968 = vld [vmem:[#allocation8 + $0x138] sm:$0xff]
    %v2969 = vld [vmem:[#allocation8 + $0x140] sm:$0xff]
    %v2970 = vld [vmem:[#allocation8 + $0x148] sm:$0xff]
    %v2971 = vld [vmem:[#allocation8 + $0x150] sm:$0xff]
    %v2972 = vld [vmem:[#allocation8 + $0x158] sm:$0xff]
    %v2973 = vld [vmem:[#allocation8 + $0x160] sm:$0xff]
    %v2974 = vld [vmem:[#allocation8 + $0x168] sm:$0xff]
    %v2975 = vld [vmem:[#allocation8 + $0x170] sm:$0xff]
    %v2976 = vld [vmem:[#allocation8 + $0x178] sm:$0xff]
    %v2977 = vld [vmem:[#allocation8 + $0x180] sm:$0xff]
    %v2978 = vld [vmem:[#allocation8 + $0x188] sm:$0xff]
    %v2979 = vld [vmem:[#allocation8 + $0x190] sm:$0xff]
    %v2980 = vld [vmem:[#allocation8 + $0x198] sm:$0xff]
    %v2981 = vld [vmem:[#allocation8 + $0x1a0] sm:$0xff]
    %v2982 = vld [vmem:[#allocation8 + $0x1a8] sm:$0xff]
    %v2983 = vld [vmem:[#allocation8 + $0x1b0] sm:$0xff]
    %v2984 = vld [vmem:[#allocation8 + $0x1b8] sm:$0xff]
    %v2985 = vld [vmem:[#allocation8 + $0x1c0] sm:$0xff]
    %v2986 = vld [vmem:[#allocation8 + $0x1c8] sm:$0xff]
    %v2987 = vld [vmem:[#allocation8 + $0x1d0] sm:$0xff]
    %v2988 = vld [vmem:[#allocation8 + $0x1d8] sm:$0xff]
    %v2989 = vld [vmem:[#allocation8 + $0x1e0] sm:$0xff]
    %v2990 = vld [vmem:[#allocation8 + $0x1e8] sm:$0xff]
    %v2991 = vld [vmem:[#allocation8 + $0x1f0] sm:$0xff]
    %v2992 = vld [vmem:[#allocation8 + $0x1f8] sm:$0xff]
    %2993 = vmatprep.subr.mxu0 %v2990
    %2994 = vmatpush1.msra.mxu0 %v2989
    %2995 = vmatprep.subr.mxu0 %v2986
    %2996 = vmatpush1.msra.mxu0 %v2985
    %2997 = vmatprep.subr.mxu0 %v2982
    %2998 = vmatpush1.msra.mxu0 %v2981
    %2999 = vmatprep.subr.mxu0 %v2978
    %3000 = vmatpush1.msra.mxu0 %v2977
    %3001 = vmatprep.subr.mxu0 %v2974
    %3002 = vmatpush1.msra.mxu0 %v2973
    %3003 = vmatprep.subr.mxu0 %v2970
    %3004 = vmatpush1.msra.mxu0 %v2969
    %3005 = vmatprep.subr.mxu0 %v2966
    %3006 = vmatpush1.msra.mxu0 %v2965
    %3007 = vmatprep.subr.mxu0 %v2962
    %3008 = vmatpush1.msra.mxu0 %v2961
    %3009 = vmatprep.subr.mxu0 %v2958
    %3010 = vmatpush1.msra.mxu0 %v2957
    %3011 = vmatprep.subr.mxu0 %v2954
    %3012 = vmatpush1.msra.mxu0 %v2953
    %3013 = vmatprep.subr.mxu0 %v2950
    %3014 = vmatpush1.msra.mxu0 %v2949
    %3015 = vmatprep.subr.mxu0 %v2946
    %3016 = vmatpush1.msra.mxu0 %v2945
    %3017 = vmatprep.subr.mxu0 %v2942
    %3018 = vmatpush1.msra.mxu0 %v2941
    %3019 = vmatprep.subr.mxu0 %v2938
    %3020 = vmatpush1.msra.mxu0 %v2937
    %3021 = vmatprep.subr.mxu0 %v2934
    %3022 = vmatpush1.msra.mxu0 %v2933
    %3023 = vmatprep.subr.mxu0 %v2930
    %3024 = vmatpush1.msra.mxu0 %v2929
    %3025 = vmatprep.subr.mxu0 0.0
    %3026 = vmatpush2.msra.mxu0 0.0
    %3027 = vmatprep.subr.mxu0 0.0
    %3028 = vmatpush2.msra.mxu0 0.0
    %3029 = vmatprep.subr.mxu0 0.0
    %3030 = vmatpush2.msra.mxu0 0.0
    %3031 = vmatprep.subr.mxu0 0.0
    %3032 = vmatpush2.msra.mxu0 0.0
    %3033 = vmatprep.subr.mxu0 0.0
    %3034 = vmatpush2.msra.mxu0 0.0
    %3035 = vmatprep.subr.mxu0 0.0
    %3036 = vmatpush2.msra.mxu0 0.0
    %3037 = vmatprep.subr.mxu0 0.0
    %3038 = vmatpush2.msra.mxu0 0.0
    %3039 = vmatprep.subr.mxu0 0.0
    %3040 = vmatpush2.msra.mxu0 0.0
    %3041 = vmatprep.subr.mxu0 0.0
    %3042 = vmatpush2.msra.mxu0 0.0
    %3043 = vmatprep.subr.mxu0 0.0
    %3044 = vmatpush2.msra.mxu0 0.0
    %3045 = vmatprep.subr.mxu0 0.0
    %3046 = vmatpush2.msra.mxu0 0.0
    %3047 = vmatprep.subr.mxu0 0.0
    %3048 = vmatpush2.msra.mxu0 0.0
    %3049 = vmatprep.subr.mxu0 0.0
    %3050 = vmatpush2.msra.mxu0 0.0
    %3051 = vmatprep.subr.mxu0 0.0
    %3052 = vmatpush2.msra.mxu0 0.0
    %3053 = vmatprep.subr.mxu0 0.0
    %3054 = vmatpush2.msra.mxu0 0.0
    %3055 = vmatprep.subr.mxu0 0.0
    %3056 = vmatpush2.msra.mxu0 0.0
    %3057 = vmatprep.mubr.f32.mxu0 0.0
    %3058 = vmatmul.mubr.f32.gmra.mxu0 %v2684
    %v3059 = vpop.f32.mrf.mxu0
    %v3060 = vadd.f32 0.0, %v3059
    %v3061 = vpop.f32.mrf.mxu0
    %v3062 = vadd.f32 0.0, %v3061
    %3063 = vdwg.mxu0
    %3064 = vmatprep.subr.mxu0 %v2992
    %3065 = vmatpush1.msra.mxu0 %v2991
    %3066 = vmatprep.subr.mxu0 %v2988
    %3067 = vmatpush1.msra.mxu0 %v2987
    %3068 = vmatprep.subr.mxu0 %v2984
    %3069 = vmatpush1.msra.mxu0 %v2983
    %3070 = vmatprep.subr.mxu0 %v2980
    %3071 = vmatpush1.msra.mxu0 %v2979
    %3072 = vmatprep.subr.mxu0 %v2976
    %3073 = vmatpush1.msra.mxu0 %v2975
    %3074 = vmatprep.subr.mxu0 %v2972
    %3075 = vmatpush1.msra.mxu0 %v2971
    %3076 = vmatprep.subr.mxu0 %v2968
    %3077 = vmatpush1.msra.mxu0 %v2967
    %3078 = vmatprep.subr.mxu0 %v2964
    %3079 = vmatpush1.msra.mxu0 %v2963
    %3080 = vmatprep.subr.mxu0 %v2960
    %3081 = vmatpush1.msra.mxu0 %v2959
    %3082 = vmatprep.subr.mxu0 %v2956
    %3083 = vmatpush1.msra.mxu0 %v2955
    %3084 = vmatprep.subr.mxu0 %v2952
    %3085 = vmatpush1.msra.mxu0 %v2951
    %3086 = vmatprep.subr.mxu0 %v2948
    %3087 = vmatpush1.msra.mxu0 %v2947
    %3088 = vmatprep.subr.mxu0 %v2944
    %3089 = vmatpush1.msra.mxu0 %v2943
    %3090 = vmatprep.subr.mxu0 %v2940
    %3091 = vmatpush1.msra.mxu0 %v2939
    %3092 = vmatprep.subr.mxu0 %v2936
    %3093 = vmatpush1.msra.mxu0 %v2935
    %3094 = vmatprep.subr.mxu0 %v2932
    %3095 = vmatpush1.msra.mxu0 %v2931
    %3096 = vmatprep.subr.mxu0 0.0
    %3097 = vmatpush2.msra.mxu0 0.0
    %3098 = vmatprep.subr.mxu0 0.0
    %3099 = vmatpush2.msra.mxu0 0.0
    %3100 = vmatprep.subr.mxu0 0.0
    %3101 = vmatpush2.msra.mxu0 0.0
    %3102 = vmatprep.subr.mxu0 0.0
    %3103 = vmatpush2.msra.mxu0 0.0
    %3104 = vmatprep.subr.mxu0 0.0
    %3105 = vmatpush2.msra.mxu0 0.0
    %3106 = vmatprep.subr.mxu0 0.0
    %3107 = vmatpush2.msra.mxu0 0.0
    %3108 = vmatprep.subr.mxu0 0.0
    %3109 = vmatpush2.msra.mxu0 0.0
    %3110 = vmatprep.subr.mxu0 0.0
    %3111 = vmatpush2.msra.mxu0 0.0
    %3112 = vmatprep.subr.mxu0 0.0
    %3113 = vmatpush2.msra.mxu0 0.0
    %3114 = vmatprep.subr.mxu0 0.0
    %3115 = vmatpush2.msra.mxu0 0.0
    %3116 = vmatprep.subr.mxu0 0.0
    %3117 = vmatpush2.msra.mxu0 0.0
    %3118 = vmatprep.subr.mxu0 0.0
    %3119 = vmatpush2.msra.mxu0 0.0
    %3120 = vmatprep.subr.mxu0 0.0
    %3121 = vmatpush2.msra.mxu0 0.0
    %3122 = vmatprep.subr.mxu0 0.0
    %3123 = vmatpush2.msra.mxu0 0.0
    %3124 = vmatprep.subr.mxu0 0.0
    %3125 = vmatpush2.msra.mxu0 0.0
    %3126 = vmatprep.subr.mxu0 0.0
    %3127 = vmatpush2.msra.mxu0 0.0
    %3128 = vmatprep.mubr.f32.mxu0 0.0
    %3129 = vmatmul.mubr.f32.gmra.mxu0 %v2684
    %v3130 = vpop.f32.mrf.mxu0
    %v3131 = vadd.f32 0.0, %v3130
    %v3132 = vpop.f32.mrf.mxu0
    %v3133 = vadd.f32 0.0, %v3132
    %3134 = vdwg.mxu0
    %v3135 = vadd.f32 %v2691, %v3060
    %v3136 = vadd.f32 %v2692, %v3062
    %v3137 = vadd.f32 %v2693, %v3131
    %v3138 = vadd.f32 %v2694, %v3133
    %v3139 = vxor.u32 %v3135, 2147483648
    %v3140 = vmul.f32 %v3139, 1.442695
    %v3141 = vpow.pop %v3140
    %v3142 = vadd.f32 %v3141, 1.0
    %v3143 = vrcp.pop %v3142
    %v3144 = vmul.f32 1.0, %v3143
    %v3145 = vxor.u32 %v3136, 2147483648
    %v3146 = vmul.f32 %v3145, 1.442695
    %v3147 = vpow.pop %v3146
    %v3148 = vadd.f32 %v3147, 1.0
    %v3149 = vrcp.pop %v3148
    %v3150 = vmul.f32 1.0, %v3149
    %v3151 = vtanh.pop %v3137
    %v3152 = vxor.u32 %v3138, 2147483648
    %v3153 = vmul.f32 %v3152, 1.442695
    %v3154 = vpow.pop %v3153
    %v3155 = vadd.f32 %v3154, 1.0
    %v3156 = vrcp.pop %v3155
    %v3157 = vmul.f32 1.0, %v3156
    %v3158 = vmul.f32 %v3150, %v2682
    %v3159 = vmul.f32 %v3144, %v3151
    %v3160 = vadd.f32 %v3158, %v3159
    %v3161 = vtanh.pop %v3160
    %v3162 = vmul.f32 %v3157, %v3161
    %3163 = vst [vmem:[#allocation3 + $0x40] sm:$0xff] %v2928
    %3164 = vst [vmem:[#allocation3 + $0x38] sm:$0xff] %v3162
    %v3165 = vld [vmem:[#allocation2 + $0x140] sm:$0xff]
    %v3166 = vld [vmem:[#allocation2 + $0x148] sm:$0xff]
    %v3167 = vld [vmem:[#allocation2 + $0x150] sm:$0xff]
    %v3168 = vld [vmem:[#allocation2 + $0x158] sm:$0xff]
    %v3169 = vld [vmem:[#allocation2 + $0xa0] sm:$0xff]
    %v3170 = vld [vmem:[#allocation2 + $0xa8] sm:$0xff]
    %v3171 = vld [vmem:[#allocation2 + $0xb0] sm:$0xff]
    %v3172 = vld [vmem:[#allocation2 + $0xb8] sm:$0xff]
    %v3173 = vld [vmem:[#allocation6] sm:$0xff]
    %v3174 = vld [vmem:[#allocation6 + $0x8] sm:$0xff]
    %v3175 = vld [vmem:[#allocation6 + $0x10] sm:$0xff]
    %v3176 = vld [vmem:[#allocation6 + $0x18] sm:$0xff]
    %v3177 = vld [vmem:[#allocation6 + $0x20] sm:$0xff]
    %v3178 = vld [vmem:[#allocation6 + $0x28] sm:$0xff]
    %v3179 = vld [vmem:[#allocation6 + $0x30] sm:$0xff]
    %v3180 = vld [vmem:[#allocation6 + $0x38] sm:$0xff]
    %v3181 = vld [vmem:[#allocation6 + $0x40] sm:$0xff]
    %v3182 = vld [vmem:[#allocation6 + $0x48] sm:$0xff]
    %v3183 = vld [vmem:[#allocation6 + $0x50] sm:$0xff]
    %v3184 = vld [vmem:[#allocation6 + $0x58] sm:$0xff]
    %v3185 = vld [vmem:[#allocation6 + $0x60] sm:$0xff]
    %v3186 = vld [vmem:[#allocation6 + $0x68] sm:$0xff]
    %v3187 = vld [vmem:[#allocation6 + $0x70] sm:$0xff]
    %v3188 = vld [vmem:[#allocation6 + $0x78] sm:$0xff]
    %v3189 = vld [vmem:[#allocation6 + $0x80] sm:$0xff]
    %v3190 = vld [vmem:[#allocation6 + $0x88] sm:$0xff]
    %v3191 = vld [vmem:[#allocation6 + $0x90] sm:$0xff]
    %v3192 = vld [vmem:[#allocation6 + $0x98] sm:$0xff]
    %v3193 = vld [vmem:[#allocation6 + $0xa0] sm:$0xff]
    %v3194 = vld [vmem:[#allocation6 + $0xa8] sm:$0xff]
    %v3195 = vld [vmem:[#allocation6 + $0xb0] sm:$0xff]
    %v3196 = vld [vmem:[#allocation6 + $0xb8] sm:$0xff]
    %v3197 = vld [vmem:[#allocation6 + $0xc0] sm:$0xff]
    %v3198 = vld [vmem:[#allocation6 + $0xc8] sm:$0xff]
    %v3199 = vld [vmem:[#allocation6 + $0xd0] sm:$0xff]
    %v3200 = vld [vmem:[#allocation6 + $0xd8] sm:$0xff]
    %v3201 = vld [vmem:[#allocation6 + $0xe0] sm:$0xff]
    %v3202 = vld [vmem:[#allocation6 + $0xe8] sm:$0xff]
    %v3203 = vld [vmem:[#allocation6 + $0xf0] sm:$0xff]
    %v3204 = vld [vmem:[#allocation6 + $0xf8] sm:$0xff]
    %v3205 = vld [vmem:[#allocation6 + $0x100] sm:$0xff]
    %v3206 = vld [vmem:[#allocation6 + $0x108] sm:$0xff]
    %v3207 = vld [vmem:[#allocation6 + $0x110] sm:$0xff]
    %v3208 = vld [vmem:[#allocation6 + $0x118] sm:$0xff]
    %v3209 = vld [vmem:[#allocation6 + $0x120] sm:$0xff]
    %v3210 = vld [vmem:[#allocation6 + $0x128] sm:$0xff]
    %v3211 = vld [vmem:[#allocation6 + $0x130] sm:$0xff]
    %v3212 = vld [vmem:[#allocation6 + $0x138] sm:$0xff]
    %v3213 = vld [vmem:[#allocation6 + $0x140] sm:$0xff]
    %v3214 = vld [vmem:[#allocation6 + $0x148] sm:$0xff]
    %v3215 = vld [vmem:[#allocation6 + $0x150] sm:$0xff]
    %v3216 = vld [vmem:[#allocation6 + $0x158] sm:$0xff]
    %v3217 = vld [vmem:[#allocation6 + $0x160] sm:$0xff]
    %v3218 = vld [vmem:[#allocation6 + $0x168] sm:$0xff]
    %v3219 = vld [vmem:[#allocation6 + $0x170] sm:$0xff]
    %v3220 = vld [vmem:[#allocation6 + $0x178] sm:$0xff]
    %v3221 = vld [vmem:[#allocation6 + $0x180] sm:$0xff]
    %v3222 = vld [vmem:[#allocation6 + $0x188] sm:$0xff]
    %v3223 = vld [vmem:[#allocation6 + $0x190] sm:$0xff]
    %v3224 = vld [vmem:[#allocation6 + $0x198] sm:$0xff]
    %v3225 = vld [vmem:[#allocation6 + $0x1a0] sm:$0xff]
    %v3226 = vld [vmem:[#allocation6 + $0x1a8] sm:$0xff]
    %v3227 = vld [vmem:[#allocation6 + $0x1b0] sm:$0xff]
    %v3228 = vld [vmem:[#allocation6 + $0x1b8] sm:$0xff]
    %v3229 = vld [vmem:[#allocation6 + $0x1c0] sm:$0xff]
    %v3230 = vld [vmem:[#allocation6 + $0x1c8] sm:$0xff]
    %v3231 = vld [vmem:[#allocation6 + $0x1d0] sm:$0xff]
    %v3232 = vld [vmem:[#allocation6 + $0x1d8] sm:$0xff]
    %v3233 = vld [vmem:[#allocation6 + $0x1e0] sm:$0xff]
    %v3234 = vld [vmem:[#allocation6 + $0x1e8] sm:$0xff]
    %v3235 = vld [vmem:[#allocation6 + $0x1f0] sm:$0xff]
    %v3236 = vld [vmem:[#allocation6 + $0x1f8] sm:$0xff]
    %3237 = vmatprep.subr.mxu0 %v3234
    %3238 = vmatpush1.msra.mxu0 %v3233
    %3239 = vmatprep.subr.mxu0 %v3230
    %3240 = vmatpush1.msra.mxu0 %v3229
    %3241 = vmatprep.subr.mxu0 %v3226
    %3242 = vmatpush1.msra.mxu0 %v3225
    %3243 = vmatprep.subr.mxu0 %v3222
    %3244 = vmatpush1.msra.mxu0 %v3221
    %3245 = vmatprep.subr.mxu0 %v3218
    %3246 = vmatpush1.msra.mxu0 %v3217
    %3247 = vmatprep.subr.mxu0 %v3214
    %3248 = vmatpush1.msra.mxu0 %v3213
    %3249 = vmatprep.subr.mxu0 %v3210
    %3250 = vmatpush1.msra.mxu0 %v3209
    %3251 = vmatprep.subr.mxu0 %v3206
    %3252 = vmatpush1.msra.mxu0 %v3205
    %3253 = vmatprep.subr.mxu0 %v3202
    %3254 = vmatpush1.msra.mxu0 %v3201
    %3255 = vmatprep.subr.mxu0 %v3198
    %3256 = vmatpush1.msra.mxu0 %v3197
    %3257 = vmatprep.subr.mxu0 %v3194
    %3258 = vmatpush1.msra.mxu0 %v3193
    %3259 = vmatprep.subr.mxu0 %v3190
    %3260 = vmatpush1.msra.mxu0 %v3189
    %3261 = vmatprep.subr.mxu0 %v3186
    %3262 = vmatpush1.msra.mxu0 %v3185
    %3263 = vmatprep.subr.mxu0 %v3182
    %3264 = vmatpush1.msra.mxu0 %v3181
    %3265 = vmatprep.subr.mxu0 %v3178
    %3266 = vmatpush1.msra.mxu0 %v3177
    %3267 = vmatprep.subr.mxu0 %v3174
    %3268 = vmatpush1.msra.mxu0 %v3173
    %3269 = vmatprep.subr.mxu0 0.0
    %3270 = vmatpush2.msra.mxu0 0.0
    %3271 = vmatprep.subr.mxu0 0.0
    %3272 = vmatpush2.msra.mxu0 0.0
    %3273 = vmatprep.subr.mxu0 0.0
    %3274 = vmatpush2.msra.mxu0 0.0
    %3275 = vmatprep.subr.mxu0 0.0
    %3276 = vmatpush2.msra.mxu0 0.0
    %3277 = vmatprep.subr.mxu0 0.0
    %3278 = vmatpush2.msra.mxu0 0.0
    %3279 = vmatprep.subr.mxu0 0.0
    %3280 = vmatpush2.msra.mxu0 0.0
    %3281 = vmatprep.subr.mxu0 0.0
    %3282 = vmatpush2.msra.mxu0 0.0
    %3283 = vmatprep.subr.mxu0 0.0
    %3284 = vmatpush2.msra.mxu0 0.0
    %3285 = vmatprep.subr.mxu0 0.0
    %3286 = vmatpush2.msra.mxu0 0.0
    %3287 = vmatprep.subr.mxu0 0.0
    %3288 = vmatpush2.msra.mxu0 0.0
    %3289 = vmatprep.subr.mxu0 0.0
    %3290 = vmatpush2.msra.mxu0 0.0
    %3291 = vmatprep.subr.mxu0 0.0
    %3292 = vmatpush2.msra.mxu0 0.0
    %3293 = vmatprep.subr.mxu0 0.0
    %3294 = vmatpush2.msra.mxu0 0.0
    %3295 = vmatprep.subr.mxu0 0.0
    %3296 = vmatpush2.msra.mxu0 0.0
    %3297 = vmatprep.subr.mxu0 0.0
    %3298 = vmatpush2.msra.mxu0 0.0
    %3299 = vmatprep.subr.mxu0 0.0
    %3300 = vmatpush2.msra.mxu0 0.0
    %3301 = vmatprep.mubr.f32.mxu0 0.0
    %3302 = vmatmul.mubr.f32.gmra.mxu0 %v2928
    %v3303 = vpop.f32.mrf.mxu0
    %v3304 = vadd.f32 0.0, %v3303
    %v3305 = vpop.f32.mrf.mxu0
    %v3306 = vadd.f32 0.0, %v3305
    %3307 = vdwg.mxu0
    %3308 = vmatprep.subr.mxu0 %v3236
    %3309 = vmatpush1.msra.mxu0 %v3235
    %3310 = vmatprep.subr.mxu0 %v3232
    %3311 = vmatpush1.msra.mxu0 %v3231
    %3312 = vmatprep.subr.mxu0 %v3228
    %3313 = vmatpush1.msra.mxu0 %v3227
    %3314 = vmatprep.subr.mxu0 %v3224
    %3315 = vmatpush1.msra.mxu0 %v3223
    %3316 = vmatprep.subr.mxu0 %v3220
    %3317 = vmatpush1.msra.mxu0 %v3219
    %3318 = vmatprep.subr.mxu0 %v3216
    %3319 = vmatpush1.msra.mxu0 %v3215
    %3320 = vmatprep.subr.mxu0 %v3212
    %3321 = vmatpush1.msra.mxu0 %v3211
    %3322 = vmatprep.subr.mxu0 %v3208
    %3323 = vmatpush1.msra.mxu0 %v3207
    %3324 = vmatprep.subr.mxu0 %v3204
    %3325 = vmatpush1.msra.mxu0 %v3203
    %3326 = vmatprep.subr.mxu0 %v3200
    %3327 = vmatpush1.msra.mxu0 %v3199
    %3328 = vmatprep.subr.mxu0 %v3196
    %3329 = vmatpush1.msra.mxu0 %v3195
    %3330 = vmatprep.subr.mxu0 %v3192
    %3331 = vmatpush1.msra.mxu0 %v3191
    %3332 = vmatprep.subr.mxu0 %v3188
    %3333 = vmatpush1.msra.mxu0 %v3187
    %3334 = vmatprep.subr.mxu0 %v3184
    %3335 = vmatpush1.msra.mxu0 %v3183
    %3336 = vmatprep.subr.mxu0 %v3180
    %3337 = vmatpush1.msra.mxu0 %v3179
    %3338 = vmatprep.subr.mxu0 %v3176
    %3339 = vmatpush1.msra.mxu0 %v3175
    %3340 = vmatprep.subr.mxu0 0.0
    %3341 = vmatpush2.msra.mxu0 0.0
    %3342 = vmatprep.subr.mxu0 0.0
    %3343 = vmatpush2.msra.mxu0 0.0
    %3344 = vmatprep.subr.mxu0 0.0
    %3345 = vmatpush2.msra.mxu0 0.0
    %3346 = vmatprep.subr.mxu0 0.0
    %3347 = vmatpush2.msra.mxu0 0.0
    %3348 = vmatprep.subr.mxu0 0.0
    %3349 = vmatpush2.msra.mxu0 0.0
    %3350 = vmatprep.subr.mxu0 0.0
    %3351 = vmatpush2.msra.mxu0 0.0
    %3352 = vmatprep.subr.mxu0 0.0
    %3353 = vmatpush2.msra.mxu0 0.0
    %3354 = vmatprep.subr.mxu0 0.0
    %3355 = vmatpush2.msra.mxu0 0.0
    %3356 = vmatprep.subr.mxu0 0.0
    %3357 = vmatpush2.msra.mxu0 0.0
    %3358 = vmatprep.subr.mxu0 0.0
    %3359 = vmatpush2.msra.mxu0 0.0
    %3360 = vmatprep.subr.mxu0 0.0
    %3361 = vmatpush2.msra.mxu0 0.0
    %3362 = vmatprep.subr.mxu0 0.0
    %3363 = vmatpush2.msra.mxu0 0.0
    %3364 = vmatprep.subr.mxu0 0.0
    %3365 = vmatpush2.msra.mxu0 0.0
    %3366 = vmatprep.subr.mxu0 0.0
    %3367 = vmatpush2.msra.mxu0 0.0
    %3368 = vmatprep.subr.mxu0 0.0
    %3369 = vmatpush2.msra.mxu0 0.0
    %3370 = vmatprep.subr.mxu0 0.0
    %3371 = vmatpush2.msra.mxu0 0.0
    %3372 = vmatprep.mubr.f32.mxu0 0.0
    %3373 = vmatmul.mubr.f32.gmra.mxu0 %v2928
    %v3374 = vpop.f32.mrf.mxu0
    %v3375 = vadd.f32 0.0, %v3374
    %v3376 = vpop.f32.mrf.mxu0
    %v3377 = vadd.f32 0.0, %v3376
    %3378 = vdwg.mxu0
    %v3379 = vadd.f32 %v3165, %v3304
    %v3380 = vadd.f32 %v3166, %v3306
    %v3381 = vadd.f32 %v3167, %v3375
    %v3382 = vadd.f32 %v3168, %v3377
    %v3383 = vxor.u32 %v3379, 2147483648
    %v3384 = vmul.f32 %v3383, 1.442695
    %v3385 = vpow.pop %v3384
    %v3386 = vadd.f32 %v3385, 1.0
    %v3387 = vrcp.pop %v3386
    %v3388 = vmul.f32 1.0, %v3387
    %v3389 = vxor.u32 %v3380, 2147483648
    %v3390 = vmul.f32 %v3389, 1.442695
    %v3391 = vpow.pop %v3390
    %v3392 = vadd.f32 %v3391, 1.0
    %v3393 = vrcp.pop %v3392
    %v3394 = vmul.f32 1.0, %v3393
    %v3395 = vtanh.pop %v3381
    %v3396 = vxor.u32 %v3382, 2147483648
    %v3397 = vmul.f32 %v3396, 1.442695
    %v3398 = vpow.pop %v3397
    %v3399 = vadd.f32 %v3398, 1.0
    %v3400 = vrcp.pop %v3399
    %v3401 = vmul.f32 1.0, %v3400
    %v3402 = vmul.f32 %v3394, %v2926
    %v3403 = vmul.f32 %v3388, %v3395
    %v3404 = vadd.f32 %v3402, %v3403
    %v3405 = vtanh.pop %v3404
    %v3406 = vmul.f32 %v3401, %v3405
    %v3407 = vld [vmem:[#allocation8] sm:$0xff]
    %v3408 = vld [vmem:[#allocation8 + $0x8] sm:$0xff]
    %v3409 = vld [vmem:[#allocation8 + $0x10] sm:$0xff]
    %v3410 = vld [vmem:[#allocation8 + $0x18] sm:$0xff]
    %v3411 = vld [vmem:[#allocation8 + $0x20] sm:$0xff]
    %v3412 = vld [vmem:[#allocation8 + $0x28] sm:$0xff]
    %v3413 = vld [vmem:[#allocation8 + $0x30] sm:$0xff]
    %v3414 = vld [vmem:[#allocation8 + $0x38] sm:$0xff]
    %v3415 = vld [vmem:[#allocation8 + $0x40] sm:$0xff]
    %v3416 = vld [vmem:[#allocation8 + $0x48] sm:$0xff]
    %v3417 = vld [vmem:[#allocation8 + $0x50] sm:$0xff]
    %v3418 = vld [vmem:[#allocation8 + $0x58] sm:$0xff]
    %v3419 = vld [vmem:[#allocation8 + $0x60] sm:$0xff]
    %v3420 = vld [vmem:[#allocation8 + $0x68] sm:$0xff]
    %v3421 = vld [vmem:[#allocation8 + $0x70] sm:$0xff]
    %v3422 = vld [vmem:[#allocation8 + $0x78] sm:$0xff]
    %v3423 = vld [vmem:[#allocation8 + $0x80] sm:$0xff]
    %v3424 = vld [vmem:[#allocation8 + $0x88] sm:$0xff]
    %v3425 = vld [vmem:[#allocation8 + $0x90] sm:$0xff]
    %v3426 = vld [vmem:[#allocation8 + $0x98] sm:$0xff]
    %v3427 = vld [vmem:[#allocation8 + $0xa0] sm:$0xff]
    %v3428 = vld [vmem:[#allocation8 + $0xa8] sm:$0xff]
    %v3429 = vld [vmem:[#allocation8 + $0xb0] sm:$0xff]
    %v3430 = vld [vmem:[#allocation8 + $0xb8] sm:$0xff]
    %v3431 = vld [vmem:[#allocation8 + $0xc0] sm:$0xff]
    %v3432 = vld [vmem:[#allocation8 + $0xc8] sm:$0xff]
    %v3433 = vld [vmem:[#allocation8 + $0xd0] sm:$0xff]
    %v3434 = vld [vmem:[#allocation8 + $0xd8] sm:$0xff]
    %v3435 = vld [vmem:[#allocation8 + $0xe0] sm:$0xff]
    %v3436 = vld [vmem:[#allocation8 + $0xe8] sm:$0xff]
    %v3437 = vld [vmem:[#allocation8 + $0xf0] sm:$0xff]
    %v3438 = vld [vmem:[#allocation8 + $0xf8] sm:$0xff]
    %v3439 = vld [vmem:[#allocation8 + $0x100] sm:$0xff]
    %v3440 = vld [vmem:[#allocation8 + $0x108] sm:$0xff]
    %v3441 = vld [vmem:[#allocation8 + $0x110] sm:$0xff]
    %v3442 = vld [vmem:[#allocation8 + $0x118] sm:$0xff]
    %v3443 = vld [vmem:[#allocation8 + $0x120] sm:$0xff]
    %v3444 = vld [vmem:[#allocation8 + $0x128] sm:$0xff]
    %v3445 = vld [vmem:[#allocation8 + $0x130] sm:$0xff]
    %v3446 = vld [vmem:[#allocation8 + $0x138] sm:$0xff]
    %v3447 = vld [vmem:[#allocation8 + $0x140] sm:$0xff]
    %v3448 = vld [vmem:[#allocation8 + $0x148] sm:$0xff]
    %v3449 = vld [vmem:[#allocation8 + $0x150] sm:$0xff]
    %v3450 = vld [vmem:[#allocation8 + $0x158] sm:$0xff]
    %v3451 = vld [vmem:[#allocation8 + $0x160] sm:$0xff]
    %v3452 = vld [vmem:[#allocation8 + $0x168] sm:$0xff]
    %v3453 = vld [vmem:[#allocation8 + $0x170] sm:$0xff]
    %v3454 = vld [vmem:[#allocation8 + $0x178] sm:$0xff]
    %v3455 = vld [vmem:[#allocation8 + $0x180] sm:$0xff]
    %v3456 = vld [vmem:[#allocation8 + $0x188] sm:$0xff]
    %v3457 = vld [vmem:[#allocation8 + $0x190] sm:$0xff]
    %v3458 = vld [vmem:[#allocation8 + $0x198] sm:$0xff]
    %v3459 = vld [vmem:[#allocation8 + $0x1a0] sm:$0xff]
    %v3460 = vld [vmem:[#allocation8 + $0x1a8] sm:$0xff]
    %v3461 = vld [vmem:[#allocation8 + $0x1b0] sm:$0xff]
    %v3462 = vld [vmem:[#allocation8 + $0x1b8] sm:$0xff]
    %v3463 = vld [vmem:[#allocation8 + $0x1c0] sm:$0xff]
    %v3464 = vld [vmem:[#allocation8 + $0x1c8] sm:$0xff]
    %v3465 = vld [vmem:[#allocation8 + $0x1d0] sm:$0xff]
    %v3466 = vld [vmem:[#allocation8 + $0x1d8] sm:$0xff]
    %v3467 = vld [vmem:[#allocation8 + $0x1e0] sm:$0xff]
    %v3468 = vld [vmem:[#allocation8 + $0x1e8] sm:$0xff]
    %v3469 = vld [vmem:[#allocation8 + $0x1f0] sm:$0xff]
    %v3470 = vld [vmem:[#allocation8 + $0x1f8] sm:$0xff]
    %3471 = vmatprep.subr.mxu0 %v3468
    %3472 = vmatpush1.msra.mxu0 %v3467
    %3473 = vmatprep.subr.mxu0 %v3464
    %3474 = vmatpush1.msra.mxu0 %v3463
    %3475 = vmatprep.subr.mxu0 %v3460
    %3476 = vmatpush1.msra.mxu0 %v3459
    %3477 = vmatprep.subr.mxu0 %v3456
    %3478 = vmatpush1.msra.mxu0 %v3455
    %3479 = vmatprep.subr.mxu0 %v3452
    %3480 = vmatpush1.msra.mxu0 %v3451
    %3481 = vmatprep.subr.mxu0 %v3448
    %3482 = vmatpush1.msra.mxu0 %v3447
    %3483 = vmatprep.subr.mxu0 %v3444
    %3484 = vmatpush1.msra.mxu0 %v3443
    %3485 = vmatprep.subr.mxu0 %v3440
    %3486 = vmatpush1.msra.mxu0 %v3439
    %3487 = vmatprep.subr.mxu0 %v3436
    %3488 = vmatpush1.msra.mxu0 %v3435
    %3489 = vmatprep.subr.mxu0 %v3432
    %3490 = vmatpush1.msra.mxu0 %v3431
    %3491 = vmatprep.subr.mxu0 %v3428
    %3492 = vmatpush1.msra.mxu0 %v3427
    %3493 = vmatprep.subr.mxu0 %v3424
    %3494 = vmatpush1.msra.mxu0 %v3423
    %3495 = vmatprep.subr.mxu0 %v3420
    %3496 = vmatpush1.msra.mxu0 %v3419
    %3497 = vmatprep.subr.mxu0 %v3416
    %3498 = vmatpush1.msra.mxu0 %v3415
    %3499 = vmatprep.subr.mxu0 %v3412
    %3500 = vmatpush1.msra.mxu0 %v3411
    %3501 = vmatprep.subr.mxu0 %v3408
    %3502 = vmatpush1.msra.mxu0 %v3407
    %3503 = vmatprep.subr.mxu0 0.0
    %3504 = vmatpush2.msra.mxu0 0.0
    %3505 = vmatprep.subr.mxu0 0.0
    %3506 = vmatpush2.msra.mxu0 0.0
    %3507 = vmatprep.subr.mxu0 0.0
    %3508 = vmatpush2.msra.mxu0 0.0
    %3509 = vmatprep.subr.mxu0 0.0
    %3510 = vmatpush2.msra.mxu0 0.0
    %3511 = vmatprep.subr.mxu0 0.0
    %3512 = vmatpush2.msra.mxu0 0.0
    %3513 = vmatprep.subr.mxu0 0.0
    %3514 = vmatpush2.msra.mxu0 0.0
    %3515 = vmatprep.subr.mxu0 0.0
    %3516 = vmatpush2.msra.mxu0 0.0
    %3517 = vmatprep.subr.mxu0 0.0
    %3518 = vmatpush2.msra.mxu0 0.0
    %3519 = vmatprep.subr.mxu0 0.0
    %3520 = vmatpush2.msra.mxu0 0.0
    %3521 = vmatprep.subr.mxu0 0.0
    %3522 = vmatpush2.msra.mxu0 0.0
    %3523 = vmatprep.subr.mxu0 0.0
    %3524 = vmatpush2.msra.mxu0 0.0
    %3525 = vmatprep.subr.mxu0 0.0
    %3526 = vmatpush2.msra.mxu0 0.0
    %3527 = vmatprep.subr.mxu0 0.0
    %3528 = vmatpush2.msra.mxu0 0.0
    %3529 = vmatprep.subr.mxu0 0.0
    %3530 = vmatpush2.msra.mxu0 0.0
    %3531 = vmatprep.subr.mxu0 0.0
    %3532 = vmatpush2.msra.mxu0 0.0
    %3533 = vmatprep.subr.mxu0 0.0
    %3534 = vmatpush2.msra.mxu0 0.0
    %3535 = vmatprep.mubr.f32.mxu0 0.0
    %3536 = vmatmul.mubr.f32.gmra.mxu0 %v3162
    %v3537 = vpop.f32.mrf.mxu0
    %v3538 = vadd.f32 0.0, %v3537
    %v3539 = vpop.f32.mrf.mxu0
    %v3540 = vadd.f32 0.0, %v3539
    %3541 = vdwg.mxu0
    %3542 = vmatprep.subr.mxu0 %v3470
    %3543 = vmatpush1.msra.mxu0 %v3469
    %3544 = vmatprep.subr.mxu0 %v3466
    %3545 = vmatpush1.msra.mxu0 %v3465
    %3546 = vmatprep.subr.mxu0 %v3462
    %3547 = vmatpush1.msra.mxu0 %v3461
    %3548 = vmatprep.subr.mxu0 %v3458
    %3549 = vmatpush1.msra.mxu0 %v3457
    %3550 = vmatprep.subr.mxu0 %v3454
    %3551 = vmatpush1.msra.mxu0 %v3453
    %3552 = vmatprep.subr.mxu0 %v3450
    %3553 = vmatpush1.msra.mxu0 %v3449
    %3554 = vmatprep.subr.mxu0 %v3446
    %3555 = vmatpush1.msra.mxu0 %v3445
    %3556 = vmatprep.subr.mxu0 %v3442
    %3557 = vmatpush1.msra.mxu0 %v3441
    %3558 = vmatprep.subr.mxu0 %v3438
    %3559 = vmatpush1.msra.mxu0 %v3437
    %3560 = vmatprep.subr.mxu0 %v3434
    %3561 = vmatpush1.msra.mxu0 %v3433
    %3562 = vmatprep.subr.mxu0 %v3430
    %3563 = vmatpush1.msra.mxu0 %v3429
    %3564 = vmatprep.subr.mxu0 %v3426
    %3565 = vmatpush1.msra.mxu0 %v3425
    %3566 = vmatprep.subr.mxu0 %v3422
    %3567 = vmatpush1.msra.mxu0 %v3421
    %3568 = vmatprep.subr.mxu0 %v3418
    %3569 = vmatpush1.msra.mxu0 %v3417
    %3570 = vmatprep.subr.mxu0 %v3414
    %3571 = vmatpush1.msra.mxu0 %v3413
    %3572 = vmatprep.subr.mxu0 %v3410
    %3573 = vmatpush1.msra.mxu0 %v3409
    %3574 = vmatprep.subr.mxu0 0.0
    %3575 = vmatpush2.msra.mxu0 0.0
    %3576 = vmatprep.subr.mxu0 0.0
    %3577 = vmatpush2.msra.mxu0 0.0
    %3578 = vmatprep.subr.mxu0 0.0
    %3579 = vmatpush2.msra.mxu0 0.0
    %3580 = vmatprep.subr.mxu0 0.0
    %3581 = vmatpush2.msra.mxu0 0.0
    %3582 = vmatprep.subr.mxu0 0.0
    %3583 = vmatpush2.msra.mxu0 0.0
    %3584 = vmatprep.subr.mxu0 0.0
    %3585 = vmatpush2.msra.mxu0 0.0
    %3586 = vmatprep.subr.mxu0 0.0
    %3587 = vmatpush2.msra.mxu0 0.0
    %3588 = vmatprep.subr.mxu0 0.0
    %3589 = vmatpush2.msra.mxu0 0.0
    %3590 = vmatprep.subr.mxu0 0.0
    %3591 = vmatpush2.msra.mxu0 0.0
    %3592 = vmatprep.subr.mxu0 0.0
    %3593 = vmatpush2.msra.mxu0 0.0
    %3594 = vmatprep.subr.mxu0 0.0
    %3595 = vmatpush2.msra.mxu0 0.0
    %3596 = vmatprep.subr.mxu0 0.0
    %3597 = vmatpush2.msra.mxu0 0.0
    %3598 = vmatprep.subr.mxu0 0.0
    %3599 = vmatpush2.msra.mxu0 0.0
    %3600 = vmatprep.subr.mxu0 0.0
    %3601 = vmatpush2.msra.mxu0 0.0
    %3602 = vmatprep.subr.mxu0 0.0
    %3603 = vmatpush2.msra.mxu0 0.0
    %3604 = vmatprep.subr.mxu0 0.0
    %3605 = vmatpush2.msra.mxu0 0.0
    %3606 = vmatprep.mubr.f32.mxu0 0.0
    %3607 = vmatmul.mubr.f32.gmra.mxu0 %v3162
    %v3608 = vpop.f32.mrf.mxu0
    %v3609 = vadd.f32 0.0, %v3608
    %v3610 = vpop.f32.mrf.mxu0
    %v3611 = vadd.f32 0.0, %v3610
    %3612 = vdwg.mxu0
    %v3613 = vadd.f32 %v3169, %v3538
    %v3614 = vadd.f32 %v3170, %v3540
    %v3615 = vadd.f32 %v3171, %v3609
    %v3616 = vadd.f32 %v3172, %v3611
    %v3617 = vxor.u32 %v3613, 2147483648
    %v3618 = vmul.f32 %v3617, 1.442695
    %v3619 = vpow.pop %v3618
    %v3620 = vadd.f32 %v3619, 1.0
    %v3621 = vrcp.pop %v3620
    %v3622 = vmul.f32 1.0, %v3621
    %v3623 = vxor.u32 %v3614, 2147483648
    %v3624 = vmul.f32 %v3623, 1.442695
    %v3625 = vpow.pop %v3624
    %v3626 = vadd.f32 %v3625, 1.0
    %v3627 = vrcp.pop %v3626
    %v3628 = vmul.f32 1.0, %v3627
    %v3629 = vtanh.pop %v3615
    %v3630 = vxor.u32 %v3616, 2147483648
    %v3631 = vmul.f32 %v3630, 1.442695
    %v3632 = vpow.pop %v3631
    %v3633 = vadd.f32 %v3632, 1.0
    %v3634 = vrcp.pop %v3633
    %v3635 = vmul.f32 1.0, %v3634
    %v3636 = vmul.f32 %v3628, %v3160
    %v3637 = vmul.f32 %v3622, %v3629
    %v3638 = vadd.f32 %v3636, %v3637
    %v3639 = vtanh.pop %v3638
    %v3640 = vmul.f32 %v3635, %v3639
    %3641 = vst [vmem:[#allocation3 + $0x50] sm:$0xff] %v3406
    %3642 = vst [vmem:[#allocation3 + $0x28] sm:$0xff] %v3640
    %v3643 = vld [vmem:[#allocation2 + $0x180] sm:$0xff]
    %v3644 = vld [vmem:[#allocation2 + $0x188] sm:$0xff]
    %v3645 = vld [vmem:[#allocation2 + $0x190] sm:$0xff]
    %v3646 = vld [vmem:[#allocation2 + $0x198] sm:$0xff]
    %v3647 = vld [vmem:[#allocation2 + $0x60] sm:$0xff]
    %v3648 = vld [vmem:[#allocation2 + $0x68] sm:$0xff]
    %v3649 = vld [vmem:[#allocation2 + $0x70] sm:$0xff]
    %v3650 = vld [vmem:[#allocation2 + $0x78] sm:$0xff]
    %v3651 = vld [vmem:[#allocation6] sm:$0xff]
    %v3652 = vld [vmem:[#allocation6 + $0x8] sm:$0xff]
    %v3653 = vld [vmem:[#allocation6 + $0x10] sm:$0xff]
    %v3654 = vld [vmem:[#allocation6 + $0x18] sm:$0xff]
    %v3655 = vld [vmem:[#allocation6 + $0x20] sm:$0xff]
    %v3656 = vld [vmem:[#allocation6 + $0x28] sm:$0xff]
    %v3657 = vld [vmem:[#allocation6 + $0x30] sm:$0xff]
    %v3658 = vld [vmem:[#allocation6 + $0x38] sm:$0xff]
    %v3659 = vld [vmem:[#allocation6 + $0x40] sm:$0xff]
    %v3660 = vld [vmem:[#allocation6 + $0x48] sm:$0xff]
    %v3661 = vld [vmem:[#allocation6 + $0x50] sm:$0xff]
    %v3662 = vld [vmem:[#allocation6 + $0x58] sm:$0xff]
    %v3663 = vld [vmem:[#allocation6 + $0x60] sm:$0xff]
    %v3664 = vld [vmem:[#allocation6 + $0x68] sm:$0xff]
    %v3665 = vld [vmem:[#allocation6 + $0x70] sm:$0xff]
    %v3666 = vld [vmem:[#allocation6 + $0x78] sm:$0xff]
    %v3667 = vld [vmem:[#allocation6 + $0x80] sm:$0xff]
    %v3668 = vld [vmem:[#allocation6 + $0x88] sm:$0xff]
    %v3669 = vld [vmem:[#allocation6 + $0x90] sm:$0xff]
    %v3670 = vld [vmem:[#allocation6 + $0x98] sm:$0xff]
    %v3671 = vld [vmem:[#allocation6 + $0xa0] sm:$0xff]
    %v3672 = vld [vmem:[#allocation6 + $0xa8] sm:$0xff]
    %v3673 = vld [vmem:[#allocation6 + $0xb0] sm:$0xff]
    %v3674 = vld [vmem:[#allocation6 + $0xb8] sm:$0xff]
    %v3675 = vld [vmem:[#allocation6 + $0xc0] sm:$0xff]
    %v3676 = vld [vmem:[#allocation6 + $0xc8] sm:$0xff]
    %v3677 = vld [vmem:[#allocation6 + $0xd0] sm:$0xff]
    %v3678 = vld [vmem:[#allocation6 + $0xd8] sm:$0xff]
    %v3679 = vld [vmem:[#allocation6 + $0xe0] sm:$0xff]
    %v3680 = vld [vmem:[#allocation6 + $0xe8] sm:$0xff]
    %v3681 = vld [vmem:[#allocation6 + $0xf0] sm:$0xff]
    %v3682 = vld [vmem:[#allocation6 + $0xf8] sm:$0xff]
    %v3683 = vld [vmem:[#allocation6 + $0x100] sm:$0xff]
    %v3684 = vld [vmem:[#allocation6 + $0x108] sm:$0xff]
    %v3685 = vld [vmem:[#allocation6 + $0x110] sm:$0xff]
    %v3686 = vld [vmem:[#allocation6 + $0x118] sm:$0xff]
    %v3687 = vld [vmem:[#allocation6 + $0x120] sm:$0xff]
    %v3688 = vld [vmem:[#allocation6 + $0x128] sm:$0xff]
    %v3689 = vld [vmem:[#allocation6 + $0x130] sm:$0xff]
    %v3690 = vld [vmem:[#allocation6 + $0x138] sm:$0xff]
    %v3691 = vld [vmem:[#allocation6 + $0x140] sm:$0xff]
    %v3692 = vld [vmem:[#allocation6 + $0x148] sm:$0xff]
    %v3693 = vld [vmem:[#allocation6 + $0x150] sm:$0xff]
    %v3694 = vld [vmem:[#allocation6 + $0x158] sm:$0xff]
    %v3695 = vld [vmem:[#allocation6 + $0x160] sm:$0xff]
    %v3696 = vld [vmem:[#allocation6 + $0x168] sm:$0xff]
    %v3697 = vld [vmem:[#allocation6 + $0x170] sm:$0xff]
    %v3698 = vld [vmem:[#allocation6 + $0x178] sm:$0xff]
    %v3699 = vld [vmem:[#allocation6 + $0x180] sm:$0xff]
    %v3700 = vld [vmem:[#allocation6 + $0x188] sm:$0xff]
    %v3701 = vld [vmem:[#allocation6 + $0x190] sm:$0xff]
    %v3702 = vld [vmem:[#allocation6 + $0x198] sm:$0xff]
    %v3703 = vld [vmem:[#allocation6 + $0x1a0] sm:$0xff]
    %v3704 = vld [vmem:[#allocation6 + $0x1a8] sm:$0xff]
    %v3705 = vld [vmem:[#allocation6 + $0x1b0] sm:$0xff]
    %v3706 = vld [vmem:[#allocation6 + $0x1b8] sm:$0xff]
    %v3707 = vld [vmem:[#allocation6 + $0x1c0] sm:$0xff]
    %v3708 = vld [vmem:[#allocation6 + $0x1c8] sm:$0xff]
    %v3709 = vld [vmem:[#allocation6 + $0x1d0] sm:$0xff]
    %v3710 = vld [vmem:[#allocation6 + $0x1d8] sm:$0xff]
    %v3711 = vld [vmem:[#allocation6 + $0x1e0] sm:$0xff]
    %v3712 = vld [vmem:[#allocation6 + $0x1e8] sm:$0xff]
    %v3713 = vld [vmem:[#allocation6 + $0x1f0] sm:$0xff]
    %v3714 = vld [vmem:[#allocation6 + $0x1f8] sm:$0xff]
    %3715 = vmatprep.subr.mxu0 %v3712
    %3716 = vmatpush1.msra.mxu0 %v3711
    %3717 = vmatprep.subr.mxu0 %v3708
    %3718 = vmatpush1.msra.mxu0 %v3707
    %3719 = vmatprep.subr.mxu0 %v3704
    %3720 = vmatpush1.msra.mxu0 %v3703
    %3721 = vmatprep.subr.mxu0 %v3700
    %3722 = vmatpush1.msra.mxu0 %v3699
    %3723 = vmatprep.subr.mxu0 %v3696
    %3724 = vmatpush1.msra.mxu0 %v3695
    %3725 = vmatprep.subr.mxu0 %v3692
    %3726 = vmatpush1.msra.mxu0 %v3691
    %3727 = vmatprep.subr.mxu0 %v3688
    %3728 = vmatpush1.msra.mxu0 %v3687
    %3729 = vmatprep.subr.mxu0 %v3684
    %3730 = vmatpush1.msra.mxu0 %v3683
    %3731 = vmatprep.subr.mxu0 %v3680
    %3732 = vmatpush1.msra.mxu0 %v3679
    %3733 = vmatprep.subr.mxu0 %v3676
    %3734 = vmatpush1.msra.mxu0 %v3675
    %3735 = vmatprep.subr.mxu0 %v3672
    %3736 = vmatpush1.msra.mxu0 %v3671
    %3737 = vmatprep.subr.mxu0 %v3668
    %3738 = vmatpush1.msra.mxu0 %v3667
    %3739 = vmatprep.subr.mxu0 %v3664
    %3740 = vmatpush1.msra.mxu0 %v3663
    %3741 = vmatprep.subr.mxu0 %v3660
    %3742 = vmatpush1.msra.mxu0 %v3659
    %3743 = vmatprep.subr.mxu0 %v3656
    %3744 = vmatpush1.msra.mxu0 %v3655
    %3745 = vmatprep.subr.mxu0 %v3652
    %3746 = vmatpush1.msra.mxu0 %v3651
    %3747 = vmatprep.subr.mxu0 0.0
    %3748 = vmatpush2.msra.mxu0 0.0
    %3749 = vmatprep.subr.mxu0 0.0
    %3750 = vmatpush2.msra.mxu0 0.0
    %3751 = vmatprep.subr.mxu0 0.0
    %3752 = vmatpush2.msra.mxu0 0.0
    %3753 = vmatprep.subr.mxu0 0.0
    %3754 = vmatpush2.msra.mxu0 0.0
    %3755 = vmatprep.subr.mxu0 0.0
    %3756 = vmatpush2.msra.mxu0 0.0
    %3757 = vmatprep.subr.mxu0 0.0
    %3758 = vmatpush2.msra.mxu0 0.0
    %3759 = vmatprep.subr.mxu0 0.0
    %3760 = vmatpush2.msra.mxu0 0.0
    %3761 = vmatprep.subr.mxu0 0.0
    %3762 = vmatpush2.msra.mxu0 0.0
    %3763 = vmatprep.subr.mxu0 0.0
    %3764 = vmatpush2.msra.mxu0 0.0
    %3765 = vmatprep.subr.mxu0 0.0
    %3766 = vmatpush2.msra.mxu0 0.0
    %3767 = vmatprep.subr.mxu0 0.0
    %3768 = vmatpush2.msra.mxu0 0.0
    %3769 = vmatprep.subr.mxu0 0.0
    %3770 = vmatpush2.msra.mxu0 0.0
    %3771 = vmatprep.subr.mxu0 0.0
    %3772 = vmatpush2.msra.mxu0 0.0
    %3773 = vmatprep.subr.mxu0 0.0
    %3774 = vmatpush2.msra.mxu0 0.0
    %3775 = vmatprep.subr.mxu0 0.0
    %3776 = vmatpush2.msra.mxu0 0.0
    %3777 = vmatprep.subr.mxu0 0.0
    %3778 = vmatpush2.msra.mxu0 0.0
    %3779 = vmatprep.mubr.f32.mxu0 0.0
    %3780 = vmatmul.mubr.f32.gmra.mxu0 %v3406
    %v3781 = vpop.f32.mrf.mxu0
    %v3782 = vadd.f32 0.0, %v3781
    %v3783 = vpop.f32.mrf.mxu0
    %v3784 = vadd.f32 0.0, %v3783
    %3785 = vdwg.mxu0
    %3786 = vmatprep.subr.mxu0 %v3714
    %3787 = vmatpush1.msra.mxu0 %v3713
    %3788 = vmatprep.subr.mxu0 %v3710
    %3789 = vmatpush1.msra.mxu0 %v3709
    %3790 = vmatprep.subr.mxu0 %v3706
    %3791 = vmatpush1.msra.mxu0 %v3705
    %3792 = vmatprep.subr.mxu0 %v3702
    %3793 = vmatpush1.msra.mxu0 %v3701
    %3794 = vmatprep.subr.mxu0 %v3698
    %3795 = vmatpush1.msra.mxu0 %v3697
    %3796 = vmatprep.subr.mxu0 %v3694
    %3797 = vmatpush1.msra.mxu0 %v3693
    %3798 = vmatprep.subr.mxu0 %v3690
    %3799 = vmatpush1.msra.mxu0 %v3689
    %3800 = vmatprep.subr.mxu0 %v3686
    %3801 = vmatpush1.msra.mxu0 %v3685
    %3802 = vmatprep.subr.mxu0 %v3682
    %3803 = vmatpush1.msra.mxu0 %v3681
    %3804 = vmatprep.subr.mxu0 %v3678
    %3805 = vmatpush1.msra.mxu0 %v3677
    %3806 = vmatprep.subr.mxu0 %v3674
    %3807 = vmatpush1.msra.mxu0 %v3673
    %3808 = vmatprep.subr.mxu0 %v3670
    %3809 = vmatpush1.msra.mxu0 %v3669
    %3810 = vmatprep.subr.mxu0 %v3666
    %3811 = vmatpush1.msra.mxu0 %v3665
    %3812 = vmatprep.subr.mxu0 %v3662
    %3813 = vmatpush1.msra.mxu0 %v3661
    %3814 = vmatprep.subr.mxu0 %v3658
    %3815 = vmatpush1.msra.mxu0 %v3657
    %3816 = vmatprep.subr.mxu0 %v3654
    %3817 = vmatpush1.msra.mxu0 %v3653
    %3818 = vmatprep.subr.mxu0 0.0
    %3819 = vmatpush2.msra.mxu0 0.0
    %3820 = vmatprep.subr.mxu0 0.0
    %3821 = vmatpush2.msra.mxu0 0.0
    %3822 = vmatprep.subr.mxu0 0.0
    %3823 = vmatpush2.msra.mxu0 0.0
    %3824 = vmatprep.subr.mxu0 0.0
    %3825 = vmatpush2.msra.mxu0 0.0
    %3826 = vmatprep.subr.mxu0 0.0
    %3827 = vmatpush2.msra.mxu0 0.0
    %3828 = vmatprep.subr.mxu0 0.0
    %3829 = vmatpush2.msra.mxu0 0.0
    %3830 = vmatprep.subr.mxu0 0.0
    %3831 = vmatpush2.msra.mxu0 0.0
    %3832 = vmatprep.subr.mxu0 0.0
    %3833 = vmatpush2.msra.mxu0 0.0
    %3834 = vmatprep.subr.mxu0 0.0
    %3835 = vmatpush2.msra.mxu0 0.0
    %3836 = vmatprep.subr.mxu0 0.0
    %3837 = vmatpush2.msra.mxu0 0.0
    %3838 = vmatprep.subr.mxu0 0.0
    %3839 = vmatpush2.msra.mxu0 0.0
    %3840 = vmatprep.subr.mxu0 0.0
    %3841 = vmatpush2.msra.mxu0 0.0
    %3842 = vmatprep.subr.mxu0 0.0
    %3843 = vmatpush2.msra.mxu0 0.0
    %3844 = vmatprep.subr.mxu0 0.0
    %3845 = vmatpush2.msra.mxu0 0.0
    %3846 = vmatprep.subr.mxu0 0.0
    %3847 = vmatpush2.msra.mxu0 0.0
    %3848 = vmatprep.subr.mxu0 0.0
    %3849 = vmatpush2.msra.mxu0 0.0
    %3850 = vmatprep.mubr.f32.mxu0 0.0
    %3851 = vmatmul.mubr.f32.gmra.mxu0 %v3406
    %v3852 = vpop.f32.mrf.mxu0
    %v3853 = vadd.f32 0.0, %v3852
    %v3854 = vpop.f32.mrf.mxu0
    %v3855 = vadd.f32 0.0, %v3854
    %3856 = vdwg.mxu0
    %v3857 = vadd.f32 %v3643, %v3782
    %v3858 = vadd.f32 %v3644, %v3784
    %v3859 = vadd.f32 %v3645, %v3853
    %v3860 = vadd.f32 %v3646, %v3855
    %v3861 = vxor.u32 %v3857, 2147483648
    %v3862 = vmul.f32 %v3861, 1.442695
    %v3863 = vpow.pop %v3862
    %v3864 = vadd.f32 %v3863, 1.0
    %v3865 = vrcp.pop %v3864
    %v3866 = vmul.f32 1.0, %v3865
    %v3867 = vxor.u32 %v3858, 2147483648
    %v3868 = vmul.f32 %v3867, 1.442695
    %v3869 = vpow.pop %v3868
    %v3870 = vadd.f32 %v3869, 1.0
    %v3871 = vrcp.pop %v3870
    %v3872 = vmul.f32 1.0, %v3871
    %v3873 = vtanh.pop %v3859
    %v3874 = vxor.u32 %v3860, 2147483648
    %v3875 = vmul.f32 %v3874, 1.442695
    %v3876 = vpow.pop %v3875
    %v3877 = vadd.f32 %v3876, 1.0
    %v3878 = vrcp.pop %v3877
    %v3879 = vmul.f32 1.0, %v3878
    %v3880 = vmul.f32 %v3872, %v3404
    %v3881 = vmul.f32 %v3866, %v3873
    %v3882 = vadd.f32 %v3880, %v3881
    %v3883 = vtanh.pop %v3882
    %v3884 = vmul.f32 %v3879, %v3883
    %v3885 = vld [vmem:[#allocation8] sm:$0xff]
    %v3886 = vld [vmem:[#allocation8 + $0x8] sm:$0xff]
    %v3887 = vld [vmem:[#allocation8 + $0x10] sm:$0xff]
    %v3888 = vld [vmem:[#allocation8 + $0x18] sm:$0xff]
    %v3889 = vld [vmem:[#allocation8 + $0x20] sm:$0xff]
    %v3890 = vld [vmem:[#allocation8 + $0x28] sm:$0xff]
    %v3891 = vld [vmem:[#allocation8 + $0x30] sm:$0xff]
    %v3892 = vld [vmem:[#allocation8 + $0x38] sm:$0xff]
    %v3893 = vld [vmem:[#allocation8 + $0x40] sm:$0xff]
    %v3894 = vld [vmem:[#allocation8 + $0x48] sm:$0xff]
    %v3895 = vld [vmem:[#allocation8 + $0x50] sm:$0xff]
    %v3896 = vld [vmem:[#allocation8 + $0x58] sm:$0xff]
    %v3897 = vld [vmem:[#allocation8 + $0x60] sm:$0xff]
    %v3898 = vld [vmem:[#allocation8 + $0x68] sm:$0xff]
    %v3899 = vld [vmem:[#allocation8 + $0x70] sm:$0xff]
    %v3900 = vld [vmem:[#allocation8 + $0x78] sm:$0xff]
    %v3901 = vld [vmem:[#allocation8 + $0x80] sm:$0xff]
    %v3902 = vld [vmem:[#allocation8 + $0x88] sm:$0xff]
    %v3903 = vld [vmem:[#allocation8 + $0x90] sm:$0xff]
    %v3904 = vld [vmem:[#allocation8 + $0x98] sm:$0xff]
    %v3905 = vld [vmem:[#allocation8 + $0xa0] sm:$0xff]
    %v3906 = vld [vmem:[#allocation8 + $0xa8] sm:$0xff]
    %v3907 = vld [vmem:[#allocation8 + $0xb0] sm:$0xff]
    %v3908 = vld [vmem:[#allocation8 + $0xb8] sm:$0xff]
    %v3909 = vld [vmem:[#allocation8 + $0xc0] sm:$0xff]
    %v3910 = vld [vmem:[#allocation8 + $0xc8] sm:$0xff]
    %v3911 = vld [vmem:[#allocation8 + $0xd0] sm:$0xff]
    %v3912 = vld [vmem:[#allocation8 + $0xd8] sm:$0xff]
    %v3913 = vld [vmem:[#allocation8 + $0xe0] sm:$0xff]
    %v3914 = vld [vmem:[#allocation8 + $0xe8] sm:$0xff]
    %v3915 = vld [vmem:[#allocation8 + $0xf0] sm:$0xff]
    %v3916 = vld [vmem:[#allocation8 + $0xf8] sm:$0xff]
    %v3917 = vld [vmem:[#allocation8 + $0x100] sm:$0xff]
    %v3918 = vld [vmem:[#allocation8 + $0x108] sm:$0xff]
    %v3919 = vld [vmem:[#allocation8 + $0x110] sm:$0xff]
    %v3920 = vld [vmem:[#allocation8 + $0x118] sm:$0xff]
    %v3921 = vld [vmem:[#allocation8 + $0x120] sm:$0xff]
    %v3922 = vld [vmem:[#allocation8 + $0x128] sm:$0xff]
    %v3923 = vld [vmem:[#allocation8 + $0x130] sm:$0xff]
    %v3924 = vld [vmem:[#allocation8 + $0x138] sm:$0xff]
    %v3925 = vld [vmem:[#allocation8 + $0x140] sm:$0xff]
    %v3926 = vld [vmem:[#allocation8 + $0x148] sm:$0xff]
    %v3927 = vld [vmem:[#allocation8 + $0x150] sm:$0xff]
    %v3928 = vld [vmem:[#allocation8 + $0x158] sm:$0xff]
    %v3929 = vld [vmem:[#allocation8 + $0x160] sm:$0xff]
    %v3930 = vld [vmem:[#allocation8 + $0x168] sm:$0xff]
    %v3931 = vld [vmem:[#allocation8 + $0x170] sm:$0xff]
    %v3932 = vld [vmem:[#allocation8 + $0x178] sm:$0xff]
    %v3933 = vld [vmem:[#allocation8 + $0x180] sm:$0xff]
    %v3934 = vld [vmem:[#allocation8 + $0x188] sm:$0xff]
    %v3935 = vld [vmem:[#allocation8 + $0x190] sm:$0xff]
    %v3936 = vld [vmem:[#allocation8 + $0x198] sm:$0xff]
    %v3937 = vld [vmem:[#allocation8 + $0x1a0] sm:$0xff]
    %v3938 = vld [vmem:[#allocation8 + $0x1a8] sm:$0xff]
    %v3939 = vld [vmem:[#allocation8 + $0x1b0] sm:$0xff]
    %v3940 = vld [vmem:[#allocation8 + $0x1b8] sm:$0xff]
    %v3941 = vld [vmem:[#allocation8 + $0x1c0] sm:$0xff]
    %v3942 = vld [vmem:[#allocation8 + $0x1c8] sm:$0xff]
    %v3943 = vld [vmem:[#allocation8 + $0x1d0] sm:$0xff]
    %v3944 = vld [vmem:[#allocation8 + $0x1d8] sm:$0xff]
    %v3945 = vld [vmem:[#allocation8 + $0x1e0] sm:$0xff]
    %v3946 = vld [vmem:[#allocation8 + $0x1e8] sm:$0xff]
    %v3947 = vld [vmem:[#allocation8 + $0x1f0] sm:$0xff]
    %v3948 = vld [vmem:[#allocation8 + $0x1f8] sm:$0xff]
    %3949 = vmatprep.subr.mxu0 %v3946
    %3950 = vmatpush1.msra.mxu0 %v3945
    %3951 = vmatprep.subr.mxu0 %v3942
    %3952 = vmatpush1.msra.mxu0 %v3941
    %3953 = vmatprep.subr.mxu0 %v3938
    %3954 = vmatpush1.msra.mxu0 %v3937
    %3955 = vmatprep.subr.mxu0 %v3934
    %3956 = vmatpush1.msra.mxu0 %v3933
    %3957 = vmatprep.subr.mxu0 %v3930
    %3958 = vmatpush1.msra.mxu0 %v3929
    %3959 = vmatprep.subr.mxu0 %v3926
    %3960 = vmatpush1.msra.mxu0 %v3925
    %3961 = vmatprep.subr.mxu0 %v3922
    %3962 = vmatpush1.msra.mxu0 %v3921
    %3963 = vmatprep.subr.mxu0 %v3918
    %3964 = vmatpush1.msra.mxu0 %v3917
    %3965 = vmatprep.subr.mxu0 %v3914
    %3966 = vmatpush1.msra.mxu0 %v3913
    %3967 = vmatprep.subr.mxu0 %v3910
    %3968 = vmatpush1.msra.mxu0 %v3909
    %3969 = vmatprep.subr.mxu0 %v3906
    %3970 = vmatpush1.msra.mxu0 %v3905
    %3971 = vmatprep.subr.mxu0 %v3902
    %3972 = vmatpush1.msra.mxu0 %v3901
    %3973 = vmatprep.subr.mxu0 %v3898
    %3974 = vmatpush1.msra.mxu0 %v3897
    %3975 = vmatprep.subr.mxu0 %v3894
    %3976 = vmatpush1.msra.mxu0 %v3893
    %3977 = vmatprep.subr.mxu0 %v3890
    %3978 = vmatpush1.msra.mxu0 %v3889
    %3979 = vmatprep.subr.mxu0 %v3886
    %3980 = vmatpush1.msra.mxu0 %v3885
    %3981 = vmatprep.subr.mxu0 0.0
    %3982 = vmatpush2.msra.mxu0 0.0
    %3983 = vmatprep.subr.mxu0 0.0
    %3984 = vmatpush2.msra.mxu0 0.0
    %3985 = vmatprep.subr.mxu0 0.0
    %3986 = vmatpush2.msra.mxu0 0.0
    %3987 = vmatprep.subr.mxu0 0.0
    %3988 = vmatpush2.msra.mxu0 0.0
    %3989 = vmatprep.subr.mxu0 0.0
    %3990 = vmatpush2.msra.mxu0 0.0
    %3991 = vmatprep.subr.mxu0 0.0
    %3992 = vmatpush2.msra.mxu0 0.0
    %3993 = vmatprep.subr.mxu0 0.0
    %3994 = vmatpush2.msra.mxu0 0.0
    %3995 = vmatprep.subr.mxu0 0.0
    %3996 = vmatpush2.msra.mxu0 0.0
    %3997 = vmatprep.subr.mxu0 0.0
    %3998 = vmatpush2.msra.mxu0 0.0
    %3999 = vmatprep.subr.mxu0 0.0
    %4000 = vmatpush2.msra.mxu0 0.0
    %4001 = vmatprep.subr.mxu0 0.0
    %4002 = vmatpush2.msra.mxu0 0.0
    %4003 = vmatprep.subr.mxu0 0.0
    %4004 = vmatpush2.msra.mxu0 0.0
    %4005 = vmatprep.subr.mxu0 0.0
    %4006 = vmatpush2.msra.mxu0 0.0
    %4007 = vmatprep.subr.mxu0 0.0
    %4008 = vmatpush2.msra.mxu0 0.0
    %4009 = vmatprep.subr.mxu0 0.0
    %4010 = vmatpush2.msra.mxu0 0.0
    %4011 = vmatprep.subr.mxu0 0.0
    %4012 = vmatpush2.msra.mxu0 0.0
    %4013 = vmatprep.mubr.f32.mxu0 0.0
    %4014 = vmatmul.mubr.f32.gmra.mxu0 %v3640
    %v4015 = vpop.f32.mrf.mxu0
    %v4016 = vadd.f32 0.0, %v4015
    %v4017 = vpop.f32.mrf.mxu0
    %v4018 = vadd.f32 0.0, %v4017
    %4019 = vdwg.mxu0
    %4020 = vmatprep.subr.mxu0 %v3948
    %4021 = vmatpush1.msra.mxu0 %v3947
    %4022 = vmatprep.subr.mxu0 %v3944
    %4023 = vmatpush1.msra.mxu0 %v3943
    %4024 = vmatprep.subr.mxu0 %v3940
    %4025 = vmatpush1.msra.mxu0 %v3939
    %4026 = vmatprep.subr.mxu0 %v3936
    %4027 = vmatpush1.msra.mxu0 %v3935
    %4028 = vmatprep.subr.mxu0 %v3932
    %4029 = vmatpush1.msra.mxu0 %v3931
    %4030 = vmatprep.subr.mxu0 %v3928
    %4031 = vmatpush1.msra.mxu0 %v3927
    %4032 = vmatprep.subr.mxu0 %v3924
    %4033 = vmatpush1.msra.mxu0 %v3923
    %4034 = vmatprep.subr.mxu0 %v3920
    %4035 = vmatpush1.msra.mxu0 %v3919
    %4036 = vmatprep.subr.mxu0 %v3916
    %4037 = vmatpush1.msra.mxu0 %v3915
    %4038 = vmatprep.subr.mxu0 %v3912
    %4039 = vmatpush1.msra.mxu0 %v3911
    %4040 = vmatprep.subr.mxu0 %v3908
    %4041 = vmatpush1.msra.mxu0 %v3907
    %4042 = vmatprep.subr.mxu0 %v3904
    %4043 = vmatpush1.msra.mxu0 %v3903
    %4044 = vmatprep.subr.mxu0 %v3900
    %4045 = vmatpush1.msra.mxu0 %v3899
    %4046 = vmatprep.subr.mxu0 %v3896
    %4047 = vmatpush1.msra.mxu0 %v3895
    %4048 = vmatprep.subr.mxu0 %v3892
    %4049 = vmatpush1.msra.mxu0 %v3891
    %4050 = vmatprep.subr.mxu0 %v3888
    %4051 = vmatpush1.msra.mxu0 %v3887
    %4052 = vmatprep.subr.mxu0 0.0
    %4053 = vmatpush2.msra.mxu0 0.0
    %4054 = vmatprep.subr.mxu0 0.0
    %4055 = vmatpush2.msra.mxu0 0.0
    %4056 = vmatprep.subr.mxu0 0.0
    %4057 = vmatpush2.msra.mxu0 0.0
    %4058 = vmatprep.subr.mxu0 0.0
    %4059 = vmatpush2.msra.mxu0 0.0
    %4060 = vmatprep.subr.mxu0 0.0
    %4061 = vmatpush2.msra.mxu0 0.0
    %4062 = vmatprep.subr.mxu0 0.0
    %4063 = vmatpush2.msra.mxu0 0.0
    %4064 = vmatprep.subr.mxu0 0.0
    %4065 = vmatpush2.msra.mxu0 0.0
    %4066 = vmatprep.subr.mxu0 0.0
    %4067 = vmatpush2.msra.mxu0 0.0
    %4068 = vmatprep.subr.mxu0 0.0
    %4069 = vmatpush2.msra.mxu0 0.0
    %4070 = vmatprep.subr.mxu0 0.0
    %4071 = vmatpush2.msra.mxu0 0.0
    %4072 = vmatprep.subr.mxu0 0.0
    %4073 = vmatpush2.msra.mxu0 0.0
    %4074 = vmatprep.subr.mxu0 0.0
    %4075 = vmatpush2.msra.mxu0 0.0
    %4076 = vmatprep.subr.mxu0 0.0
    %4077 = vmatpush2.msra.mxu0 0.0
    %4078 = vmatprep.subr.mxu0 0.0
    %4079 = vmatpush2.msra.mxu0 0.0
    %4080 = vmatprep.subr.mxu0 0.0
    %4081 = vmatpush2.msra.mxu0 0.0
    %4082 = vmatprep.subr.mxu0 0.0
    %4083 = vmatpush2.msra.mxu0 0.0
    %4084 = vmatprep.mubr.f32.mxu0 0.0
    %4085 = vmatmul.mubr.f32.gmra.mxu0 %v3640
    %v4086 = vpop.f32.mrf.mxu0
    %v4087 = vadd.f32 0.0, %v4086
    %v4088 = vpop.f32.mrf.mxu0
    %v4089 = vadd.f32 0.0, %v4088
    %4090 = vdwg.mxu0
    %v4091 = vadd.f32 %v3647, %v4016
    %v4092 = vadd.f32 %v3648, %v4018
    %v4093 = vadd.f32 %v3649, %v4087
    %v4094 = vadd.f32 %v3650, %v4089
    %v4095 = vxor.u32 %v4091, 2147483648
    %v4096 = vmul.f32 %v4095, 1.442695
    %v4097 = vpow.pop %v4096
    %v4098 = vadd.f32 %v4097, 1.0
    %v4099 = vrcp.pop %v4098
    %v4100 = vmul.f32 1.0, %v4099
    %v4101 = vxor.u32 %v4092, 2147483648
    %v4102 = vmul.f32 %v4101, 1.442695
    %v4103 = vpow.pop %v4102
    %v4104 = vadd.f32 %v4103, 1.0
    %v4105 = vrcp.pop %v4104
    %v4106 = vmul.f32 1.0, %v4105
    %v4107 = vtanh.pop %v4093
    %v4108 = vxor.u32 %v4094, 2147483648
    %v4109 = vmul.f32 %v4108, 1.442695
    %v4110 = vpow.pop %v4109
    %v4111 = vadd.f32 %v4110, 1.0
    %v4112 = vrcp.pop %v4111
    %v4113 = vmul.f32 1.0, %v4112
    %v4114 = vmul.f32 %v4106, %v3638
    %v4115 = vmul.f32 %v4100, %v4107
    %v4116 = vadd.f32 %v4114, %v4115
    %v4117 = vtanh.pop %v4116
    %v4118 = vmul.f32 %v4113, %v4117
    %4119 = vst [vmem:[#allocation3 + $0x60] sm:$0xff] %v3884
    %4120 = vst [vmem:[#allocation3 + $0x18] sm:$0xff] %v4118
    %v4121 = vld [vmem:[#allocation2 + $0x1c0] sm:$0xff]
    %v4122 = vld [vmem:[#allocation2 + $0x1c8] sm:$0xff]
    %v4123 = vld [vmem:[#allocation2 + $0x1d0] sm:$0xff]
    %v4124 = vld [vmem:[#allocation2 + $0x1d8] sm:$0xff]
    %v4125 = vld [vmem:[#allocation2 + $0x20] sm:$0xff]
    %v4126 = vld [vmem:[#allocation2 + $0x28] sm:$0xff]
    %v4127 = vld [vmem:[#allocation2 + $0x30] sm:$0xff]
    %v4128 = vld [vmem:[#allocation2 + $0x38] sm:$0xff]
    %v4129 = vld [vmem:[#allocation6] sm:$0xff]
    %v4130 = vld [vmem:[#allocation6 + $0x8] sm:$0xff]
    %v4131 = vld [vmem:[#allocation6 + $0x10] sm:$0xff]
    %v4132 = vld [vmem:[#allocation6 + $0x18] sm:$0xff]
    %v4133 = vld [vmem:[#allocation6 + $0x20] sm:$0xff]
    %v4134 = vld [vmem:[#allocation6 + $0x28] sm:$0xff]
    %v4135 = vld [vmem:[#allocation6 + $0x30] sm:$0xff]
    %v4136 = vld [vmem:[#allocation6 + $0x38] sm:$0xff]
    %v4137 = vld [vmem:[#allocation6 + $0x40] sm:$0xff]
    %v4138 = vld [vmem:[#allocation6 + $0x48] sm:$0xff]
    %v4139 = vld [vmem:[#allocation6 + $0x50] sm:$0xff]
    %v4140 = vld [vmem:[#allocation6 + $0x58] sm:$0xff]
    %v4141 = vld [vmem:[#allocation6 + $0x60] sm:$0xff]
    %v4142 = vld [vmem:[#allocation6 + $0x68] sm:$0xff]
    %v4143 = vld [vmem:[#allocation6 + $0x70] sm:$0xff]
    %v4144 = vld [vmem:[#allocation6 + $0x78] sm:$0xff]
    %v4145 = vld [vmem:[#allocation6 + $0x80] sm:$0xff]
    %v4146 = vld [vmem:[#allocation6 + $0x88] sm:$0xff]
    %v4147 = vld [vmem:[#allocation6 + $0x90] sm:$0xff]
    %v4148 = vld [vmem:[#allocation6 + $0x98] sm:$0xff]
    %v4149 = vld [vmem:[#allocation6 + $0xa0] sm:$0xff]
    %v4150 = vld [vmem:[#allocation6 + $0xa8] sm:$0xff]
    %v4151 = vld [vmem:[#allocation6 + $0xb0] sm:$0xff]
    %v4152 = vld [vmem:[#allocation6 + $0xb8] sm:$0xff]
    %v4153 = vld [vmem:[#allocation6 + $0xc0] sm:$0xff]
    %v4154 = vld [vmem:[#allocation6 + $0xc8] sm:$0xff]
    %v4155 = vld [vmem:[#allocation6 + $0xd0] sm:$0xff]
    %v4156 = vld [vmem:[#allocation6 + $0xd8] sm:$0xff]
    %v4157 = vld [vmem:[#allocation6 + $0xe0] sm:$0xff]
    %v4158 = vld [vmem:[#allocation6 + $0xe8] sm:$0xff]
    %v4159 = vld [vmem:[#allocation6 + $0xf0] sm:$0xff]
    %v4160 = vld [vmem:[#allocation6 + $0xf8] sm:$0xff]
    %v4161 = vld [vmem:[#allocation6 + $0x100] sm:$0xff]
    %v4162 = vld [vmem:[#allocation6 + $0x108] sm:$0xff]
    %v4163 = vld [vmem:[#allocation6 + $0x110] sm:$0xff]
    %v4164 = vld [vmem:[#allocation6 + $0x118] sm:$0xff]
    %v4165 = vld [vmem:[#allocation6 + $0x120] sm:$0xff]
    %v4166 = vld [vmem:[#allocation6 + $0x128] sm:$0xff]
    %v4167 = vld [vmem:[#allocation6 + $0x130] sm:$0xff]
    %v4168 = vld [vmem:[#allocation6 + $0x138] sm:$0xff]
    %v4169 = vld [vmem:[#allocation6 + $0x140] sm:$0xff]
    %v4170 = vld [vmem:[#allocation6 + $0x148] sm:$0xff]
    %v4171 = vld [vmem:[#allocation6 + $0x150] sm:$0xff]
    %v4172 = vld [vmem:[#allocation6 + $0x158] sm:$0xff]
    %v4173 = vld [vmem:[#allocation6 + $0x160] sm:$0xff]
    %v4174 = vld [vmem:[#allocation6 + $0x168] sm:$0xff]
    %v4175 = vld [vmem:[#allocation6 + $0x170] sm:$0xff]
    %v4176 = vld [vmem:[#allocation6 + $0x178] sm:$0xff]
    %v4177 = vld [vmem:[#allocation6 + $0x180] sm:$0xff]
    %v4178 = vld [vmem:[#allocation6 + $0x188] sm:$0xff]
    %v4179 = vld [vmem:[#allocation6 + $0x190] sm:$0xff]
    %v4180 = vld [vmem:[#allocation6 + $0x198] sm:$0xff]
    %v4181 = vld [vmem:[#allocation6 + $0x1a0] sm:$0xff]
    %v4182 = vld [vmem:[#allocation6 + $0x1a8] sm:$0xff]
    %v4183 = vld [vmem:[#allocation6 + $0x1b0] sm:$0xff]
    %v4184 = vld [vmem:[#allocation6 + $0x1b8] sm:$0xff]
    %v4185 = vld [vmem:[#allocation6 + $0x1c0] sm:$0xff]
    %v4186 = vld [vmem:[#allocation6 + $0x1c8] sm:$0xff]
    %v4187 = vld [vmem:[#allocation6 + $0x1d0] sm:$0xff]
    %v4188 = vld [vmem:[#allocation6 + $0x1d8] sm:$0xff]
    %v4189 = vld [vmem:[#allocation6 + $0x1e0] sm:$0xff]
    %v4190 = vld [vmem:[#allocation6 + $0x1e8] sm:$0xff]
    %v4191 = vld [vmem:[#allocation6 + $0x1f0] sm:$0xff]
    %v4192 = vld [vmem:[#allocation6 + $0x1f8] sm:$0xff]
    %4193 = vmatprep.subr.mxu0 %v4190
    %4194 = vmatpush1.msra.mxu0 %v4189
    %4195 = vmatprep.subr.mxu0 %v4186
    %4196 = vmatpush1.msra.mxu0 %v4185
    %4197 = vmatprep.subr.mxu0 %v4182
    %4198 = vmatpush1.msra.mxu0 %v4181
    %4199 = vmatprep.subr.mxu0 %v4178
    %4200 = vmatpush1.msra.mxu0 %v4177
    %4201 = vmatprep.subr.mxu0 %v4174
    %4202 = vmatpush1.msra.mxu0 %v4173
    %4203 = vmatprep.subr.mxu0 %v4170
    %4204 = vmatpush1.msra.mxu0 %v4169
    %4205 = vmatprep.subr.mxu0 %v4166
    %4206 = vmatpush1.msra.mxu0 %v4165
    %4207 = vmatprep.subr.mxu0 %v4162
    %4208 = vmatpush1.msra.mxu0 %v4161
    %4209 = vmatprep.subr.mxu0 %v4158
    %4210 = vmatpush1.msra.mxu0 %v4157
    %4211 = vmatprep.subr.mxu0 %v4154
    %4212 = vmatpush1.msra.mxu0 %v4153
    %4213 = vmatprep.subr.mxu0 %v4150
    %4214 = vmatpush1.msra.mxu0 %v4149
    %4215 = vmatprep.subr.mxu0 %v4146
    %4216 = vmatpush1.msra.mxu0 %v4145
    %4217 = vmatprep.subr.mxu0 %v4142
    %4218 = vmatpush1.msra.mxu0 %v4141
    %4219 = vmatprep.subr.mxu0 %v4138
    %4220 = vmatpush1.msra.mxu0 %v4137
    %4221 = vmatprep.subr.mxu0 %v4134
    %4222 = vmatpush1.msra.mxu0 %v4133
    %4223 = vmatprep.subr.mxu0 %v4130
    %4224 = vmatpush1.msra.mxu0 %v4129
    %4225 = vmatprep.subr.mxu0 0.0
    %4226 = vmatpush2.msra.mxu0 0.0
    %4227 = vmatprep.subr.mxu0 0.0
    %4228 = vmatpush2.msra.mxu0 0.0
    %4229 = vmatprep.subr.mxu0 0.0
    %4230 = vmatpush2.msra.mxu0 0.0
    %4231 = vmatprep.subr.mxu0 0.0
    %4232 = vmatpush2.msra.mxu0 0.0
    %4233 = vmatprep.subr.mxu0 0.0
    %4234 = vmatpush2.msra.mxu0 0.0
    %4235 = vmatprep.subr.mxu0 0.0
    %4236 = vmatpush2.msra.mxu0 0.0
    %4237 = vmatprep.subr.mxu0 0.0
    %4238 = vmatpush2.msra.mxu0 0.0
    %4239 = vmatprep.subr.mxu0 0.0
    %4240 = vmatpush2.msra.mxu0 0.0
    %4241 = vmatprep.subr.mxu0 0.0
    %4242 = vmatpush2.msra.mxu0 0.0
    %4243 = vmatprep.subr.mxu0 0.0
    %4244 = vmatpush2.msra.mxu0 0.0
    %4245 = vmatprep.subr.mxu0 0.0
    %4246 = vmatpush2.msra.mxu0 0.0
    %4247 = vmatprep.subr.mxu0 0.0
    %4248 = vmatpush2.msra.mxu0 0.0
    %4249 = vmatprep.subr.mxu0 0.0
    %4250 = vmatpush2.msra.mxu0 0.0
    %4251 = vmatprep.subr.mxu0 0.0
    %4252 = vmatpush2.msra.mxu0 0.0
    %4253 = vmatprep.subr.mxu0 0.0
    %4254 = vmatpush2.msra.mxu0 0.0
    %4255 = vmatprep.subr.mxu0 0.0
    %4256 = vmatpush2.msra.mxu0 0.0
    %4257 = vmatprep.mubr.f32.mxu0 0.0
    %4258 = vmatmul.mubr.f32.gmra.mxu0 %v3884
    %v4259 = vpop.f32.mrf.mxu0
    %v4260 = vadd.f32 0.0, %v4259
    %v4261 = vpop.f32.mrf.mxu0
    %v4262 = vadd.f32 0.0, %v4261
    %4263 = vdwg.mxu0
    %4264 = vmatprep.subr.mxu0 %v4192
    %4265 = vmatpush1.msra.mxu0 %v4191
    %4266 = vmatprep.subr.mxu0 %v4188
    %4267 = vmatpush1.msra.mxu0 %v4187
    %4268 = vmatprep.subr.mxu0 %v4184
    %4269 = vmatpush1.msra.mxu0 %v4183
    %4270 = vmatprep.subr.mxu0 %v4180
    %4271 = vmatpush1.msra.mxu0 %v4179
    %4272 = vmatprep.subr.mxu0 %v4176
    %4273 = vmatpush1.msra.mxu0 %v4175
    %4274 = vmatprep.subr.mxu0 %v4172
    %4275 = vmatpush1.msra.mxu0 %v4171
    %4276 = vmatprep.subr.mxu0 %v4168
    %4277 = vmatpush1.msra.mxu0 %v4167
    %4278 = vmatprep.subr.mxu0 %v4164
    %4279 = vmatpush1.msra.mxu0 %v4163
    %4280 = vmatprep.subr.mxu0 %v4160
    %4281 = vmatpush1.msra.mxu0 %v4159
    %4282 = vmatprep.subr.mxu0 %v4156
    %4283 = vmatpush1.msra.mxu0 %v4155
    %4284 = vmatprep.subr.mxu0 %v4152
    %4285 = vmatpush1.msra.mxu0 %v4151
    %4286 = vmatprep.subr.mxu0 %v4148
    %4287 = vmatpush1.msra.mxu0 %v4147
    %4288 = vmatprep.subr.mxu0 %v4144
    %4289 = vmatpush1.msra.mxu0 %v4143
    %4290 = vmatprep.subr.mxu0 %v4140
    %4291 = vmatpush1.msra.mxu0 %v4139
    %4292 = vmatprep.subr.mxu0 %v4136
    %4293 = vmatpush1.msra.mxu0 %v4135
    %4294 = vmatprep.subr.mxu0 %v4132
    %4295 = vmatpush1.msra.mxu0 %v4131
    %4296 = vmatprep.subr.mxu0 0.0
    %4297 = vmatpush2.msra.mxu0 0.0
    %4298 = vmatprep.subr.mxu0 0.0
    %4299 = vmatpush2.msra.mxu0 0.0
    %4300 = vmatprep.subr.mxu0 0.0
    %4301 = vmatpush2.msra.mxu0 0.0
    %4302 = vmatprep.subr.mxu0 0.0
    %4303 = vmatpush2.msra.mxu0 0.0
    %4304 = vmatprep.subr.mxu0 0.0
    %4305 = vmatpush2.msra.mxu0 0.0
    %4306 = vmatprep.subr.mxu0 0.0
    %4307 = vmatpush2.msra.mxu0 0.0
    %4308 = vmatprep.subr.mxu0 0.0
    %4309 = vmatpush2.msra.mxu0 0.0
    %4310 = vmatprep.subr.mxu0 0.0
    %4311 = vmatpush2.msra.mxu0 0.0
    %4312 = vmatprep.subr.mxu0 0.0
    %4313 = vmatpush2.msra.mxu0 0.0
    %4314 = vmatprep.subr.mxu0 0.0
    %4315 = vmatpush2.msra.mxu0 0.0
    %4316 = vmatprep.subr.mxu0 0.0
    %4317 = vmatpush2.msra.mxu0 0.0
    %4318 = vmatprep.subr.mxu0 0.0
    %4319 = vmatpush2.msra.mxu0 0.0
    %4320 = vmatprep.subr.mxu0 0.0
    %4321 = vmatpush2.msra.mxu0 0.0
    %4322 = vmatprep.subr.mxu0 0.0
    %4323 = vmatpush2.msra.mxu0 0.0
    %4324 = vmatprep.subr.mxu0 0.0
    %4325 = vmatpush2.msra.mxu0 0.0
    %4326 = vmatprep.subr.mxu0 0.0
    %4327 = vmatpush2.msra.mxu0 0.0
    %4328 = vmatprep.mubr.f32.mxu0 0.0
    %4329 = vmatmul.mubr.f32.gmra.mxu0 %v3884
    %v4330 = vpop.f32.mrf.mxu0
    %v4331 = vadd.f32 0.0, %v4330
    %v4332 = vpop.f32.mrf.mxu0
    %v4333 = vadd.f32 0.0, %v4332
    %4334 = vdwg.mxu0
    %v4335 = vadd.f32 %v4121, %v4260
    %v4336 = vadd.f32 %v4122, %v4262
    %v4337 = vadd.f32 %v4123, %v4331
    %v4338 = vadd.f32 %v4124, %v4333
    %v4339 = vxor.u32 %v4335, 2147483648
    %v4340 = vmul.f32 %v4339, 1.442695
    %v4341 = vpow.pop %v4340
    %v4342 = vadd.f32 %v4341, 1.0
    %v4343 = vrcp.pop %v4342
    %v4344 = vmul.f32 1.0, %v4343
    %v4345 = vxor.u32 %v4336, 2147483648
    %v4346 = vmul.f32 %v4345, 1.442695
    %v4347 = vpow.pop %v4346
    %v4348 = vadd.f32 %v4347, 1.0
    %v4349 = vrcp.pop %v4348
    %v4350 = vmul.f32 1.0, %v4349
    %v4351 = vtanh.pop %v4337
    %v4352 = vxor.u32 %v4338, 2147483648
    %v4353 = vmul.f32 %v4352, 1.442695
    %v4354 = vpow.pop %v4353
    %v4355 = vadd.f32 %v4354, 1.0
    %v4356 = vrcp.pop %v4355
    %v4357 = vmul.f32 1.0, %v4356
    %v4358 = vmul.f32 %v4350, %v3882
    %v4359 = vmul.f32 %v4344, %v4351
    %v4360 = vadd.f32 %v4358, %v4359
    %v4361 = vtanh.pop %v4360
    %v4362 = vmul.f32 %v4357, %v4361
    %v4363 = vld [vmem:[#allocation8] sm:$0xff]
    %v4364 = vld [vmem:[#allocation8 + $0x8] sm:$0xff]
    %v4365 = vld [vmem:[#allocation8 + $0x10] sm:$0xff]
    %v4366 = vld [vmem:[#allocation8 + $0x18] sm:$0xff]
    %v4367 = vld [vmem:[#allocation8 + $0x20] sm:$0xff]
    %v4368 = vld [vmem:[#allocation8 + $0x28] sm:$0xff]
    %v4369 = vld [vmem:[#allocation8 + $0x30] sm:$0xff]
    %v4370 = vld [vmem:[#allocation8 + $0x38] sm:$0xff]
    %v4371 = vld [vmem:[#allocation8 + $0x40] sm:$0xff]
    %v4372 = vld [vmem:[#allocation8 + $0x48] sm:$0xff]
    %v4373 = vld [vmem:[#allocation8 + $0x50] sm:$0xff]
    %v4374 = vld [vmem:[#allocation8 + $0x58] sm:$0xff]
    %v4375 = vld [vmem:[#allocation8 + $0x60] sm:$0xff]
    %v4376 = vld [vmem:[#allocation8 + $0x68] sm:$0xff]
    %v4377 = vld [vmem:[#allocation8 + $0x70] sm:$0xff]
    %v4378 = vld [vmem:[#allocation8 + $0x78] sm:$0xff]
    %v4379 = vld [vmem:[#allocation8 + $0x80] sm:$0xff]
    %v4380 = vld [vmem:[#allocation8 + $0x88] sm:$0xff]
    %v4381 = vld [vmem:[#allocation8 + $0x90] sm:$0xff]
    %v4382 = vld [vmem:[#allocation8 + $0x98] sm:$0xff]
    %v4383 = vld [vmem:[#allocation8 + $0xa0] sm:$0xff]
    %v4384 = vld [vmem:[#allocation8 + $0xa8] sm:$0xff]
    %v4385 = vld [vmem:[#allocation8 + $0xb0] sm:$0xff]
    %v4386 = vld [vmem:[#allocation8 + $0xb8] sm:$0xff]
    %v4387 = vld [vmem:[#allocation8 + $0xc0] sm:$0xff]
    %v4388 = vld [vmem:[#allocation8 + $0xc8] sm:$0xff]
    %v4389 = vld [vmem:[#allocation8 + $0xd0] sm:$0xff]
    %v4390 = vld [vmem:[#allocation8 + $0xd8] sm:$0xff]
    %v4391 = vld [vmem:[#allocation8 + $0xe0] sm:$0xff]
    %v4392 = vld [vmem:[#allocation8 + $0xe8] sm:$0xff]
    %v4393 = vld [vmem:[#allocation8 + $0xf0] sm:$0xff]
    %v4394 = vld [vmem:[#allocation8 + $0xf8] sm:$0xff]
    %v4395 = vld [vmem:[#allocation8 + $0x100] sm:$0xff]
    %v4396 = vld [vmem:[#allocation8 + $0x108] sm:$0xff]
    %v4397 = vld [vmem:[#allocation8 + $0x110] sm:$0xff]
    %v4398 = vld [vmem:[#allocation8 + $0x118] sm:$0xff]
    %v4399 = vld [vmem:[#allocation8 + $0x120] sm:$0xff]
    %v4400 = vld [vmem:[#allocation8 + $0x128] sm:$0xff]
    %v4401 = vld [vmem:[#allocation8 + $0x130] sm:$0xff]
    %v4402 = vld [vmem:[#allocation8 + $0x138] sm:$0xff]
    %v4403 = vld [vmem:[#allocation8 + $0x140] sm:$0xff]
    %v4404 = vld [vmem:[#allocation8 + $0x148] sm:$0xff]
    %v4405 = vld [vmem:[#allocation8 + $0x150] sm:$0xff]
    %v4406 = vld [vmem:[#allocation8 + $0x158] sm:$0xff]
    %v4407 = vld [vmem:[#allocation8 + $0x160] sm:$0xff]
    %v4408 = vld [vmem:[#allocation8 + $0x168] sm:$0xff]
    %v4409 = vld [vmem:[#allocation8 + $0x170] sm:$0xff]
    %v4410 = vld [vmem:[#allocation8 + $0x178] sm:$0xff]
    %v4411 = vld [vmem:[#allocation8 + $0x180] sm:$0xff]
    %v4412 = vld [vmem:[#allocation8 + $0x188] sm:$0xff]
    %v4413 = vld [vmem:[#allocation8 + $0x190] sm:$0xff]
    %v4414 = vld [vmem:[#allocation8 + $0x198] sm:$0xff]
    %v4415 = vld [vmem:[#allocation8 + $0x1a0] sm:$0xff]
    %v4416 = vld [vmem:[#allocation8 + $0x1a8] sm:$0xff]
    %v4417 = vld [vmem:[#allocation8 + $0x1b0] sm:$0xff]
    %v4418 = vld [vmem:[#allocation8 + $0x1b8] sm:$0xff]
    %v4419 = vld [vmem:[#allocation8 + $0x1c0] sm:$0xff]
    %v4420 = vld [vmem:[#allocation8 + $0x1c8] sm:$0xff]
    %v4421 = vld [vmem:[#allocation8 + $0x1d0] sm:$0xff]
    %v4422 = vld [vmem:[#allocation8 + $0x1d8] sm:$0xff]
    %v4423 = vld [vmem:[#allocation8 + $0x1e0] sm:$0xff]
    %v4424 = vld [vmem:[#allocation8 + $0x1e8] sm:$0xff]
    %v4425 = vld [vmem:[#allocation8 + $0x1f0] sm:$0xff]
    %v4426 = vld [vmem:[#allocation8 + $0x1f8] sm:$0xff]
    %4427 = vmatprep.subr.mxu0 %v4424
    %4428 = vmatpush1.msra.mxu0 %v4423
    %4429 = vmatprep.subr.mxu0 %v4420
    %4430 = vmatpush1.msra.mxu0 %v4419
    %4431 = vmatprep.subr.mxu0 %v4416
    %4432 = vmatpush1.msra.mxu0 %v4415
    %4433 = vmatprep.subr.mxu0 %v4412
    %4434 = vmatpush1.msra.mxu0 %v4411
    %4435 = vmatprep.subr.mxu0 %v4408
    %4436 = vmatpush1.msra.mxu0 %v4407
    %4437 = vmatprep.subr.mxu0 %v4404
    %4438 = vmatpush1.msra.mxu0 %v4403
    %4439 = vmatprep.subr.mxu0 %v4400
    %4440 = vmatpush1.msra.mxu0 %v4399
    %4441 = vmatprep.subr.mxu0 %v4396
    %4442 = vmatpush1.msra.mxu0 %v4395
    %4443 = vmatprep.subr.mxu0 %v4392
    %4444 = vmatpush1.msra.mxu0 %v4391
    %4445 = vmatprep.subr.mxu0 %v4388
    %4446 = vmatpush1.msra.mxu0 %v4387
    %4447 = vmatprep.subr.mxu0 %v4384
    %4448 = vmatpush1.msra.mxu0 %v4383
    %4449 = vmatprep.subr.mxu0 %v4380
    %4450 = vmatpush1.msra.mxu0 %v4379
    %4451 = vmatprep.subr.mxu0 %v4376
    %4452 = vmatpush1.msra.mxu0 %v4375
    %4453 = vmatprep.subr.mxu0 %v4372
    %4454 = vmatpush1.msra.mxu0 %v4371
    %4455 = vmatprep.subr.mxu0 %v4368
    %4456 = vmatpush1.msra.mxu0 %v4367
    %4457 = vmatprep.subr.mxu0 %v4364
    %4458 = vmatpush1.msra.mxu0 %v4363
    %4459 = vmatprep.subr.mxu0 0.0
    %4460 = vmatpush2.msra.mxu0 0.0
    %4461 = vmatprep.subr.mxu0 0.0
    %4462 = vmatpush2.msra.mxu0 0.0
    %4463 = vmatprep.subr.mxu0 0.0
    %4464 = vmatpush2.msra.mxu0 0.0
    %4465 = vmatprep.subr.mxu0 0.0
    %4466 = vmatpush2.msra.mxu0 0.0
    %4467 = vmatprep.subr.mxu0 0.0
    %4468 = vmatpush2.msra.mxu0 0.0
    %4469 = vmatprep.subr.mxu0 0.0
    %4470 = vmatpush2.msra.mxu0 0.0
    %4471 = vmatprep.subr.mxu0 0.0
    %4472 = vmatpush2.msra.mxu0 0.0
    %4473 = vmatprep.subr.mxu0 0.0
    %4474 = vmatpush2.msra.mxu0 0.0
    %4475 = vmatprep.subr.mxu0 0.0
    %4476 = vmatpush2.msra.mxu0 0.0
    %4477 = vmatprep.subr.mxu0 0.0
    %4478 = vmatpush2.msra.mxu0 0.0
    %4479 = vmatprep.subr.mxu0 0.0
    %4480 = vmatpush2.msra.mxu0 0.0
    %4481 = vmatprep.subr.mxu0 0.0
    %4482 = vmatpush2.msra.mxu0 0.0
    %4483 = vmatprep.subr.mxu0 0.0
    %4484 = vmatpush2.msra.mxu0 0.0
    %4485 = vmatprep.subr.mxu0 0.0
    %4486 = vmatpush2.msra.mxu0 0.0
    %4487 = vmatprep.subr.mxu0 0.0
    %4488 = vmatpush2.msra.mxu0 0.0
    %4489 = vmatprep.subr.mxu0 0.0
    %4490 = vmatpush2.msra.mxu0 0.0
    %4491 = vmatprep.mubr.f32.mxu0 0.0
    %4492 = vmatmul.mubr.f32.gmra.mxu0 %v4118
    %v4493 = vpop.f32.mrf.mxu0
    %v4494 = vadd.f32 0.0, %v4493
    %v4495 = vpop.f32.mrf.mxu0
    %v4496 = vadd.f32 0.0, %v4495
    %4497 = vdwg.mxu0
    %4498 = vmatprep.subr.mxu0 %v4426
    %4499 = vmatpush1.msra.mxu0 %v4425
    %4500 = vmatprep.subr.mxu0 %v4422
    %4501 = vmatpush1.msra.mxu0 %v4421
    %4502 = vmatprep.subr.mxu0 %v4418
    %4503 = vmatpush1.msra.mxu0 %v4417
    %4504 = vmatprep.subr.mxu0 %v4414
    %4505 = vmatpush1.msra.mxu0 %v4413
    %4506 = vmatprep.subr.mxu0 %v4410
    %4507 = vmatpush1.msra.mxu0 %v4409
    %4508 = vmatprep.subr.mxu0 %v4406
    %4509 = vmatpush1.msra.mxu0 %v4405
    %4510 = vmatprep.subr.mxu0 %v4402
    %4511 = vmatpush1.msra.mxu0 %v4401
    %4512 = vmatprep.subr.mxu0 %v4398
    %4513 = vmatpush1.msra.mxu0 %v4397
    %4514 = vmatprep.subr.mxu0 %v4394
    %4515 = vmatpush1.msra.mxu0 %v4393
    %4516 = vmatprep.subr.mxu0 %v4390
    %4517 = vmatpush1.msra.mxu0 %v4389
    %4518 = vmatprep.subr.mxu0 %v4386
    %4519 = vmatpush1.msra.mxu0 %v4385
    %4520 = vmatprep.subr.mxu0 %v4382
    %4521 = vmatpush1.msra.mxu0 %v4381
    %4522 = vmatprep.subr.mxu0 %v4378
    %4523 = vmatpush1.msra.mxu0 %v4377
    %4524 = vmatprep.subr.mxu0 %v4374
    %4525 = vmatpush1.msra.mxu0 %v4373
    %4526 = vmatprep.subr.mxu0 %v4370
    %4527 = vmatpush1.msra.mxu0 %v4369
    %4528 = vmatprep.subr.mxu0 %v4366
    %4529 = vmatpush1.msra.mxu0 %v4365
    %4530 = vmatprep.subr.mxu0 0.0
    %4531 = vmatpush2.msra.mxu0 0.0
    %4532 = vmatprep.subr.mxu0 0.0
    %4533 = vmatpush2.msra.mxu0 0.0
    %4534 = vmatprep.subr.mxu0 0.0
    %4535 = vmatpush2.msra.mxu0 0.0
    %4536 = vmatprep.subr.mxu0 0.0
    %4537 = vmatpush2.msra.mxu0 0.0
    %4538 = vmatprep.subr.mxu0 0.0
    %4539 = vmatpush2.msra.mxu0 0.0
    %4540 = vmatprep.subr.mxu0 0.0
    %4541 = vmatpush2.msra.mxu0 0.0
    %4542 = vmatprep.subr.mxu0 0.0
    %4543 = vmatpush2.msra.mxu0 0.0
    %4544 = vmatprep.subr.mxu0 0.0
    %4545 = vmatpush2.msra.mxu0 0.0
    %4546 = vmatprep.subr.mxu0 0.0
    %4547 = vmatpush2.msra.mxu0 0.0
    %4548 = vmatprep.subr.mxu0 0.0
    %4549 = vmatpush2.msra.mxu0 0.0
    %4550 = vmatprep.subr.mxu0 0.0
    %4551 = vmatpush2.msra.mxu0 0.0
    %4552 = vmatprep.subr.mxu0 0.0
    %4553 = vmatpush2.msra.mxu0 0.0
    %4554 = vmatprep.subr.mxu0 0.0
    %4555 = vmatpush2.msra.mxu0 0.0
    %4556 = vmatprep.subr.mxu0 0.0
    %4557 = vmatpush2.msra.mxu0 0.0
    %4558 = vmatprep.subr.mxu0 0.0
    %4559 = vmatpush2.msra.mxu0 0.0
    %4560 = vmatprep.subr.mxu0 0.0
    %4561 = vmatpush2.msra.mxu0 0.0
    %4562 = vmatprep.mubr.f32.mxu0 0.0
    %4563 = vmatmul.mubr.f32.gmra.mxu0 %v4118
    %v4564 = vpop.f32.mrf.mxu0
    %v4565 = vadd.f32 0.0, %v4564
    %v4566 = vpop.f32.mrf.mxu0
    %v4567 = vadd.f32 0.0, %v4566
    %4568 = vdwg.mxu0
    %v4569 = vadd.f32 %v4125, %v4494
    %v4570 = vadd.f32 %v4126, %v4496
    %v4571 = vadd.f32 %v4127, %v4565
    %v4572 = vadd.f32 %v4128, %v4567
    %v4573 = vxor.u32 %v4569, 2147483648
    %v4574 = vmul.f32 %v4573, 1.442695
    %v4575 = vpow.pop %v4574
    %v4576 = vadd.f32 %v4575, 1.0
    %v4577 = vrcp.pop %v4576
    %v4578 = vmul.f32 1.0, %v4577
    %v4579 = vxor.u32 %v4570, 2147483648
    %v4580 = vmul.f32 %v4579, 1.442695
    %v4581 = vpow.pop %v4580
    %v4582 = vadd.f32 %v4581, 1.0
    %v4583 = vrcp.pop %v4582
    %v4584 = vmul.f32 1.0, %v4583
    %v4585 = vtanh.pop %v4571
    %v4586 = vxor.u32 %v4572, 2147483648
    %v4587 = vmul.f32 %v4586, 1.442695
    %v4588 = vpow.pop %v4587
    %v4589 = vadd.f32 %v4588, 1.0
    %v4590 = vrcp.pop %v4589
    %v4591 = vmul.f32 1.0, %v4590
    %v4592 = vmul.f32 %v4584, %v4116
    %v4593 = vmul.f32 %v4578, %v4585
    %v4594 = vadd.f32 %v4592, %v4593
    %v4595 = vtanh.pop %v4594
    %v4596 = vmul.f32 %v4591, %v4595
    %4597 = vst [vmem:[#allocation3 + $0x70] sm:$0xff] %v4362
    %4598 = vst [vmem:[#allocation3 + $0x8] sm:$0xff] %v4596
    %v4599 = vld [vmem:[#allocation3] sm:$0xff]
    %v4600 = vld [vmem:[#allocation3 + $0x8] sm:$0xff]
    %v4601 = vld [vmem:[#allocation3 + $0x10] sm:$0xff]
    %v4602 = vld [vmem:[#allocation3 + $0x18] sm:$0xff]
    %v4603 = vld [vmem:[#allocation3 + $0x20] sm:$0xff]
    %v4604 = vld [vmem:[#allocation3 + $0x28] sm:$0xff]
    %v4605 = vld [vmem:[#allocation3 + $0x30] sm:$0xff]
    %v4606 = vld [vmem:[#allocation3 + $0x38] sm:$0xff]
    %v4607 = vld [vmem:[#allocation3 + $0x40] sm:$0xff]
    %v4608 = vld [vmem:[#allocation3 + $0x48] sm:$0xff]
    %v4609 = vld [vmem:[#allocation3 + $0x50] sm:$0xff]
    %v4610 = vld [vmem:[#allocation3 + $0x58] sm:$0xff]
    %v4611 = vld [vmem:[#allocation3 + $0x60] sm:$0xff]
    %v4612 = vld [vmem:[#allocation3 + $0x68] sm:$0xff]
    %v4613 = vld [vmem:[#allocation3 + $0x70] sm:$0xff]
    %v4614 = vld [vmem:[#allocation3 + $0x78] sm:$0xff]
    %v4615 = vld [vmem:[#allocation9] sm:$0xff]
    %v4616 = vld [vmem:[#allocation9 + $0x8] sm:$0xff]
    %v4617 = vld [vmem:[#allocation9 + $0x10] sm:$0xff]
    %v4618 = vld [vmem:[#allocation9 + $0x18] sm:$0xff]
    %v4619 = vld [vmem:[#allocation9 + $0x20] sm:$0xff]
    %v4620 = vld [vmem:[#allocation9 + $0x28] sm:$0xff]
    %v4621 = vld [vmem:[#allocation9 + $0x30] sm:$0xff]
    %v4622 = vld [vmem:[#allocation9 + $0x38] sm:$0xff]
    %v4623 = vld [vmem:[#allocation9 + $0x40] sm:$0xff]
    %v4624 = vld [vmem:[#allocation9 + $0x48] sm:$0xff]
    %v4625 = vld [vmem:[#allocation9 + $0x50] sm:$0xff]
    %v4626 = vld [vmem:[#allocation9 + $0x58] sm:$0xff]
    %v4627 = vld [vmem:[#allocation9 + $0x60] sm:$0xff]
    %v4628 = vld [vmem:[#allocation9 + $0x68] sm:$0xff]
    %v4629 = vld [vmem:[#allocation9 + $0x70] sm:$0xff]
    %v4630 = vld [vmem:[#allocation9 + $0x78] sm:$0xff]
    %v4631 = vld [vmem:[#allocation9 + $0x80] sm:$0xff]
    %v4632 = vld [vmem:[#allocation9 + $0x88] sm:$0xff]
    %v4633 = vld [vmem:[#allocation9 + $0x90] sm:$0xff]
    %v4634 = vld [vmem:[#allocation9 + $0x98] sm:$0xff]
    %v4635 = vld [vmem:[#allocation9 + $0xa0] sm:$0xff]
    %v4636 = vld [vmem:[#allocation9 + $0xa8] sm:$0xff]
    %v4637 = vld [vmem:[#allocation9 + $0xb0] sm:$0xff]
    %v4638 = vld [vmem:[#allocation9 + $0xb8] sm:$0xff]
    %v4639 = vld [vmem:[#allocation9 + $0xc0] sm:$0xff]
    %v4640 = vld [vmem:[#allocation9 + $0xc8] sm:$0xff]
    %v4641 = vld [vmem:[#allocation9 + $0xd0] sm:$0xff]
    %v4642 = vld [vmem:[#allocation9 + $0xd8] sm:$0xff]
    %v4643 = vld [vmem:[#allocation9 + $0xe0] sm:$0xff]
    %v4644 = vld [vmem:[#allocation9 + $0xe8] sm:$0xff]
    %v4645 = vld [vmem:[#allocation9 + $0xf0] sm:$0xff]
    %v4646 = vld [vmem:[#allocation9 + $0xf8] sm:$0xff]
    %v4647 = vld [vmem:[#allocation9 + $0x100] sm:$0xff]
    %v4648 = vld [vmem:[#allocation9 + $0x108] sm:$0xff]
    %v4649 = vld [vmem:[#allocation9 + $0x110] sm:$0xff]
    %v4650 = vld [vmem:[#allocation9 + $0x118] sm:$0xff]
    %v4651 = vld [vmem:[#allocation9 + $0x120] sm:$0xff]
    %v4652 = vld [vmem:[#allocation9 + $0x128] sm:$0xff]
    %v4653 = vld [vmem:[#allocation9 + $0x130] sm:$0xff]
    %v4654 = vld [vmem:[#allocation9 + $0x138] sm:$0xff]
    %v4655 = vld [vmem:[#allocation9 + $0x140] sm:$0xff]
    %v4656 = vld [vmem:[#allocation9 + $0x148] sm:$0xff]
    %v4657 = vld [vmem:[#allocation9 + $0x150] sm:$0xff]
    %v4658 = vld [vmem:[#allocation9 + $0x158] sm:$0xff]
    %v4659 = vld [vmem:[#allocation9 + $0x160] sm:$0xff]
    %v4660 = vld [vmem:[#allocation9 + $0x168] sm:$0xff]
    %v4661 = vld [vmem:[#allocation9 + $0x170] sm:$0xff]
    %v4662 = vld [vmem:[#allocation9 + $0x178] sm:$0xff]
    %v4663 = vld [vmem:[#allocation9 + $0x180] sm:$0xff]
    %v4664 = vld [vmem:[#allocation9 + $0x188] sm:$0xff]
    %v4665 = vld [vmem:[#allocation9 + $0x190] sm:$0xff]
    %v4666 = vld [vmem:[#allocation9 + $0x198] sm:$0xff]
    %v4667 = vld [vmem:[#allocation9 + $0x1a0] sm:$0xff]
    %v4668 = vld [vmem:[#allocation9 + $0x1a8] sm:$0xff]
    %v4669 = vld [vmem:[#allocation9 + $0x1b0] sm:$0xff]
    %v4670 = vld [vmem:[#allocation9 + $0x1b8] sm:$0xff]
    %v4671 = vld [vmem:[#allocation9 + $0x1c0] sm:$0xff]
    %v4672 = vld [vmem:[#allocation9 + $0x1c8] sm:$0xff]
    %v4673 = vld [vmem:[#allocation9 + $0x1d0] sm:$0xff]
    %v4674 = vld [vmem:[#allocation9 + $0x1d8] sm:$0xff]
    %v4675 = vld [vmem:[#allocation9 + $0x1e0] sm:$0xff]
    %v4676 = vld [vmem:[#allocation9 + $0x1e8] sm:$0xff]
    %v4677 = vld [vmem:[#allocation9 + $0x1f0] sm:$0xff]
    %v4678 = vld [vmem:[#allocation9 + $0x1f8] sm:$0xff]
    %v4679 = vld [vmem:[%s6] sm:$0x3]
    %v4681 = vlaneseq
    %v4682 = vshrl.u32 %v4681, 7
    %v4683 = vsub.s32 0, %v4682
    %v4684 = vrot.slane %v4679, %v4683
    %v4685 = vlaneseq
    %v4686 = vshrl.u32 %v4685, 7
    %v4687 = vsub.s32 1, %v4686
    %v4688 = vrot.slane %v4679, %v4687
    %4691 = vmatprep.subr.mxu0 %v4646
    %4692 = vmatpush1.msra.mxu0 %v4645
    %4693 = vmatprep.subr.mxu0 %v4644
    %4694 = vmatpush1.msra.mxu0 %v4643
    %4695 = vmatprep.subr.mxu0 %v4642
    %4696 = vmatpush1.msra.mxu0 %v4641
    %4697 = vmatprep.subr.mxu0 %v4640
    %4698 = vmatpush1.msra.mxu0 %v4639
    %4699 = vmatprep.subr.mxu0 %v4638
    %4700 = vmatpush1.msra.mxu0 %v4637
    %4701 = vmatprep.subr.mxu0 %v4636
    %4702 = vmatpush1.msra.mxu0 %v4635
    %4703 = vmatprep.subr.mxu0 %v4634
    %4704 = vmatpush1.msra.mxu0 %v4633
    %4705 = vmatprep.subr.mxu0 %v4632
    %4706 = vmatpush1.msra.mxu0 %v4631
    %4707 = vmatprep.subr.mxu0 %v4630
    %4708 = vmatpush1.msra.mxu0 %v4629
    %4709 = vmatprep.subr.mxu0 %v4628
    %4710 = vmatpush1.msra.mxu0 %v4627
    %4711 = vmatprep.subr.mxu0 %v4626
    %4712 = vmatpush1.msra.mxu0 %v4625
    %4713 = vmatprep.subr.mxu0 %v4624
    %4714 = vmatpush1.msra.mxu0 %v4623
    %4715 = vmatprep.subr.mxu0 %v4622
    %4716 = vmatpush1.msra.mxu0 %v4621
    %4717 = vmatprep.subr.mxu0 %v4620
    %4718 = vmatpush1.msra.mxu0 %v4619
    %4719 = vmatprep.subr.mxu0 %v4618
    %4720 = vmatpush1.msra.mxu0 %v4617
    %4721 = vmatprep.subr.mxu0 %v4616
    %4722 = vmatpush1.msra.mxu0 %v4615
    %4723 = vmatprep.subr.mxu0 %v4678
    %4724 = vmatpush2.msra.mxu0 %v4677
    %4725 = vmatprep.subr.mxu0 %v4676
    %4726 = vmatpush2.msra.mxu0 %v4675
    %4727 = vmatprep.subr.mxu0 %v4674
    %4728 = vmatpush2.msra.mxu0 %v4673
    %4729 = vmatprep.subr.mxu0 %v4672
    %4730 = vmatpush2.msra.mxu0 %v4671
    %4731 = vmatprep.subr.mxu0 %v4670
    %4732 = vmatpush2.msra.mxu0 %v4669
    %4733 = vmatprep.subr.mxu0 %v4668
    %4734 = vmatpush2.msra.mxu0 %v4667
    %4735 = vmatprep.subr.mxu0 %v4666
    %4736 = vmatpush2.msra.mxu0 %v4665
    %4737 = vmatprep.subr.mxu0 %v4664
    %4738 = vmatpush2.msra.mxu0 %v4663
    %4739 = vmatprep.subr.mxu0 %v4662
    %4740 = vmatpush2.msra.mxu0 %v4661
    %4741 = vmatprep.subr.mxu0 %v4660
    %4742 = vmatpush2.msra.mxu0 %v4659
    %4743 = vmatprep.subr.mxu0 %v4658
    %4744 = vmatpush2.msra.mxu0 %v4657
    %4745 = vmatprep.subr.mxu0 %v4656
    %4746 = vmatpush2.msra.mxu0 %v4655
    %4747 = vmatprep.subr.mxu0 %v4654
    %4748 = vmatpush2.msra.mxu0 %v4653
    %4749 = vmatprep.subr.mxu0 %v4652
    %4750 = vmatpush2.msra.mxu0 %v4651
    %4751 = vmatprep.subr.mxu0 %v4650
    %4752 = vmatpush2.msra.mxu0 %v4649
    %4753 = vmatprep.subr.mxu0 %v4648
    %4754 = vmatpush2.msra.mxu0 %v4647
    %4755 = vmatprep.mubr.f32.mxu0 %v4600
    %4756 = vmatmul.mubr.f32.gmra.mxu0 %v4599
    %v4757 = vpop.f32.mrf.mxu0
    %v4758 = vadd.f32 %v4684, %v4757
    %v4759 = vpop.f32.mrf.mxu0
    %v4760 = vadd.f32 %v4688, %v4759
    %4761 = vmatprep.mubr.f32.mxu0 %v4602
    %4762 = vmatmul.mubr.f32.gmra.mxu0 %v4601
    %v4763 = vpop.f32.mrf.mxu0
    %v4764 = vadd.f32 %v4684, %v4763
    %v4765 = vpop.f32.mrf.mxu0
    %v4766 = vadd.f32 %v4688, %v4765
    %4767 = vmatprep.mubr.f32.mxu0 %v4604
    %4768 = vmatmul.mubr.f32.gmra.mxu0 %v4603
    %v4769 = vpop.f32.mrf.mxu0
    %v4770 = vadd.f32 %v4684, %v4769
    %v4771 = vpop.f32.mrf.mxu0
    %v4772 = vadd.f32 %v4688, %v4771
    %4773 = vmatprep.mubr.f32.mxu0 %v4606
    %4774 = vmatmul.mubr.f32.gmra.mxu0 %v4605
    %v4775 = vpop.f32.mrf.mxu0
    %v4776 = vadd.f32 %v4684, %v4775
    %v4777 = vpop.f32.mrf.mxu0
    %v4778 = vadd.f32 %v4688, %v4777
    %4779 = vmatprep.mubr.f32.mxu0 %v4608
    %4780 = vmatmul.mubr.f32.gmra.mxu0 %v4607
    %v4781 = vpop.f32.mrf.mxu0
    %v4782 = vadd.f32 %v4684, %v4781
    %v4783 = vpop.f32.mrf.mxu0
    %v4784 = vadd.f32 %v4688, %v4783
    %4785 = vmatprep.mubr.f32.mxu0 %v4610
    %4786 = vmatmul.mubr.f32.gmra.mxu0 %v4609
    %v4787 = vpop.f32.mrf.mxu0
    %v4788 = vadd.f32 %v4684, %v4787
    %v4789 = vpop.f32.mrf.mxu0
    %v4790 = vadd.f32 %v4688, %v4789
    %4791 = vmatprep.mubr.f32.mxu0 %v4612
    %4792 = vmatmul.mubr.f32.gmra.mxu0 %v4611
    %v4793 = vpop.f32.mrf.mxu0
    %v4794 = vadd.f32 %v4684, %v4793
    %v4795 = vpop.f32.mrf.mxu0
    %v4796 = vadd.f32 %v4688, %v4795
    %4797 = vmatprep.mubr.f32.mxu0 %v4614
    %4798 = vmatmul.mubr.f32.gmra.mxu0 %v4613
    %v4799 = vpop.f32.mrf.mxu0
    %v4800 = vadd.f32 %v4684, %v4799
    %v4801 = vpop.f32.mrf.mxu0
    %v4802 = vadd.f32 %v4688, %v4801
    %4803 = vdwg.mxu0
    %4804 = vst [vmem:[%s7] sm:$0xff] %v4758
    %4805 = vst [vmem:[%s7 + $0x8] sm:$0xff] %v4760
    %4806 = vst [vmem:[%s7 + $0x10] sm:$0xff] %v4764
    %4807 = vst [vmem:[%s7 + $0x18] sm:$0xff] %v4766
    %4808 = vst [vmem:[%s7 + $0x20] sm:$0xff] %v4770
    %4809 = vst [vmem:[%s7 + $0x28] sm:$0xff] %v4772
    %4810 = vst [vmem:[%s7 + $0x30] sm:$0xff] %v4776
    %4811 = vst [vmem:[%s7 + $0x38] sm:$0xff] %v4778
    %4812 = vst [vmem:[%s7 + $0x40] sm:$0xff] %v4782
    %4813 = vst [vmem:[%s7 + $0x48] sm:$0xff] %v4784
    %4814 = vst [vmem:[%s7 + $0x50] sm:$0xff] %v4788
    %4815 = vst [vmem:[%s7 + $0x58] sm:$0xff] %v4790
    %4816 = vst [vmem:[%s7 + $0x60] sm:$0xff] %v4794
    %4817 = vst [vmem:[%s7 + $0x68] sm:$0xff] %v4796
    %4818 = vst [vmem:[%s7 + $0x70] sm:$0xff] %v4800
    %4819 = vst [vmem:[%s7 + $0x78] sm:$0xff] %v4802
    // Predicated region
    $region46: #{decoder_rnn_forward.1} parent=1 // pred_check
      _
    $region47: #{decoder_rnn_forward.1} parent=1 // pred_check_branch
      %4821 = sbr.rel (0) target = $region49
    $region48: #{decoder_rnn_forward.1} parent=1 // pred_region
      _
    $region49: #{decoder_rnn_forward.1} parent=1 // pred_fallthru
      _
    // Predicated region
    $region50: #{decoder_rnn_forward.1} parent=1 // pred_check
      _
    $region51: #{decoder_rnn_forward.1} parent=1 // pred_check_branch
      %4823 = sbr.rel (0) target = $region53
    $region52: #{decoder_rnn_forward.1} parent=1 // pred_region
      _
    $region53: #{decoder_rnn_forward.1} parent=1 // pred_fallthru
      _
    %4824 = vsyncpa [#allocation5], 1
    %4825 = vsyncpa [#allocation7], 1
    %4826 = vsyncpa [#allocation10], 1

</llo_original>
